<compile_context>
chip_gen: v6e
topology: v6e:2x2x1
jax: 0.10.0
libtpu: 0.0.40
codegen_flags: <defaults>
</compile_context>

<pallas_src>
import functools

import jax
import jax.numpy as jnp
from jax.experimental import pallas as pl
from jax.experimental.pallas import tpu as pltpu


# ----------------------------------------------------------------------------
# In-kernel building blocks (pure functions on VMEM/vreg-resident values)
# ----------------------------------------------------------------------------

def _matmul(x, w):
    """(M, K) @ (K, N).  Tiny K -> unrolled VPU multiply-accumulate (keeps the
    op off the serial MXU push/drain chain); otherwise a single MXU matmul."""
    K = x.shape[-1]
    if K <= 8:
        acc = x[:, 0:1] * w[0:1, :]
        for k in range(1, K):
            acc = acc + x[:, k:k + 1] * w[k:k + 1, :]
        return acc
    return jnp.dot(x, w, preferred_element_type=jnp.float32)


def _causal_conv_relu(x2d, w_cat, b, dilation, keep):
    """k=2 dilated causal conv (+chomp) + ReLU on a (B*L, C) batch-major slab.

    y[r] = relu([x[r-d], x[r]] @ w_cat + b) with x==0 across each sequence's
    left boundary; `keep` is a host-precomputed (B*L, 1) {0,1} mask that zeroes
    the rows of the shifted copy that leaked across a sequence boundary.
    """
    BL, C = x2d.shape
    d = dilation
    shifted = jnp.concatenate(
        [jnp.zeros((d, C), jnp.float32), x2d[:BL - d, :]], axis=0) * keep
    xin = jnp.concatenate([shifted, x2d], axis=-1)          # (BL, 2C), lane cat
    return jnp.maximum(_matmul(xin, w_cat) + b, 0.0)


# ----------------------------------------------------------------------------
# Fused forward kernel: 3 TCN blocks + 2-layer LSTM + fc head in ONE kernel.
# Only the lane-dense LSTM output (B, T*H) and the (B, 1) head output go to HBM.
# ----------------------------------------------------------------------------

def fused_forward_kernel(x_ref, h0_ref, c0_ref, slab_ref,
                         lstm_out_ref, head_out_ref, *pool_refs,
                         meta, levels, B, H, T, eps=1e-5):
    def get(name):
        off, r, c = meta[name]
        return slab_ref[off:off + r, 0:c]        # static window -> cheap view

    # ---- TCN levels (batch*time flattened, batch-major rows) ---------------
    act = x_ref[...]                              # (B*L0, Cin) f32, VMEM
    for i, (L, _cin, cout, d, has_down) in enumerate(levels):
        keep = get(f"mask_{i}")                   # (B*L, 1) causal-boundary mask
        h1 = _causal_conv_relu(act, get(f"w1c_{i}"), get(f"b1_{i}"), d, keep)
        h2 = _causal_conv_relu(h1, get(f"w2c_{i}"), get(f"b2_{i}"), d, keep)
        if has_down:                              # 1x1 conv residual
            res = _matmul(act, get(f"wd_{i}")) + get(f"bd_{i}")
        else:                                     # Cin == Cout: identity, no matmul
            res = act
        s = h2 + res

        # BatchNorm1d over channels, batch statistics (biased variance), ReLU.
        # TODO(synk): if the reference runs under model.eval(), BN should use
        # running_mean/var instead of batch stats.
        mean = jnp.mean(s, axis=0, keepdims=True)
        var = jnp.mean((s - mean) ** 2, axis=0, keepdims=True)
        y = jnp.maximum((s - mean) * jax.lax.rsqrt(var + eps)
                        * get(f"gamma_{i}") + get(f"beta_{i}"), 0.0)

        # MaxPool1d(kernel=2, stride=2): row parity == time parity (L is even),
        # so two sublane-strided VMEM reads give the even/odd time steps.
        pool = pool_refs[i]
        pool[...] = y
        half = (B * L) // 2
        act = jnp.maximum(pool[pl.ds(0, half, stride=2), :],
                          pool[pl.ds(1, half, stride=2), :])
    # act: (B*T, C_last), batch-major

    # ---- 2-layer LSTM, wavefront-interleaved --------------------------------
    # TODO(synk): PyTorch samples h0/c0 with torch.randn every forward; here
    # they are deterministic kernel inputs.
    w1cat, bl1 = get("lstm_w1"), get("lstm_b1")   # (C_last+H, 4H), (1, 4H)
    w2cat, bl2 = get("lstm_w2"), get("lstm_b2")   # (2H, 4H),      (1, 4H)

    def lstm_step(inp, hprev, cprev, wcat, b):
        # One fused [x, h] @ [W_ih; W_hh] matmul per step (PyTorch gate order
        # i, f, g, o), gate math on the EUP/VPU.
        g = _matmul(jnp.concatenate([inp, hprev], axis=-1), wcat) + b
        i_g = jax.nn.sigmoid(g[:, 0 * H:1 * H])
        f_g = jax.nn.sigmoid(g[:, 1 * H:2 * H])
        g_g = jnp.tanh(g[:, 2 * H:3 * H])
        o_g = jax.nn.sigmoid(g[:, 3 * H:4 * H])
        c = f_g * cprev + i_g * g_g
        return o_g * jnp.tanh(c), c

    h1s, c1s = h0_ref[0], c0_ref[0]               # (B, H)
    h2s, c2s = h0_ref[1], c0_ref[1]
    h2_steps = []
    # Wavefront: iteration s emits layer-2 step s-1 (consumes h1 of step s-1,
    # i.e. the current h1s) together with layer-1 step s -> the two matmuls are
    # data-independent and interleave, shortening the serial chain to ~T+1.
    for s_ in range(T + 1):
        if s_ >= 1:
            h2s, c2s = lstm_step(h1s, h2s, c2s, w2cat, bl2)
            h2_steps.append(h2s)
        if s_ < T:
            x_t = jnp.concatenate(
                [act[bb * T + s_: bb * T + s_ + 1, :] for bb in range(B)],
                axis=0)                            # (B, C_last)
            h1s, c1s = lstm_step(x_t, h1s, c1s, w1cat, bl1)

    # Lane-dense single store of the whole LSTM output: (B, T*H).
    lstm_out_ref[...] = jnp.concatenate(h2_steps, axis=-1)

    # ---- Head: fc1 -> BN(time-as-channels, batch stats) -> relu -> fc2 ------
    # Only t = T-1 is computed (Output[:, -1, :], per-time-channel BN stats).
    z = _matmul(h2s, get("head_w1")) + get("head_b1")         # (B, H//2)
    mean = jnp.mean(z, keepdims=True)
    var = jnp.mean((z - mean) ** 2, keepdims=True)
    zn = jnp.maximum((z - mean) * jax.lax.rsqrt(var + eps)
                     * get("head_gamma") + get("head_beta"), 0.0)
    head_out_ref[...] = (jnp.sum(zn * get("head_w2row"), axis=-1, keepdims=True)
                         + get("head_b2"))


# ----------------------------------------------------------------------------
# Host-side packing: all parameters (+ causal masks) into ONE (R, 128) slab.
# ----------------------------------------------------------------------------

def pack_params(params, seq_len, batch):
    blocks = params["blocks"]
    H = params["lstm"]["hidden"]
    T = seq_len // (2 ** len(blocks))

    entries = []

    def add(name, a):
        entries.append((name, jnp.asarray(a, jnp.float32)))

    levels = []
    L = seq_len
    for i, blk in enumerate(blocks):
        cin, cout = blk["w10"].shape
        # Stacked conv weights: rows [w(:,:,0)^T ; w(:,:,1)^T] -> one matmul/conv.
        add(f"w1c_{i}", jnp.concatenate([blk["w10"], blk["w11"]], axis=0))
        add(f"b1_{i}", blk["b1"])
        add(f"w2c_{i}", jnp.concatenate([blk["w20"], blk["w21"]], axis=0))
        add(f"b2_{i}", blk["b2"])
        has_down = "wd" in blk
        if has_down:
            add(f"wd_{i}", blk["wd"])
            add(f"bd_{i}", blk["bd"])
        add(f"gamma_{i}", blk["gamma"])
        add(f"beta_{i}", blk["beta"])
        # Causal-boundary keep mask for the shifted copy: 0 where t_local < d.
        d = blk["dilation"]
        t_local = jnp.arange(batch * L, dtype=jnp.int32) % L
        add(f"mask_{i}", (t_local >= d).astype(jnp.float32).reshape(-1, 1))
        levels.append((L, cin, cout, d, has_down))
        L //= 2

    lp = params["lstm"]
    add("lstm_w1", jnp.concatenate([lp["wih1"], lp["whh1"]], axis=0))
    add("lstm_b1", lp["b1"])
    add("lstm_w2", jnp.concatenate([lp["wih2"], lp["whh2"]], axis=0))
    add("lstm_b2", lp["b2"])

    hp = params["head"]
    add("head_w1", hp["w1"])
    add("head_b1", hp["b1"])
    add("head_w2row", hp["w2"].T)                 # (1, H/2): fc2 as VPU reduce
    add("head_b2", hp["b2"])
    add("head_gamma", hp["gamma"][:, T - 1:T])    # only last time channel used
    add("head_beta", hp["beta"][:, T - 1:T])

    meta = {}
    rows = []
    cursor = 0
    for name, a in entries:
        r, c = a.shape
        rp = ((r + 7) // 8) * 8                   # 8-row aligned sub-blocks
        blkpad = jnp.zeros((rp, 128), jnp.float32).at[:r, :c].set(a)
        rows.append(blkpad)
        meta[name] = (cursor, r, c)
        cursor += rp
    slab = jnp.concatenate(rows, axis=0)          # single (R, 128) slab -> 1 DMA
    return slab, meta, tuple(levels)


# ----------------------------------------------------------------------------
# Wrapper: one grid-less pallas_call for the whole forward pass.
# ----------------------------------------------------------------------------

def temporal_conv_net_forward(slab, meta, levels, x, h0, c0):
    """x: (B, seq_len, num_inputs). Returns (Lstm_x, Output, None, None, None)."""
    B, L0, Cin = x.shape
    H = h0.shape[-1]
    T = L0 // (2 ** len(levels))
    x2d = x.reshape(B * L0, Cin)                  # free metadata reshape in HBM

    kernel = functools.partial(fused_forward_kernel, meta=meta, levels=levels,
                               B=B, H=H, T=T)
    vmem = functools.partial(pl.BlockSpec, memory_space=pltpu.MemorySpace.VMEM)
    # TODO(synk): on v7x, add a 'parallel' batch grid axis to use both
    # TensorCores; at B=2 it is a wash, so the call stays grid-less.
    lstm_flat, head = pl.pallas_call(
        kernel,
        out_shape=(jax.ShapeDtypeStruct((B, T * H), jnp.float32),
                   jax.ShapeDtypeStruct((B, 1), jnp.float32)),
        in_specs=[vmem(), vmem(), vmem(), vmem()],
        out_specs=(vmem(), vmem()),
        scratch_shapes=[pltpu.VMEM((B * L, cout), jnp.float32)
                        for (L, _cin, cout, _d, _hd) in levels],
    )(x2d, h0, c0, slab)

    # AdvSKM / Gate1 / weight-boosting branches: whether_train=False path.
    return lstm_flat.reshape(B, T, H), head, None, None, None


# ----------------------------------------------------------------------------
# Deterministic parameter init (shapes follow the PyTorch __init__)
# ----------------------------------------------------------------------------

def init_params(key, num_inputs, num_channels, kernel_size, hidden_size,
                seq_len):
    keys = iter(jax.random.split(key, 64))
    f32 = jnp.float32

    blocks = []
    in_ch = num_inputs
    for i, out_ch in enumerate(num_channels):
        d = 2 ** i
        # TODO(synk): weight_norm's g*v/||v|| reparametrization is folded into a
        # single effective conv weight (forward-equivalent for these values).
        w1 = 0.01 * jax.random.normal(next(keys), (out_ch, in_ch, kernel_size), f32)
        w2 = 0.01 * jax.random.normal(next(keys), (out_ch, out_ch, kernel_size), f32)
        b1 = 0.01 * jax.random.normal(next(keys), (1, out_ch), f32)
        b2 = 0.01 * jax.random.normal(next(keys), (1, out_ch), f32)
        blk = dict(
            dilation=d,
            w10=jnp.transpose(w1[:, :, 0]), w11=jnp.transpose(w1[:, :, 1]), b1=b1,
            w20=jnp.transpose(w2[:, :, 0]), w21=jnp.transpose(w2[:, :, 1]), b2=b2,
            gamma=jnp.ones((1, out_ch), f32), beta=jnp.zeros((1, out_ch), f32),
        )
        if in_ch != out_ch:       # PyTorch: downsample 1x1 conv, else identity
            blk["wd"] = 0.01 * jax.random.normal(next(keys), (out_ch, in_ch), f32).T
            blk["bd"] = 0.01 * jax.random.normal(next(keys), (1, out_ch), f32)
        blocks.append(blk)
        in_ch = out_ch

    H = hidden_size
    C = num_channels[-1]
    s = 1.0 / jnp.sqrt(H)

    def uni(k, shape):
        return jax.random.uniform(k, shape, f32, -s, s)

    lstm = dict(
        hidden=H,
        wih1=uni(next(keys), (4 * H, C)).T, whh1=uni(next(keys), (4 * H, H)).T,
        b1=(uni(next(keys), (1, 4 * H)) + uni(next(keys), (1, 4 * H))),
        wih2=uni(next(keys), (4 * H, H)).T, whh2=uni(next(keys), (4 * H, H)).T,
        b2=(uni(next(keys), (1, 4 * H)) + uni(next(keys), (1, 4 * H))),
    )

    T = seq_len // (2 ** len(num_channels))   # time steps after the TCN pools
    H2 = H // 2
    s1 = 1.0 / jnp.sqrt(H)
    s2 = 1.0 / jnp.sqrt(H2)
    head = dict(
        w1=jax.random.uniform(next(keys), (H, H2), f32, -s1, s1),
        b1=jax.random.uniform(next(keys), (1, H2), f32, -s1, s1),
        gamma=jnp.ones((1, T), f32),          # bn1 (time dim treated as channels)
        beta=jnp.zeros((1, T), f32),
        w2=jax.random.uniform(next(keys), (H2, 1), f32, -s2, s2),
        b2=jax.random.uniform(next(keys), (1, 1), f32, -s2, s2),
    )

    return dict(blocks=blocks, lstm=lstm, head=head)


# ----------------------------------------------------------------------------
# Main
# ----------------------------------------------------------------------------

if __name__ == "__main__":
    B = 2
    seq_len = 32
    num_inputs = 4
    num_channels = [8, 16, 16]
    kernel_size = 2
    hidden_size = 32
    num_layers = 2
    num_direction = 1

    key = jax.random.PRNGKey(0)
    kp, kx, kh, kc = jax.random.split(key, 4)

    params = init_params(kp, num_inputs, num_channels, kernel_size,
                         hidden_size, seq_len)
    slab, meta, levels = pack_params(params, seq_len, B)

    x = jax.random.normal(kx, (B, seq_len, num_inputs), jnp.float32)
    # torch.randn initial states (deterministic here)
    h0 = jax.random.normal(kh, (num_direction * num_layers, B, hidden_size),
                           jnp.float32)
    c0 = jax.random.normal(kc, (num_direction * num_layers, B, hidden_size),
                           jnp.float32)

    lstm_x, out, m_dgloss, weight_mat, dist_mat = temporal_conv_net_forward(
        slab, meta, levels, x, h0, c0)
    jax.block_until_ready((lstm_x, out))

    expected_T = seq_len // (2 ** len(num_channels))
    assert lstm_x.shape == (B, expected_T, hidden_size), lstm_x.shape
    assert out.shape == (B, 1), out.shape
    print("KERNEL_OK")
</pallas_src>

<mosaic_0001>
module attributes {stable_mosaic.version = 11 : i64} {
  func.func @fused_forward_kernel(%arg0: memref<64x4xf32, #tpu.memory_space<vmem>>, %arg1: memref<2x2x32xf32, #tpu.memory_space<vmem>>, %arg2: memref<2x2x32xf32, #tpu.memory_space<vmem>>, %arg3: memref<576x128xf32, #tpu.memory_space<vmem>>, %arg4: memref<2x128xf32, #tpu.memory_space<vmem>>, %arg5: memref<2x1xf32, #tpu.memory_space<vmem>>, %arg6: memref<64x8xf32, #tpu.memory_space<vmem>>, %arg7: memref<32x16xf32, #tpu.memory_space<vmem>>, %arg8: memref<16x16xf32, #tpu.memory_space<vmem>>) attributes {dimension_semantics = [], scalar_prefetch = 0 : i64, scratch_operands = 3 : i64, tpu.core_type = #tpu.core_type<tc>} {
    %c0 = arith.constant 0 : index
    %c0_0 = arith.constant 0 : index
    %0 = vector.load %arg0[%c0, %c0_0] : memref<64x4xf32, #tpu.memory_space<vmem>>, vector<64x4xf32>
    %c72 = arith.constant 72 : index
    %c0_1 = arith.constant 0 : index
    %1 = vector.load %arg3[%c72, %c0_1] : memref<576x128xf32, #tpu.memory_space<vmem>>, vector<64x1xf32>
    %c0_2 = arith.constant 0 : index
    %c0_3 = arith.constant 0 : index
    %2 = vector.load %arg3[%c0_2, %c0_3] : memref<576x128xf32, #tpu.memory_space<vmem>>, vector<8x8xf32>
    %c8 = arith.constant 8 : index
    %c0_4 = arith.constant 0 : index
    %3 = vector.load %arg3[%c8, %c0_4] : memref<576x128xf32, #tpu.memory_space<vmem>>, vector<1x8xf32>
    %cst = arith.constant 0.000000e+00 : f32
    %4 = vector.broadcast %cst : f32 to vector<1x4xf32>
    %5 = vector.extract_strided_slice %0 {offsets = [0, 0], sizes = [63, 4], strides = [1, 1]} : vector<64x4xf32> to vector<63x4xf32>
    %6 = tpu.concatenate %4, %5 in 0 : vector<1x4xf32>, vector<63x4xf32> -> vector<64x4xf32>
    %7 = vector.broadcast %1 : vector<64x1xf32> to vector<64x4xf32>
    %8 = arith.mulf %6, %7 : vector<64x4xf32>
    %9 = tpu.concatenate %8, %0 in 1 : vector<64x4xf32>, vector<64x4xf32> -> vector<64x8xf32>
    %10 = vector.extract_strided_slice %9 {offsets = [0, 0], sizes = [64, 1], strides = [1, 1]} : vector<64x8xf32> to vector<64x1xf32>
    %11 = vector.extract_strided_slice %2 {offsets = [0, 0], sizes = [1, 8], strides = [1, 1]} : vector<8x8xf32> to vector<1x8xf32>
    %12 = vector.broadcast %10 : vector<64x1xf32> to vector<64x8xf32>
    %13 = vector.broadcast %11 : vector<1x8xf32> to vector<64x8xf32>
    %14 = arith.mulf %12, %13 : vector<64x8xf32>
    %15 = vector.extract_strided_slice %9 {offsets = [0, 1], sizes = [64, 1], strides = [1, 1]} : vector<64x8xf32> to vector<64x1xf32>
    %16 = vector.extract_strided_slice %2 {offsets = [1, 0], sizes = [1, 8], strides = [1, 1]} : vector<8x8xf32> to vector<1x8xf32>
    %17 = vector.broadcast %15 : vector<64x1xf32> to vector<64x8xf32>
    %18 = vector.broadcast %16 : vector<1x8xf32> to vector<64x8xf32>
    %19 = arith.mulf %17, %18 : vector<64x8xf32>
    %20 = arith.addf %14, %19 : vector<64x8xf32>
    %21 = vector.extract_strided_slice %9 {offsets = [0, 2], sizes = [64, 1], strides = [1, 1]} : vector<64x8xf32> to vector<64x1xf32>
    %22 = vector.extract_strided_slice %2 {offsets = [2, 0], sizes = [1, 8], strides = [1, 1]} : vector<8x8xf32> to vector<1x8xf32>
    %23 = vector.broadcast %21 : vector<64x1xf32> to vector<64x8xf32>
    %24 = vector.broadcast %22 : vector<1x8xf32> to vector<64x8xf32>
    %25 = arith.mulf %23, %24 : vector<64x8xf32>
    %26 = arith.addf %20, %25 : vector<64x8xf32>
    %27 = vector.extract_strided_slice %9 {offsets = [0, 3], sizes = [64, 1], strides = [1, 1]} : vector<64x8xf32> to vector<64x1xf32>
    %28 = vector.extract_strided_slice %2 {offsets = [3, 0], sizes = [1, 8], strides = [1, 1]} : vector<8x8xf32> to vector<1x8xf32>
    %29 = vector.broadcast %27 : vector<64x1xf32> to vector<64x8xf32>
    %30 = vector.broadcast %28 : vector<1x8xf32> to vector<64x8xf32>
    %31 = arith.mulf %29, %30 : vector<64x8xf32>
    %32 = arith.addf %26, %31 : vector<64x8xf32>
    %33 = vector.extract_strided_slice %9 {offsets = [0, 4], sizes = [64, 1], strides = [1, 1]} : vector<64x8xf32> to vector<64x1xf32>
    %34 = vector.extract_strided_slice %2 {offsets = [4, 0], sizes = [1, 8], strides = [1, 1]} : vector<8x8xf32> to vector<1x8xf32>
    %35 = vector.broadcast %33 : vector<64x1xf32> to vector<64x8xf32>
    %36 = vector.broadcast %34 : vector<1x8xf32> to vector<64x8xf32>
    %37 = arith.mulf %35, %36 : vector<64x8xf32>
    %38 = arith.addf %32, %37 : vector<64x8xf32>
    %39 = vector.extract_strided_slice %9 {offsets = [0, 5], sizes = [64, 1], strides = [1, 1]} : vector<64x8xf32> to vector<64x1xf32>
    %40 = vector.extract_strided_slice %2 {offsets = [5, 0], sizes = [1, 8], strides = [1, 1]} : vector<8x8xf32> to vector<1x8xf32>
    %41 = vector.broadcast %39 : vector<64x1xf32> to vector<64x8xf32>
    %42 = vector.broadcast %40 : vector<1x8xf32> to vector<64x8xf32>
    %43 = arith.mulf %41, %42 : vector<64x8xf32>
    %44 = arith.addf %38, %43 : vector<64x8xf32>
    %45 = vector.extract_strided_slice %9 {offsets = [0, 6], sizes = [64, 1], strides = [1, 1]} : vector<64x8xf32> to vector<64x1xf32>
    %46 = vector.extract_strided_slice %2 {offsets = [6, 0], sizes = [1, 8], strides = [1, 1]} : vector<8x8xf32> to vector<1x8xf32>
    %47 = vector.broadcast %45 : vector<64x1xf32> to vector<64x8xf32>
    %48 = vector.broadcast %46 : vector<1x8xf32> to vector<64x8xf32>
    %49 = arith.mulf %47, %48 : vector<64x8xf32>
    %50 = arith.addf %44, %49 : vector<64x8xf32>
    %51 = vector.extract_strided_slice %9 {offsets = [0, 7], sizes = [64, 1], strides = [1, 1]} : vector<64x8xf32> to vector<64x1xf32>
    %52 = vector.extract_strided_slice %2 {offsets = [7, 0], sizes = [1, 8], strides = [1, 1]} : vector<8x8xf32> to vector<1x8xf32>
    %53 = vector.broadcast %51 : vector<64x1xf32> to vector<64x8xf32>
    %54 = vector.broadcast %52 : vector<1x8xf32> to vector<64x8xf32>
    %55 = arith.mulf %53, %54 : vector<64x8xf32>
    %56 = arith.addf %50, %55 : vector<64x8xf32>
    %57 = vector.broadcast %3 : vector<1x8xf32> to vector<64x8xf32>
    %58 = arith.addf %56, %57 : vector<64x8xf32>
    %cst_5 = arith.constant 0.000000e+00 : f32
    %59 = vector.broadcast %cst_5 : f32 to vector<64x8xf32>
    %60 = arith.maximumf %58, %59 : vector<64x8xf32>
    %c16 = arith.constant 16 : index
    %c0_6 = arith.constant 0 : index
    %61 = vector.load %arg3[%c16, %c0_6] : memref<576x128xf32, #tpu.memory_space<vmem>>, vector<16x8xf32>
    %c32 = arith.constant 32 : index
    %c0_7 = arith.constant 0 : index
    %62 = vector.load %arg3[%c32, %c0_7] : memref<576x128xf32, #tpu.memory_space<vmem>>, vector<1x8xf32>
    %cst_8 = arith.constant 0.000000e+00 : f32
    %63 = vector.broadcast %cst_8 : f32 to vector<1x8xf32>
    %64 = vector.extract_strided_slice %60 {offsets = [0, 0], sizes = [63, 8], strides = [1, 1]} : vector<64x8xf32> to vector<63x8xf32>
    %65 = tpu.concatenate %63, %64 in 0 : vector<1x8xf32>, vector<63x8xf32> -> vector<64x8xf32>
    %66 = vector.broadcast %1 : vector<64x1xf32> to vector<64x8xf32>
    %67 = arith.mulf %65, %66 : vector<64x8xf32>
    %68 = tpu.concatenate %67, %60 in 1 : vector<64x8xf32>, vector<64x8xf32> -> vector<64x16xf32>
    %cst_9 = arith.constant dense<0.000000e+00> : vector<64x8xf32>
    %69 = tpu.matmul %68, %61, %cst_9 {dimension_numbers = #tpu.dot_dimension_numbers<[1], [0], [0], [1], [0, 0, 1, 1], [], []>} : vector<64x16xf32>, vector<16x8xf32>, vector<64x8xf32> -> vector<64x8xf32>
    %70 = vector.broadcast %62 : vector<1x8xf32> to vector<64x8xf32>
    %71 = arith.addf %69, %70 : vector<64x8xf32>
    %cst_10 = arith.constant 0.000000e+00 : f32
    %72 = vector.broadcast %cst_10 : f32 to vector<64x8xf32>
    %73 = arith.maximumf %71, %72 : vector<64x8xf32>
    %c40 = arith.constant 40 : index
    %c0_11 = arith.constant 0 : index
    %74 = vector.load %arg3[%c40, %c0_11] : memref<576x128xf32, #tpu.memory_space<vmem>>, vector<4x8xf32>
    %75 = vector.extract_strided_slice %0 {offsets = [0, 0], sizes = [64, 1], strides = [1, 1]} : vector<64x4xf32> to vector<64x1xf32>
    %76 = vector.extract_strided_slice %74 {offsets = [0, 0], sizes = [1, 8], strides = [1, 1]} : vector<4x8xf32> to vector<1x8xf32>
    %77 = vector.broadcast %75 : vector<64x1xf32> to vector<64x8xf32>
    %78 = vector.broadcast %76 : vector<1x8xf32> to vector<64x8xf32>
    %79 = arith.mulf %77, %78 : vector<64x8xf32>
    %80 = vector.extract_strided_slice %0 {offsets = [0, 1], sizes = [64, 1], strides = [1, 1]} : vector<64x4xf32> to vector<64x1xf32>
    %81 = vector.extract_strided_slice %74 {offsets = [1, 0], sizes = [1, 8], strides = [1, 1]} : vector<4x8xf32> to vector<1x8xf32>
    %82 = vector.broadcast %80 : vector<64x1xf32> to vector<64x8xf32>
    %83 = vector.broadcast %81 : vector<1x8xf32> to vector<64x8xf32>
    %84 = arith.mulf %82, %83 : vector<64x8xf32>
    %85 = arith.addf %79, %84 : vector<64x8xf32>
    %86 = vector.extract_strided_slice %0 {offsets = [0, 2], sizes = [64, 1], strides = [1, 1]} : vector<64x4xf32> to vector<64x1xf32>
    %87 = vector.extract_strided_slice %74 {offsets = [2, 0], sizes = [1, 8], strides = [1, 1]} : vector<4x8xf32> to vector<1x8xf32>
    %88 = vector.broadcast %86 : vector<64x1xf32> to vector<64x8xf32>
    %89 = vector.broadcast %87 : vector<1x8xf32> to vector<64x8xf32>
    %90 = arith.mulf %88, %89 : vector<64x8xf32>
    %91 = arith.addf %85, %90 : vector<64x8xf32>
    %92 = vector.extract_strided_slice %0 {offsets = [0, 3], sizes = [64, 1], strides = [1, 1]} : vector<64x4xf32> to vector<64x1xf32>
    %93 = vector.extract_strided_slice %74 {offsets = [3, 0], sizes = [1, 8], strides = [1, 1]} : vector<4x8xf32> to vector<1x8xf32>
    %94 = vector.broadcast %92 : vector<64x1xf32> to vector<64x8xf32>
    %95 = vector.broadcast %93 : vector<1x8xf32> to vector<64x8xf32>
    %96 = arith.mulf %94, %95 : vector<64x8xf32>
    %97 = arith.addf %91, %96 : vector<64x8xf32>
    %c48 = arith.constant 48 : index
    %c0_12 = arith.constant 0 : index
    %98 = vector.load %arg3[%c48, %c0_12] : memref<576x128xf32, #tpu.memory_space<vmem>>, vector<1x8xf32>
    %99 = vector.broadcast %98 : vector<1x8xf32> to vector<64x8xf32>
    %100 = arith.addf %97, %99 : vector<64x8xf32>
    %101 = arith.addf %73, %100 : vector<64x8xf32>
    %cst_13 = arith.constant dense<0.000000e+00> : vector<8xf32>
    %102 = vector.multi_reduction <add>, %101, %cst_13 [0] : vector<64x8xf32> to vector<8xf32>
    %103 = vector.shape_cast %102 : vector<8xf32> to vector<1x8xf32>
    %cst_14 = arith.constant 6.400000e+01 : f32
    %104 = vector.broadcast %cst_14 : f32 to vector<1x8xf32>
    %105 = arith.divf %103, %104 : vector<1x8xf32>
    %106 = vector.broadcast %105 : vector<1x8xf32> to vector<64x8xf32>
    %107 = arith.subf %101, %106 : vector<64x8xf32>
    %108 = arith.mulf %107, %107 : vector<64x8xf32>
    %cst_15 = arith.constant dense<0.000000e+00> : vector<8xf32>
    %109 = vector.multi_reduction <add>, %108, %cst_15 [0] : vector<64x8xf32> to vector<8xf32>
    %110 = vector.shape_cast %109 : vector<8xf32> to vector<1x8xf32>
    %cst_16 = arith.constant 6.400000e+01 : f32
    %111 = vector.broadcast %cst_16 : f32 to vector<1x8xf32>
    %112 = arith.divf %110, %111 : vector<1x8xf32>
    %113 = vector.broadcast %105 : vector<1x8xf32> to vector<64x8xf32>
    %114 = arith.subf %101, %113 : vector<64x8xf32>
    %cst_17 = arith.constant 9.99999974E-6 : f32
    %115 = vector.broadcast %cst_17 : f32 to vector<1x8xf32>
    %116 = arith.addf %112, %115 : vector<1x8xf32>
    %117 = math.rsqrt %116 : vector<1x8xf32>
    %118 = vector.broadcast %117 : vector<1x8xf32> to vector<64x8xf32>
    %119 = arith.mulf %114, %118 : vector<64x8xf32>
    %c56 = arith.constant 56 : index
    %c0_18 = arith.constant 0 : index
    %120 = vector.load %arg3[%c56, %c0_18] : memref<576x128xf32, #tpu.memory_space<vmem>>, vector<1x8xf32>
    %121 = vector.broadcast %120 : vector<1x8xf32> to vector<64x8xf32>
    %122 = arith.mulf %119, %121 : vector<64x8xf32>
    %c64 = arith.constant 64 : index
    %c0_19 = arith.constant 0 : index
    %123 = vector.load %arg3[%c64, %c0_19] : memref<576x128xf32, #tpu.memory_space<vmem>>, vector<1x8xf32>
    %124 = vector.broadcast %123 : vector<1x8xf32> to vector<64x8xf32>
    %125 = arith.addf %122, %124 : vector<64x8xf32>
    %cst_20 = arith.constant 0.000000e+00 : f32
    %126 = vector.broadcast %cst_20 : f32 to vector<64x8xf32>
    %127 = arith.maximumf %125, %126 : vector<64x8xf32>
    %c0_21 = arith.constant 0 : index
    %c0_22 = arith.constant 0 : index
    %128 = vector.load %arg6[%c0_21, %c0_22] : memref<64x8xf32, #tpu.memory_space<vmem>>, vector<64x8xf32>
    tpu.vector_store %arg6[%c0_21, %c0_22], %127 {strides = array<i32>} : memref<64x8xf32, #tpu.memory_space<vmem>>, vector<64x8xf32>,
    %c0_23 = arith.constant 0 : index
    %c0_24 = arith.constant 0 : index
    %129 = tpu.strided_load %arg6[%c0_23, %c0_24] {strides = array<i32: 2, 1>} : memref<64x8xf32, #tpu.memory_space<vmem>>, vector<32x8xf32>
    %c1 = arith.constant 1 : index
    %c0_25 = arith.constant 0 : index
    %130 = tpu.strided_load %arg6[%c1, %c0_25] {strides = array<i32: 2, 1>} : memref<64x8xf32, #tpu.memory_space<vmem>>, vector<32x8xf32>
    %131 = arith.maximumf %129, %130 : vector<32x8xf32>
    %c232 = arith.constant 232 : index
    %c0_26 = arith.constant 0 : index
    %132 = vector.load %arg3[%c232, %c0_26] : memref<576x128xf32, #tpu.memory_space<vmem>>, vector<32x1xf32>
    %c136 = arith.constant 136 : index
    %c0_27 = arith.constant 0 : index
    %133 = vector.load %arg3[%c136, %c0_27] : memref<576x128xf32, #tpu.memory_space<vmem>>, vector<16x16xf32>
    %c152 = arith.constant 152 : index
    %c0_28 = arith.constant 0 : index
    %134 = vector.load %arg3[%c152, %c0_28] : memref<576x128xf32, #tpu.memory_space<vmem>>, vector<1x16xf32>
    %cst_29 = arith.constant 0.000000e+00 : f32
    %135 = vector.broadcast %cst_29 : f32 to vector<2x8xf32>
    %136 = vector.extract_strided_slice %131 {offsets = [0, 0], sizes = [30, 8], strides = [1, 1]} : vector<32x8xf32> to vector<30x8xf32>
    %137 = tpu.concatenate %135, %136 in 0 : vector<2x8xf32>, vector<30x8xf32> -> vector<32x8xf32>
    %138 = vector.broadcast %132 : vector<32x1xf32> to vector<32x8xf32>
    %139 = arith.mulf %137, %138 : vector<32x8xf32>
    %140 = tpu.concatenate %139, %131 in 1 : vector<32x8xf32>, vector<32x8xf32> -> vector<32x16xf32>
    %cst_30 = arith.constant dense<0.000000e+00> : vector<32x16xf32>
    %141 = tpu.matmul %140, %133, %cst_30 {dimension_numbers = #tpu.dot_dimension_numbers<[1], [0], [0], [1], [0, 0, 1, 1], [], []>} : vector<32x16xf32>, vector<16x16xf32>, vector<32x16xf32> -> vector<32x16xf32>
    %142 = vector.broadcast %134 : vector<1x16xf32> to vector<32x16xf32>
    %143 = arith.addf %141, %142 : vector<32x16xf32>
    %cst_31 = arith.constant 0.000000e+00 : f32
    %144 = vector.broadcast %cst_31 : f32 to vector<32x16xf32>
    %145 = arith.maximumf %143, %144 : vector<32x16xf32>
    %c160 = arith.constant 160 : index
    %c0_32 = arith.constant 0 : index
    %146 = vector.load %arg3[%c160, %c0_32] : memref<576x128xf32, #tpu.memory_space<vmem>>, vector<32x16xf32>
    %c192 = arith.constant 192 : index
    %c0_33 = arith.constant 0 : index
    %147 = vector.load %arg3[%c192, %c0_33] : memref<576x128xf32, #tpu.memory_space<vmem>>, vector<1x16xf32>
    %cst_34 = arith.constant 0.000000e+00 : f32
    %148 = vector.broadcast %cst_34 : f32 to vector<2x16xf32>
    %149 = vector.extract_strided_slice %145 {offsets = [0, 0], sizes = [30, 16], strides = [1, 1]} : vector<32x16xf32> to vector<30x16xf32>
    %150 = tpu.concatenate %148, %149 in 0 : vector<2x16xf32>, vector<30x16xf32> -> vector<32x16xf32>
    %151 = vector.broadcast %132 : vector<32x1xf32> to vector<32x16xf32>
    %152 = arith.mulf %150, %151 : vector<32x16xf32>
    %153 = tpu.concatenate %152, %145 in 1 : vector<32x16xf32>, vector<32x16xf32> -> vector<32x32xf32>
    %cst_35 = arith.constant dense<0.000000e+00> : vector<32x16xf32>
    %154 = tpu.matmul %153, %146, %cst_35 {dimension_numbers = #tpu.dot_dimension_numbers<[1], [0], [0], [1], [0, 0, 1, 1], [], []>} : vector<32x32xf32>, vector<32x16xf32>, vector<32x16xf32> -> vector<32x16xf32>
    %155 = vector.broadcast %147 : vector<1x16xf32> to vector<32x16xf32>
    %156 = arith.addf %154, %155 : vector<32x16xf32>
    %cst_36 = arith.constant 0.000000e+00 : f32
    %157 = vector.broadcast %cst_36 : f32 to vector<32x16xf32>
    %158 = arith.maximumf %156, %157 : vector<32x16xf32>
    %c200 = arith.constant 200 : index
    %c0_37 = arith.constant 0 : index
    %159 = vector.load %arg3[%c200, %c0_37] : memref<576x128xf32, #tpu.memory_space<vmem>>, vector<8x16xf32>
    %160 = vector.extract_strided_slice %131 {offsets = [0, 0], sizes = [32, 1], strides = [1, 1]} : vector<32x8xf32> to vector<32x1xf32>
    %161 = vector.extract_strided_slice %159 {offsets = [0, 0], sizes = [1, 16], strides = [1, 1]} : vector<8x16xf32> to vector<1x16xf32>
    %162 = vector.broadcast %160 : vector<32x1xf32> to vector<32x16xf32>
    %163 = vector.broadcast %161 : vector<1x16xf32> to vector<32x16xf32>
    %164 = arith.mulf %162, %163 : vector<32x16xf32>
    %165 = vector.extract_strided_slice %131 {offsets = [0, 1], sizes = [32, 1], strides = [1, 1]} : vector<32x8xf32> to vector<32x1xf32>
    %166 = vector.extract_strided_slice %159 {offsets = [1, 0], sizes = [1, 16], strides = [1, 1]} : vector<8x16xf32> to vector<1x16xf32>
    %167 = vector.broadcast %165 : vector<32x1xf32> to vector<32x16xf32>
    %168 = vector.broadcast %166 : vector<1x16xf32> to vector<32x16xf32>
    %169 = arith.mulf %167, %168 : vector<32x16xf32>
    %170 = arith.addf %164, %169 : vector<32x16xf32>
    %171 = vector.extract_strided_slice %131 {offsets = [0, 2], sizes = [32, 1], strides = [1, 1]} : vector<32x8xf32> to vector<32x1xf32>
    %172 = vector.extract_strided_slice %159 {offsets = [2, 0], sizes = [1, 16], strides = [1, 1]} : vector<8x16xf32> to vector<1x16xf32>
    %173 = vector.broadcast %171 : vector<32x1xf32> to vector<32x16xf32>
    %174 = vector.broadcast %172 : vector<1x16xf32> to vector<32x16xf32>
    %175 = arith.mulf %173, %174 : vector<32x16xf32>
    %176 = arith.addf %170, %175 : vector<32x16xf32>
    %177 = vector.extract_strided_slice %131 {offsets = [0, 3], sizes = [32, 1], strides = [1, 1]} : vector<32x8xf32> to vector<32x1xf32>
    %178 = vector.extract_strided_slice %159 {offsets = [3, 0], sizes = [1, 16], strides = [1, 1]} : vector<8x16xf32> to vector<1x16xf32>
    %179 = vector.broadcast %177 : vector<32x1xf32> to vector<32x16xf32>
    %180 = vector.broadcast %178 : vector<1x16xf32> to vector<32x16xf32>
    %181 = arith.mulf %179, %180 : vector<32x16xf32>
    %182 = arith.addf %176, %181 : vector<32x16xf32>
    %183 = vector.extract_strided_slice %131 {offsets = [0, 4], sizes = [32, 1], strides = [1, 1]} : vector<32x8xf32> to vector<32x1xf32>
    %184 = vector.extract_strided_slice %159 {offsets = [4, 0], sizes = [1, 16], strides = [1, 1]} : vector<8x16xf32> to vector<1x16xf32>
    %185 = vector.broadcast %183 : vector<32x1xf32> to vector<32x16xf32>
    %186 = vector.broadcast %184 : vector<1x16xf32> to vector<32x16xf32>
    %187 = arith.mulf %185, %186 : vector<32x16xf32>
    %188 = arith.addf %182, %187 : vector<32x16xf32>
    %189 = vector.extract_strided_slice %131 {offsets = [0, 5], sizes = [32, 1], strides = [1, 1]} : vector<32x8xf32> to vector<32x1xf32>
    %190 = vector.extract_strided_slice %159 {offsets = [5, 0], sizes = [1, 16], strides = [1, 1]} : vector<8x16xf32> to vector<1x16xf32>
    %191 = vector.broadcast %189 : vector<32x1xf32> to vector<32x16xf32>
    %192 = vector.broadcast %190 : vector<1x16xf32> to vector<32x16xf32>
    %193 = arith.mulf %191, %192 : vector<32x16xf32>
    %194 = arith.addf %188, %193 : vector<32x16xf32>
    %195 = vector.extract_strided_slice %131 {offsets = [0, 6], sizes = [32, 1], strides = [1, 1]} : vector<32x8xf32> to vector<32x1xf32>
    %196 = vector.extract_strided_slice %159 {offsets = [6, 0], sizes = [1, 16], strides = [1, 1]} : vector<8x16xf32> to vector<1x16xf32>
    %197 = vector.broadcast %195 : vector<32x1xf32> to vector<32x16xf32>
    %198 = vector.broadcast %196 : vector<1x16xf32> to vector<32x16xf32>
    %199 = arith.mulf %197, %198 : vector<32x16xf32>
    %200 = arith.addf %194, %199 : vector<32x16xf32>
    %201 = vector.extract_strided_slice %131 {offsets = [0, 7], sizes = [32, 1], strides = [1, 1]} : vector<32x8xf32> to vector<32x1xf32>
    %202 = vector.extract_strided_slice %159 {offsets = [7, 0], sizes = [1, 16], strides = [1, 1]} : vector<8x16xf32> to vector<1x16xf32>
    %203 = vector.broadcast %201 : vector<32x1xf32> to vector<32x16xf32>
    %204 = vector.broadcast %202 : vector<1x16xf32> to vector<32x16xf32>
    %205 = arith.mulf %203, %204 : vector<32x16xf32>
    %206 = arith.addf %200, %205 : vector<32x16xf32>
    %c208 = arith.constant 208 : index
    %c0_38 = arith.constant 0 : index
    %207 = vector.load %arg3[%c208, %c0_38] : memref<576x128xf32, #tpu.memory_space<vmem>>, vector<1x16xf32>
    %208 = vector.broadcast %207 : vector<1x16xf32> to vector<32x16xf32>
    %209 = arith.addf %206, %208 : vector<32x16xf32>
    %210 = arith.addf %158, %209 : vector<32x16xf32>
    %cst_39 = arith.constant dense<0.000000e+00> : vector<16xf32>
    %211 = vector.multi_reduction <add>, %210, %cst_39 [0] : vector<32x16xf32> to vector<16xf32>
    %212 = vector.shape_cast %211 : vector<16xf32> to vector<1x16xf32>
    %cst_40 = arith.constant 3.200000e+01 : f32
    %213 = vector.broadcast %cst_40 : f32 to vector<1x16xf32>
    %214 = arith.divf %212, %213 : vector<1x16xf32>
    %215 = vector.broadcast %214 : vector<1x16xf32> to vector<32x16xf32>
    %216 = arith.subf %210, %215 : vector<32x16xf32>
    %217 = arith.mulf %216, %216 : vector<32x16xf32>
    %cst_41 = arith.constant dense<0.000000e+00> : vector<16xf32>
    %218 = vector.multi_reduction <add>, %217, %cst_41 [0] : vector<32x16xf32> to vector<16xf32>
    %219 = vector.shape_cast %218 : vector<16xf32> to vector<1x16xf32>
    %cst_42 = arith.constant 3.200000e+01 : f32
    %220 = vector.broadcast %cst_42 : f32 to vector<1x16xf32>
    %221 = arith.divf %219, %220 : vector<1x16xf32>
    %222 = vector.broadcast %214 : vector<1x16xf32> to vector<32x16xf32>
    %223 = arith.subf %210, %222 : vector<32x16xf32>
    %cst_43 = arith.constant 9.99999974E-6 : f32
    %224 = vector.broadcast %cst_43 : f32 to vector<1x16xf32>
    %225 = arith.addf %221, %224 : vector<1x16xf32>
    %226 = math.rsqrt %225 : vector<1x16xf32>
    %227 = vector.broadcast %226 : vector<1x16xf32> to vector<32x16xf32>
    %228 = arith.mulf %223, %227 : vector<32x16xf32>
    %c216 = arith.constant 216 : index
    %c0_44 = arith.constant 0 : index
    %229 = vector.load %arg3[%c216, %c0_44] : memref<576x128xf32, #tpu.memory_space<vmem>>, vector<1x16xf32>
    %230 = vector.broadcast %229 : vector<1x16xf32> to vector<32x16xf32>
    %231 = arith.mulf %228, %230 : vector<32x16xf32>
    %c224 = arith.constant 224 : index
    %c0_45 = arith.constant 0 : index
    %232 = vector.load %arg3[%c224, %c0_45] : memref<576x128xf32, #tpu.memory_space<vmem>>, vector<1x16xf32>
    %233 = vector.broadcast %232 : vector<1x16xf32> to vector<32x16xf32>
    %234 = arith.addf %231, %233 : vector<32x16xf32>
    %cst_46 = arith.constant 0.000000e+00 : f32
    %235 = vector.broadcast %cst_46 : f32 to vector<32x16xf32>
    %236 = arith.maximumf %234, %235 : vector<32x16xf32>
    %c0_47 = arith.constant 0 : index
    %c0_48 = arith.constant 0 : index
    %237 = vector.load %arg7[%c0_47, %c0_48] : memref<32x16xf32, #tpu.memory_space<vmem>>, vector<32x16xf32>
    tpu.vector_store %arg7[%c0_47, %c0_48], %236 {strides = array<i32>} : memref<32x16xf32, #tpu.memory_space<vmem>>, vector<32x16xf32>,
    %c0_49 = arith.constant 0 : index
    %c0_50 = arith.constant 0 : index
    %238 = tpu.strided_load %arg7[%c0_49, %c0_50] {strides = array<i32: 2, 1>} : memref<32x16xf32, #tpu.memory_space<vmem>>, vector<16x16xf32>
    %c1_51 = arith.constant 1 : index
    %c0_52 = arith.constant 0 : index
    %239 = tpu.strided_load %arg7[%c1_51, %c0_52] {strides = array<i32: 2, 1>} : memref<32x16xf32, #tpu.memory_space<vmem>>, vector<16x16xf32>
    %240 = arith.maximumf %238, %239 : vector<16x16xf32>
    %c360 = arith.constant 360 : index
    %c0_53 = arith.constant 0 : index
    %241 = vector.load %arg3[%c360, %c0_53] : memref<576x128xf32, #tpu.memory_space<vmem>>, vector<16x1xf32>
    %c264 = arith.constant 264 : index
    %c0_54 = arith.constant 0 : index
    %242 = vector.load %arg3[%c264, %c0_54] : memref<576x128xf32, #tpu.memory_space<vmem>>, vector<32x16xf32>
    %c296 = arith.constant 296 : index
    %c0_55 = arith.constant 0 : index
    %243 = vector.load %arg3[%c296, %c0_55] : memref<576x128xf32, #tpu.memory_space<vmem>>, vector<1x16xf32>
    %cst_56 = arith.constant 0.000000e+00 : f32
    %244 = vector.broadcast %cst_56 : f32 to vector<4x16xf32>
    %245 = vector.extract_strided_slice %240 {offsets = [0, 0], sizes = [12, 16], strides = [1, 1]} : vector<16x16xf32> to vector<12x16xf32>
    %246 = tpu.concatenate %244, %245 in 0 : vector<4x16xf32>, vector<12x16xf32> -> vector<16x16xf32>
    %247 = vector.broadcast %241 : vector<16x1xf32> to vector<16x16xf32>
    %248 = arith.mulf %246, %247 : vector<16x16xf32>
    %249 = tpu.concatenate %248, %240 in 1 : vector<16x16xf32>, vector<16x16xf32> -> vector<16x32xf32>
    %cst_57 = arith.constant dense<0.000000e+00> : vector<16x16xf32>
    %250 = tpu.matmul %249, %242, %cst_57 {dimension_numbers = #tpu.dot_dimension_numbers<[1], [0], [0], [1], [0, 0, 1, 1], [], []>} : vector<16x32xf32>, vector<32x16xf32>, vector<16x16xf32> -> vector<16x16xf32>
    %251 = vector.broadcast %243 : vector<1x16xf32> to vector<16x16xf32>
    %252 = arith.addf %250, %251 : vector<16x16xf32>
    %cst_58 = arith.constant 0.000000e+00 : f32
    %253 = vector.broadcast %cst_58 : f32 to vector<16x16xf32>
    %254 = arith.maximumf %252, %253 : vector<16x16xf32>
    %c304 = arith.constant 304 : index
    %c0_59 = arith.constant 0 : index
    %255 = vector.load %arg3[%c304, %c0_59] : memref<576x128xf32, #tpu.memory_space<vmem>>, vector<32x16xf32>
    %c336 = arith.constant 336 : index
    %c0_60 = arith.constant 0 : index
    %256 = vector.load %arg3[%c336, %c0_60] : memref<576x128xf32, #tpu.memory_space<vmem>>, vector<1x16xf32>
    %cst_61 = arith.constant 0.000000e+00 : f32
    %257 = vector.broadcast %cst_61 : f32 to vector<4x16xf32>
    %258 = vector.extract_strided_slice %254 {offsets = [0, 0], sizes = [12, 16], strides = [1, 1]} : vector<16x16xf32> to vector<12x16xf32>
    %259 = tpu.concatenate %257, %258 in 0 : vector<4x16xf32>, vector<12x16xf32> -> vector<16x16xf32>
    %260 = vector.broadcast %241 : vector<16x1xf32> to vector<16x16xf32>
    %261 = arith.mulf %259, %260 : vector<16x16xf32>
    %262 = tpu.concatenate %261, %254 in 1 : vector<16x16xf32>, vector<16x16xf32> -> vector<16x32xf32>
    %cst_62 = arith.constant dense<0.000000e+00> : vector<16x16xf32>
    %263 = tpu.matmul %262, %255, %cst_62 {dimension_numbers = #tpu.dot_dimension_numbers<[1], [0], [0], [1], [0, 0, 1, 1], [], []>} : vector<16x32xf32>, vector<32x16xf32>, vector<16x16xf32> -> vector<16x16xf32>
    %264 = vector.broadcast %256 : vector<1x16xf32> to vector<16x16xf32>
    %265 = arith.addf %263, %264 : vector<16x16xf32>
    %cst_63 = arith.constant 0.000000e+00 : f32
    %266 = vector.broadcast %cst_63 : f32 to vector<16x16xf32>
    %267 = arith.maximumf %265, %266 : vector<16x16xf32>
    %268 = arith.addf %267, %240 : vector<16x16xf32>
    %cst_64 = arith.constant dense<0.000000e+00> : vector<16xf32>
    %269 = vector.multi_reduction <add>, %268, %cst_64 [0] : vector<16x16xf32> to vector<16xf32>
    %270 = vector.shape_cast %269 : vector<16xf32> to vector<1x16xf32>
    %cst_65 = arith.constant 1.600000e+01 : f32
    %271 = vector.broadcast %cst_65 : f32 to vector<1x16xf32>
    %272 = arith.divf %270, %271 : vector<1x16xf32>
    %273 = vector.broadcast %272 : vector<1x16xf32> to vector<16x16xf32>
    %274 = arith.subf %268, %273 : vector<16x16xf32>
    %275 = arith.mulf %274, %274 : vector<16x16xf32>
    %cst_66 = arith.constant dense<0.000000e+00> : vector<16xf32>
    %276 = vector.multi_reduction <add>, %275, %cst_66 [0] : vector<16x16xf32> to vector<16xf32>
    %277 = vector.shape_cast %276 : vector<16xf32> to vector<1x16xf32>
    %cst_67 = arith.constant 1.600000e+01 : f32
    %278 = vector.broadcast %cst_67 : f32 to vector<1x16xf32>
    %279 = arith.divf %277, %278 : vector<1x16xf32>
    %280 = vector.broadcast %272 : vector<1x16xf32> to vector<16x16xf32>
    %281 = arith.subf %268, %280 : vector<16x16xf32>
    %cst_68 = arith.constant 9.99999974E-6 : f32
    %282 = vector.broadcast %cst_68 : f32 to vector<1x16xf32>
    %283 = arith.addf %279, %282 : vector<1x16xf32>
    %284 = math.rsqrt %283 : vector<1x16xf32>
    %285 = vector.broadcast %284 : vector<1x16xf32> to vector<16x16xf32>
    %286 = arith.mulf %281, %285 : vector<16x16xf32>
    %c344 = arith.constant 344 : index
    %c0_69 = arith.constant 0 : index
    %287 = vector.load %arg3[%c344, %c0_69] : memref<576x128xf32, #tpu.memory_space<vmem>>, vector<1x16xf32>
    %288 = vector.broadcast %287 : vector<1x16xf32> to vector<16x16xf32>
    %289 = arith.mulf %286, %288 : vector<16x16xf32>
    %c352 = arith.constant 352 : index
    %c0_70 = arith.constant 0 : index
    %290 = vector.load %arg3[%c352, %c0_70] : memref<576x128xf32, #tpu.memory_space<vmem>>, vector<1x16xf32>
    %291 = vector.broadcast %290 : vector<1x16xf32> to vector<16x16xf32>
    %292 = arith.addf %289, %291 : vector<16x16xf32>
    %cst_71 = arith.constant 0.000000e+00 : f32
    %293 = vector.broadcast %cst_71 : f32 to vector<16x16xf32>
    %294 = arith.maximumf %292, %293 : vector<16x16xf32>
    %c0_72 = arith.constant 0 : index
    %c0_73 = arith.constant 0 : index
    %295 = vector.load %arg8[%c0_72, %c0_73] : memref<16x16xf32, #tpu.memory_space<vmem>>, vector<16x16xf32>
    tpu.vector_store %arg8[%c0_72, %c0_73], %294 {strides = array<i32>} : memref<16x16xf32, #tpu.memory_space<vmem>>, vector<16x16xf32>,
    %c0_74 = arith.constant 0 : index
    %c0_75 = arith.constant 0 : index
    %296 = tpu.strided_load %arg8[%c0_74, %c0_75] {strides = array<i32: 2, 1>} : memref<16x16xf32, #tpu.memory_space<vmem>>, vector<8x16xf32>
    %c1_76 = arith.constant 1 : index
    %c0_77 = arith.constant 0 : index
    %297 = tpu.strided_load %arg8[%c1_76, %c0_77] {strides = array<i32: 2, 1>} : memref<16x16xf32, #tpu.memory_space<vmem>>, vector<8x16xf32>
    %298 = arith.maximumf %296, %297 : vector<8x16xf32>
    %c376 = arith.constant 376 : index
    %c0_78 = arith.constant 0 : index
    %299 = vector.load %arg3[%c376, %c0_78] : memref<576x128xf32, #tpu.memory_space<vmem>>, vector<48x128xf32>
    %c424 = arith.constant 424 : index
    %c0_79 = arith.constant 0 : index
    %300 = vector.load %arg3[%c424, %c0_79] : memref<576x128xf32, #tpu.memory_space<vmem>>, vector<1x128xf32>
    %c432 = arith.constant 432 : index
    %c0_80 = arith.constant 0 : index
    %301 = vector.load %arg3[%c432, %c0_80] : memref<576x128xf32, #tpu.memory_space<vmem>>, vector<64x128xf32>
    %c496 = arith.constant 496 : index
    %c0_81 = arith.constant 0 : index
    %302 = vector.load %arg3[%c496, %c0_81] : memref<576x128xf32, #tpu.memory_space<vmem>>, vector<1x128xf32>
    %c0_82 = arith.constant 0 : index
    %c0_83 = arith.constant 0 : index
    %c0_84 = arith.constant 0 : index
    %303 = vector.load %arg1[%c0_82, %c0_83, %c0_84] : memref<2x2x32xf32, #tpu.memory_space<vmem>>, vector<1x2x32xf32>
    %304 = vector.shape_cast %303 : vector<1x2x32xf32> to vector<2x32xf32>
    %c0_85 = arith.constant 0 : index
    %c0_86 = arith.constant 0 : index
    %c0_87 = arith.constant 0 : index
    %305 = vector.load %arg2[%c0_85, %c0_86, %c0_87] : memref<2x2x32xf32, #tpu.memory_space<vmem>>, vector<1x2x32xf32>
    %306 = vector.shape_cast %305 : vector<1x2x32xf32> to vector<2x32xf32>
    %c1_88 = arith.constant 1 : index
    %c0_89 = arith.constant 0 : index
    %c0_90 = arith.constant 0 : index
    %307 = vector.load %arg1[%c1_88, %c0_89, %c0_90] : memref<2x2x32xf32, #tpu.memory_space<vmem>>, vector<1x2x32xf32>
    %308 = vector.shape_cast %307 : vector<1x2x32xf32> to vector<2x32xf32>
    %c1_91 = arith.constant 1 : index
    %c0_92 = arith.constant 0 : index
    %c0_93 = arith.constant 0 : index
    %309 = vector.load %arg2[%c1_91, %c0_92, %c0_93] : memref<2x2x32xf32, #tpu.memory_space<vmem>>, vector<1x2x32xf32>
    %310 = vector.shape_cast %309 : vector<1x2x32xf32> to vector<2x32xf32>
    %311 = vector.extract_strided_slice %298 {offsets = [0, 0], sizes = [1, 16], strides = [1, 1]} : vector<8x16xf32> to vector<1x16xf32>
    %312 = vector.extract_strided_slice %298 {offsets = [4, 0], sizes = [1, 16], strides = [1, 1]} : vector<8x16xf32> to vector<1x16xf32>
    %313 = tpu.concatenate %311, %312 in 0 : vector<1x16xf32>, vector<1x16xf32> -> vector<2x16xf32>
    %314 = tpu.concatenate %313, %304 in 1 : vector<2x16xf32>, vector<2x32xf32> -> vector<2x48xf32>
    %cst_94 = arith.constant dense<0.000000e+00> : vector<2x128xf32>
    %315 = tpu.matmul %314, %299, %cst_94 {dimension_numbers = #tpu.dot_dimension_numbers<[1], [0], [0], [1], [0, 0, 1, 1], [], []>} : vector<2x48xf32>, vector<48x128xf32>, vector<2x128xf32> -> vector<2x128xf32>
    %316 = vector.broadcast %300 : vector<1x128xf32> to vector<2x128xf32>
    %317 = arith.addf %315, %316 : vector<2x128xf32>
    %318 = vector.extract_strided_slice %317 {offsets = [0, 0], sizes = [2, 32], strides = [1, 1]} : vector<2x128xf32> to vector<2x32xf32>
    %319 = arith.negf %318 : vector<2x32xf32>
    %320 = math.exp %319 : vector<2x32xf32>
    %cst_95 = arith.constant 1.000000e+00 : f32
    %321 = vector.broadcast %cst_95 : f32 to vector<2x32xf32>
    %322 = arith.addf %321, %320 : vector<2x32xf32>
    %323 = arith.divf %321, %322 : vector<2x32xf32>
    %324 = vector.extract_strided_slice %317 {offsets = [0, 32], sizes = [2, 32], strides = [1, 1]} : vector<2x128xf32> to vector<2x32xf32>
    %325 = arith.negf %324 : vector<2x32xf32>
    %326 = math.exp %325 : vector<2x32xf32>
    %cst_96 = arith.constant 1.000000e+00 : f32
    %327 = vector.broadcast %cst_96 : f32 to vector<2x32xf32>
    %328 = arith.addf %327, %326 : vector<2x32xf32>
    %329 = arith.divf %327, %328 : vector<2x32xf32>
    %330 = vector.extract_strided_slice %317 {offsets = [0, 64], sizes = [2, 32], strides = [1, 1]} : vector<2x128xf32> to vector<2x32xf32>
    %331 = math.tanh %330 : vector<2x32xf32>
    %332 = vector.extract_strided_slice %317 {offsets = [0, 96], sizes = [2, 32], strides = [1, 1]} : vector<2x128xf32> to vector<2x32xf32>
    %333 = arith.negf %332 : vector<2x32xf32>
    %334 = math.exp %333 : vector<2x32xf32>
    %cst_97 = arith.constant 1.000000e+00 : f32
    %335 = vector.broadcast %cst_97 : f32 to vector<2x32xf32>
    %336 = arith.addf %335, %334 : vector<2x32xf32>
    %337 = arith.divf %335, %336 : vector<2x32xf32>
    %338 = arith.mulf %329, %306 : vector<2x32xf32>
    %339 = arith.mulf %323, %331 : vector<2x32xf32>
    %340 = arith.addf %338, %339 : vector<2x32xf32>
    %341 = math.tanh %340 : vector<2x32xf32>
    %342 = arith.mulf %337, %341 : vector<2x32xf32>
    %343 = tpu.concatenate %342, %308 in 1 : vector<2x32xf32>, vector<2x32xf32> -> vector<2x64xf32>
    %cst_98 = arith.constant dense<0.000000e+00> : vector<2x128xf32>
    %344 = tpu.matmul %343, %301, %cst_98 {dimension_numbers = #tpu.dot_dimension_numbers<[1], [0], [0], [1], [0, 0, 1, 1], [], []>} : vector<2x64xf32>, vector<64x128xf32>, vector<2x128xf32> -> vector<2x128xf32>
    %345 = vector.broadcast %302 : vector<1x128xf32> to vector<2x128xf32>
    %346 = arith.addf %344, %345 : vector<2x128xf32>
    %347 = vector.extract_strided_slice %346 {offsets = [0, 0], sizes = [2, 32], strides = [1, 1]} : vector<2x128xf32> to vector<2x32xf32>
    %348 = arith.negf %347 : vector<2x32xf32>
    %349 = math.exp %348 : vector<2x32xf32>
    %cst_99 = arith.constant 1.000000e+00 : f32
    %350 = vector.broadcast %cst_99 : f32 to vector<2x32xf32>
    %351 = arith.addf %350, %349 : vector<2x32xf32>
    %352 = arith.divf %350, %351 : vector<2x32xf32>
    %353 = vector.extract_strided_slice %346 {offsets = [0, 32], sizes = [2, 32], strides = [1, 1]} : vector<2x128xf32> to vector<2x32xf32>
    %354 = arith.negf %353 : vector<2x32xf32>
    %355 = math.exp %354 : vector<2x32xf32>
    %cst_100 = arith.constant 1.000000e+00 : f32
    %356 = vector.broadcast %cst_100 : f32 to vector<2x32xf32>
    %357 = arith.addf %356, %355 : vector<2x32xf32>
    %358 = arith.divf %356, %357 : vector<2x32xf32>
    %359 = vector.extract_strided_slice %346 {offsets = [0, 64], sizes = [2, 32], strides = [1, 1]} : vector<2x128xf32> to vector<2x32xf32>
    %360 = math.tanh %359 : vector<2x32xf32>
    %361 = vector.extract_strided_slice %346 {offsets = [0, 96], sizes = [2, 32], strides = [1, 1]} : vector<2x128xf32> to vector<2x32xf32>
    %362 = arith.negf %361 : vector<2x32xf32>
    %363 = math.exp %362 : vector<2x32xf32>
    %cst_101 = arith.constant 1.000000e+00 : f32
    %364 = vector.broadcast %cst_101 : f32 to vector<2x32xf32>
    %365 = arith.addf %364, %363 : vector<2x32xf32>
    %366 = arith.divf %364, %365 : vector<2x32xf32>
    %367 = arith.mulf %358, %310 : vector<2x32xf32>
    %368 = arith.mulf %352, %360 : vector<2x32xf32>
    %369 = arith.addf %367, %368 : vector<2x32xf32>
    %370 = math.tanh %369 : vector<2x32xf32>
    %371 = arith.mulf %366, %370 : vector<2x32xf32>
    %372 = vector.extract_strided_slice %298 {offsets = [1, 0], sizes = [1, 16], strides = [1, 1]} : vector<8x16xf32> to vector<1x16xf32>
    %373 = vector.extract_strided_slice %298 {offsets = [5, 0], sizes = [1, 16], strides = [1, 1]} : vector<8x16xf32> to vector<1x16xf32>
    %374 = tpu.concatenate %372, %373 in 0 : vector<1x16xf32>, vector<1x16xf32> -> vector<2x16xf32>
    %375 = tpu.concatenate %374, %342 in 1 : vector<2x16xf32>, vector<2x32xf32> -> vector<2x48xf32>
    %cst_102 = arith.constant dense<0.000000e+00> : vector<2x128xf32>
    %376 = tpu.matmul %375, %299, %cst_102 {dimension_numbers = #tpu.dot_dimension_numbers<[1], [0], [0], [1], [0, 0, 1, 1], [], []>} : vector<2x48xf32>, vector<48x128xf32>, vector<2x128xf32> -> vector<2x128xf32>
    %377 = vector.broadcast %300 : vector<1x128xf32> to vector<2x128xf32>
    %378 = arith.addf %376, %377 : vector<2x128xf32>
    %379 = vector.extract_strided_slice %378 {offsets = [0, 0], sizes = [2, 32], strides = [1, 1]} : vector<2x128xf32> to vector<2x32xf32>
    %380 = arith.negf %379 : vector<2x32xf32>
    %381 = math.exp %380 : vector<2x32xf32>
    %cst_103 = arith.constant 1.000000e+00 : f32
    %382 = vector.broadcast %cst_103 : f32 to vector<2x32xf32>
    %383 = arith.addf %382, %381 : vector<2x32xf32>
    %384 = arith.divf %382, %383 : vector<2x32xf32>
    %385 = vector.extract_strided_slice %378 {offsets = [0, 32], sizes = [2, 32], strides = [1, 1]} : vector<2x128xf32> to vector<2x32xf32>
    %386 = arith.negf %385 : vector<2x32xf32>
    %387 = math.exp %386 : vector<2x32xf32>
    %cst_104 = arith.constant 1.000000e+00 : f32
    %388 = vector.broadcast %cst_104 : f32 to vector<2x32xf32>
    %389 = arith.addf %388, %387 : vector<2x32xf32>
    %390 = arith.divf %388, %389 : vector<2x32xf32>
    %391 = vector.extract_strided_slice %378 {offsets = [0, 64], sizes = [2, 32], strides = [1, 1]} : vector<2x128xf32> to vector<2x32xf32>
    %392 = math.tanh %391 : vector<2x32xf32>
    %393 = vector.extract_strided_slice %378 {offsets = [0, 96], sizes = [2, 32], strides = [1, 1]} : vector<2x128xf32> to vector<2x32xf32>
    %394 = arith.negf %393 : vector<2x32xf32>
    %395 = math.exp %394 : vector<2x32xf32>
    %cst_105 = arith.constant 1.000000e+00 : f32
    %396 = vector.broadcast %cst_105 : f32 to vector<2x32xf32>
    %397 = arith.addf %396, %395 : vector<2x32xf32>
    %398 = arith.divf %396, %397 : vector<2x32xf32>
    %399 = arith.mulf %390, %340 : vector<2x32xf32>
    %400 = arith.mulf %384, %392 : vector<2x32xf32>
    %401 = arith.addf %399, %400 : vector<2x32xf32>
    %402 = math.tanh %401 : vector<2x32xf32>
    %403 = arith.mulf %398, %402 : vector<2x32xf32>
    %404 = tpu.concatenate %403, %371 in 1 : vector<2x32xf32>, vector<2x32xf32> -> vector<2x64xf32>
    %cst_106 = arith.constant dense<0.000000e+00> : vector<2x128xf32>
    %405 = tpu.matmul %404, %301, %cst_106 {dimension_numbers = #tpu.dot_dimension_numbers<[1], [0], [0], [1], [0, 0, 1, 1], [], []>} : vector<2x64xf32>, vector<64x128xf32>, vector<2x128xf32> -> vector<2x128xf32>
    %406 = vector.broadcast %302 : vector<1x128xf32> to vector<2x128xf32>
    %407 = arith.addf %405, %406 : vector<2x128xf32>
    %408 = vector.extract_strided_slice %407 {offsets = [0, 0], sizes = [2, 32], strides = [1, 1]} : vector<2x128xf32> to vector<2x32xf32>
    %409 = arith.negf %408 : vector<2x32xf32>
    %410 = math.exp %409 : vector<2x32xf32>
    %cst_107 = arith.constant 1.000000e+00 : f32
    %411 = vector.broadcast %cst_107 : f32 to vector<2x32xf32>
    %412 = arith.addf %411, %410 : vector<2x32xf32>
    %413 = arith.divf %411, %412 : vector<2x32xf32>
    %414 = vector.extract_strided_slice %407 {offsets = [0, 32], sizes = [2, 32], strides = [1, 1]} : vector<2x128xf32> to vector<2x32xf32>
    %415 = arith.negf %414 : vector<2x32xf32>
    %416 = math.exp %415 : vector<2x32xf32>
    %cst_108 = arith.constant 1.000000e+00 : f32
    %417 = vector.broadcast %cst_108 : f32 to vector<2x32xf32>
    %418 = arith.addf %417, %416 : vector<2x32xf32>
    %419 = arith.divf %417, %418 : vector<2x32xf32>
    %420 = vector.extract_strided_slice %407 {offsets = [0, 64], sizes = [2, 32], strides = [1, 1]} : vector<2x128xf32> to vector<2x32xf32>
    %421 = math.tanh %420 : vector<2x32xf32>
    %422 = vector.extract_strided_slice %407 {offsets = [0, 96], sizes = [2, 32], strides = [1, 1]} : vector<2x128xf32> to vector<2x32xf32>
    %423 = arith.negf %422 : vector<2x32xf32>
    %424 = math.exp %423 : vector<2x32xf32>
    %cst_109 = arith.constant 1.000000e+00 : f32
    %425 = vector.broadcast %cst_109 : f32 to vector<2x32xf32>
    %426 = arith.addf %425, %424 : vector<2x32xf32>
    %427 = arith.divf %425, %426 : vector<2x32xf32>
    %428 = arith.mulf %419, %369 : vector<2x32xf32>
    %429 = arith.mulf %413, %421 : vector<2x32xf32>
    %430 = arith.addf %428, %429 : vector<2x32xf32>
    %431 = math.tanh %430 : vector<2x32xf32>
    %432 = arith.mulf %427, %431 : vector<2x32xf32>
    %433 = vector.extract_strided_slice %298 {offsets = [2, 0], sizes = [1, 16], strides = [1, 1]} : vector<8x16xf32> to vector<1x16xf32>
    %434 = vector.extract_strided_slice %298 {offsets = [6, 0], sizes = [1, 16], strides = [1, 1]} : vector<8x16xf32> to vector<1x16xf32>
    %435 = tpu.concatenate %433, %434 in 0 : vector<1x16xf32>, vector<1x16xf32> -> vector<2x16xf32>
    %436 = tpu.concatenate %435, %403 in 1 : vector<2x16xf32>, vector<2x32xf32> -> vector<2x48xf32>
    %cst_110 = arith.constant dense<0.000000e+00> : vector<2x128xf32>
    %437 = tpu.matmul %436, %299, %cst_110 {dimension_numbers = #tpu.dot_dimension_numbers<[1], [0], [0], [1], [0, 0, 1, 1], [], []>} : vector<2x48xf32>, vector<48x128xf32>, vector<2x128xf32> -> vector<2x128xf32>
    %438 = vector.broadcast %300 : vector<1x128xf32> to vector<2x128xf32>
    %439 = arith.addf %437, %438 : vector<2x128xf32>
    %440 = vector.extract_strided_slice %439 {offsets = [0, 0], sizes = [2, 32], strides = [1, 1]} : vector<2x128xf32> to vector<2x32xf32>
    %441 = arith.negf %440 : vector<2x32xf32>
    %442 = math.exp %441 : vector<2x32xf32>
    %cst_111 = arith.constant 1.000000e+00 : f32
    %443 = vector.broadcast %cst_111 : f32 to vector<2x32xf32>
    %444 = arith.addf %443, %442 : vector<2x32xf32>
    %445 = arith.divf %443, %444 : vector<2x32xf32>
    %446 = vector.extract_strided_slice %439 {offsets = [0, 32], sizes = [2, 32], strides = [1, 1]} : vector<2x128xf32> to vector<2x32xf32>
    %447 = arith.negf %446 : vector<2x32xf32>
    %448 = math.exp %447 : vector<2x32xf32>
    %cst_112 = arith.constant 1.000000e+00 : f32
    %449 = vector.broadcast %cst_112 : f32 to vector<2x32xf32>
    %450 = arith.addf %449, %448 : vector<2x32xf32>
    %451 = arith.divf %449, %450 : vector<2x32xf32>
    %452 = vector.extract_strided_slice %439 {offsets = [0, 64], sizes = [2, 32], strides = [1, 1]} : vector<2x128xf32> to vector<2x32xf32>
    %453 = math.tanh %452 : vector<2x32xf32>
    %454 = vector.extract_strided_slice %439 {offsets = [0, 96], sizes = [2, 32], strides = [1, 1]} : vector<2x128xf32> to vector<2x32xf32>
    %455 = arith.negf %454 : vector<2x32xf32>
    %456 = math.exp %455 : vector<2x32xf32>
    %cst_113 = arith.constant 1.000000e+00 : f32
    %457 = vector.broadcast %cst_113 : f32 to vector<2x32xf32>
    %458 = arith.addf %457, %456 : vector<2x32xf32>
    %459 = arith.divf %457, %458 : vector<2x32xf32>
    %460 = arith.mulf %451, %401 : vector<2x32xf32>
    %461 = arith.mulf %445, %453 : vector<2x32xf32>
    %462 = arith.addf %460, %461 : vector<2x32xf32>
    %463 = math.tanh %462 : vector<2x32xf32>
    %464 = arith.mulf %459, %463 : vector<2x32xf32>
    %465 = tpu.concatenate %464, %432 in 1 : vector<2x32xf32>, vector<2x32xf32> -> vector<2x64xf32>
    %cst_114 = arith.constant dense<0.000000e+00> : vector<2x128xf32>
    %466 = tpu.matmul %465, %301, %cst_114 {dimension_numbers = #tpu.dot_dimension_numbers<[1], [0], [0], [1], [0, 0, 1, 1], [], []>} : vector<2x64xf32>, vector<64x128xf32>, vector<2x128xf32> -> vector<2x128xf32>
    %467 = vector.broadcast %302 : vector<1x128xf32> to vector<2x128xf32>
    %468 = arith.addf %466, %467 : vector<2x128xf32>
    %469 = vector.extract_strided_slice %468 {offsets = [0, 0], sizes = [2, 32], strides = [1, 1]} : vector<2x128xf32> to vector<2x32xf32>
    %470 = arith.negf %469 : vector<2x32xf32>
    %471 = math.exp %470 : vector<2x32xf32>
    %cst_115 = arith.constant 1.000000e+00 : f32
    %472 = vector.broadcast %cst_115 : f32 to vector<2x32xf32>
    %473 = arith.addf %472, %471 : vector<2x32xf32>
    %474 = arith.divf %472, %473 : vector<2x32xf32>
    %475 = vector.extract_strided_slice %468 {offsets = [0, 32], sizes = [2, 32], strides = [1, 1]} : vector<2x128xf32> to vector<2x32xf32>
    %476 = arith.negf %475 : vector<2x32xf32>
    %477 = math.exp %476 : vector<2x32xf32>
    %cst_116 = arith.constant 1.000000e+00 : f32
    %478 = vector.broadcast %cst_116 : f32 to vector<2x32xf32>
    %479 = arith.addf %478, %477 : vector<2x32xf32>
    %480 = arith.divf %478, %479 : vector<2x32xf32>
    %481 = vector.extract_strided_slice %468 {offsets = [0, 64], sizes = [2, 32], strides = [1, 1]} : vector<2x128xf32> to vector<2x32xf32>
    %482 = math.tanh %481 : vector<2x32xf32>
    %483 = vector.extract_strided_slice %468 {offsets = [0, 96], sizes = [2, 32], strides = [1, 1]} : vector<2x128xf32> to vector<2x32xf32>
    %484 = arith.negf %483 : vector<2x32xf32>
    %485 = math.exp %484 : vector<2x32xf32>
    %cst_117 = arith.constant 1.000000e+00 : f32
    %486 = vector.broadcast %cst_117 : f32 to vector<2x32xf32>
    %487 = arith.addf %486, %485 : vector<2x32xf32>
    %488 = arith.divf %486, %487 : vector<2x32xf32>
    %489 = arith.mulf %480, %430 : vector<2x32xf32>
    %490 = arith.mulf %474, %482 : vector<2x32xf32>
    %491 = arith.addf %489, %490 : vector<2x32xf32>
    %492 = math.tanh %491 : vector<2x32xf32>
    %493 = arith.mulf %488, %492 : vector<2x32xf32>
    %494 = vector.extract_strided_slice %298 {offsets = [3, 0], sizes = [1, 16], strides = [1, 1]} : vector<8x16xf32> to vector<1x16xf32>
    %495 = vector.extract_strided_slice %298 {offsets = [7, 0], sizes = [1, 16], strides = [1, 1]} : vector<8x16xf32> to vector<1x16xf32>
    %496 = tpu.concatenate %494, %495 in 0 : vector<1x16xf32>, vector<1x16xf32> -> vector<2x16xf32>
    %497 = tpu.concatenate %496, %464 in 1 : vector<2x16xf32>, vector<2x32xf32> -> vector<2x48xf32>
    %cst_118 = arith.constant dense<0.000000e+00> : vector<2x128xf32>
    %498 = tpu.matmul %497, %299, %cst_118 {dimension_numbers = #tpu.dot_dimension_numbers<[1], [0], [0], [1], [0, 0, 1, 1], [], []>} : vector<2x48xf32>, vector<48x128xf32>, vector<2x128xf32> -> vector<2x128xf32>
    %499 = vector.broadcast %300 : vector<1x128xf32> to vector<2x128xf32>
    %500 = arith.addf %498, %499 : vector<2x128xf32>
    %501 = vector.extract_strided_slice %500 {offsets = [0, 0], sizes = [2, 32], strides = [1, 1]} : vector<2x128xf32> to vector<2x32xf32>
    %502 = arith.negf %501 : vector<2x32xf32>
    %503 = math.exp %502 : vector<2x32xf32>
    %cst_119 = arith.constant 1.000000e+00 : f32
    %504 = vector.broadcast %cst_119 : f32 to vector<2x32xf32>
    %505 = arith.addf %504, %503 : vector<2x32xf32>
    %506 = arith.divf %504, %505 : vector<2x32xf32>
    %507 = vector.extract_strided_slice %500 {offsets = [0, 32], sizes = [2, 32], strides = [1, 1]} : vector<2x128xf32> to vector<2x32xf32>
    %508 = arith.negf %507 : vector<2x32xf32>
    %509 = math.exp %508 : vector<2x32xf32>
    %cst_120 = arith.constant 1.000000e+00 : f32
    %510 = vector.broadcast %cst_120 : f32 to vector<2x32xf32>
    %511 = arith.addf %510, %509 : vector<2x32xf32>
    %512 = arith.divf %510, %511 : vector<2x32xf32>
    %513 = vector.extract_strided_slice %500 {offsets = [0, 64], sizes = [2, 32], strides = [1, 1]} : vector<2x128xf32> to vector<2x32xf32>
    %514 = math.tanh %513 : vector<2x32xf32>
    %515 = vector.extract_strided_slice %500 {offsets = [0, 96], sizes = [2, 32], strides = [1, 1]} : vector<2x128xf32> to vector<2x32xf32>
    %516 = arith.negf %515 : vector<2x32xf32>
    %517 = math.exp %516 : vector<2x32xf32>
    %cst_121 = arith.constant 1.000000e+00 : f32
    %518 = vector.broadcast %cst_121 : f32 to vector<2x32xf32>
    %519 = arith.addf %518, %517 : vector<2x32xf32>
    %520 = arith.divf %518, %519 : vector<2x32xf32>
    %521 = arith.mulf %512, %462 : vector<2x32xf32>
    %522 = arith.mulf %506, %514 : vector<2x32xf32>
    %523 = arith.addf %521, %522 : vector<2x32xf32>
    %524 = math.tanh %523 : vector<2x32xf32>
    %525 = arith.mulf %520, %524 : vector<2x32xf32>
    %526 = tpu.concatenate %525, %493 in 1 : vector<2x32xf32>, vector<2x32xf32> -> vector<2x64xf32>
    %cst_122 = arith.constant dense<0.000000e+00> : vector<2x128xf32>
    %527 = tpu.matmul %526, %301, %cst_122 {dimension_numbers = #tpu.dot_dimension_numbers<[1], [0], [0], [1], [0, 0, 1, 1], [], []>} : vector<2x64xf32>, vector<64x128xf32>, vector<2x128xf32> -> vector<2x128xf32>
    %528 = vector.broadcast %302 : vector<1x128xf32> to vector<2x128xf32>
    %529 = arith.addf %527, %528 : vector<2x128xf32>
    %530 = vector.extract_strided_slice %529 {offsets = [0, 0], sizes = [2, 32], strides = [1, 1]} : vector<2x128xf32> to vector<2x32xf32>
    %531 = arith.negf %530 : vector<2x32xf32>
    %532 = math.exp %531 : vector<2x32xf32>
    %cst_123 = arith.constant 1.000000e+00 : f32
    %533 = vector.broadcast %cst_123 : f32 to vector<2x32xf32>
    %534 = arith.addf %533, %532 : vector<2x32xf32>
    %535 = arith.divf %533, %534 : vector<2x32xf32>
    %536 = vector.extract_strided_slice %529 {offsets = [0, 32], sizes = [2, 32], strides = [1, 1]} : vector<2x128xf32> to vector<2x32xf32>
    %537 = arith.negf %536 : vector<2x32xf32>
    %538 = math.exp %537 : vector<2x32xf32>
    %cst_124 = arith.constant 1.000000e+00 : f32
    %539 = vector.broadcast %cst_124 : f32 to vector<2x32xf32>
    %540 = arith.addf %539, %538 : vector<2x32xf32>
    %541 = arith.divf %539, %540 : vector<2x32xf32>
    %542 = vector.extract_strided_slice %529 {offsets = [0, 64], sizes = [2, 32], strides = [1, 1]} : vector<2x128xf32> to vector<2x32xf32>
    %543 = math.tanh %542 : vector<2x32xf32>
    %544 = vector.extract_strided_slice %529 {offsets = [0, 96], sizes = [2, 32], strides = [1, 1]} : vector<2x128xf32> to vector<2x32xf32>
    %545 = arith.negf %544 : vector<2x32xf32>
    %546 = math.exp %545 : vector<2x32xf32>
    %cst_125 = arith.constant 1.000000e+00 : f32
    %547 = vector.broadcast %cst_125 : f32 to vector<2x32xf32>
    %548 = arith.addf %547, %546 : vector<2x32xf32>
    %549 = arith.divf %547, %548 : vector<2x32xf32>
    %550 = arith.mulf %541, %491 : vector<2x32xf32>
    %551 = arith.mulf %535, %543 : vector<2x32xf32>
    %552 = arith.addf %550, %551 : vector<2x32xf32>
    %553 = math.tanh %552 : vector<2x32xf32>
    %554 = arith.mulf %549, %553 : vector<2x32xf32>
    %555 = tpu.concatenate %371, %432, %493, %554 in 1 : vector<2x32xf32>, vector<2x32xf32>, vector<2x32xf32>, vector<2x32xf32> -> vector<2x128xf32>
    %c0_126 = arith.constant 0 : index
    %c0_127 = arith.constant 0 : index
    %556 = vector.load %arg4[%c0_126, %c0_127] : memref<2x128xf32, #tpu.memory_space<vmem>>, vector<2x128xf32>
    tpu.vector_store %arg4[%c0_126, %c0_127], %555 {strides = array<i32>} : memref<2x128xf32, #tpu.memory_space<vmem>>, vector<2x128xf32>,
    %c504 = arith.constant 504 : index
    %c0_128 = arith.constant 0 : index
    %557 = vector.load %arg3[%c504, %c0_128] : memref<576x128xf32, #tpu.memory_space<vmem>>, vector<32x16xf32>
    %cst_129 = arith.constant dense<0.000000e+00> : vector<2x16xf32>
    %558 = tpu.matmul %554, %557, %cst_129 {dimension_numbers = #tpu.dot_dimension_numbers<[1], [0], [0], [1], [0, 0, 1, 1], [], []>} : vector<2x32xf32>, vector<32x16xf32>, vector<2x16xf32> -> vector<2x16xf32>
    %c536 = arith.constant 536 : index
    %c0_130 = arith.constant 0 : index
    %559 = vector.load %arg3[%c536, %c0_130] : memref<576x128xf32, #tpu.memory_space<vmem>>, vector<1x16xf32>
    %560 = vector.broadcast %559 : vector<1x16xf32> to vector<2x16xf32>
    %561 = arith.addf %558, %560 : vector<2x16xf32>
    %562 = vector.shape_cast %561 : vector<2x16xf32> to vector<1x2x16xf32>
    %cst_131 = arith.constant dense<0.000000e+00> : vector<1xf32>
    %563 = vector.multi_reduction <add>, %562, %cst_131 [1, 2] : vector<1x2x16xf32> to vector<1xf32>
    %564 = vector.shape_cast %563 : vector<1xf32> to vector<1x1x1xf32>
    %565 = vector.extract %564[0, 0, 0] : f32 from vector<1x1x1xf32>
    %566 = vector.broadcast %565 : f32 to vector<1x1xf32>
    %cst_132 = arith.constant 3.200000e+01 : f32
    %567 = vector.broadcast %cst_132 : f32 to vector<1x1xf32>
    %568 = arith.divf %566, %567 : vector<1x1xf32>
    %569 = vector.broadcast %568 : vector<1x1xf32> to vector<2x16xf32>
    %570 = arith.subf %561, %569 : vector<2x16xf32>
    %571 = arith.mulf %570, %570 : vector<2x16xf32>
    %572 = vector.shape_cast %571 : vector<2x16xf32> to vector<1x2x16xf32>
    %cst_133 = arith.constant dense<0.000000e+00> : vector<1xf32>
    %573 = vector.multi_reduction <add>, %572, %cst_133 [1, 2] : vector<1x2x16xf32> to vector<1xf32>
    %574 = vector.shape_cast %573 : vector<1xf32> to vector<1x1x1xf32>
    %575 = vector.extract %574[0, 0, 0] : f32 from vector<1x1x1xf32>
    %576 = vector.broadcast %575 : f32 to vector<1x1xf32>
    %cst_134 = arith.constant 3.200000e+01 : f32
    %577 = vector.broadcast %cst_134 : f32 to vector<1x1xf32>
    %578 = arith.divf %576, %577 : vector<1x1xf32>
    %579 = vector.broadcast %568 : vector<1x1xf32> to vector<2x16xf32>
    %580 = arith.subf %561, %579 : vector<2x16xf32>
    %cst_135 = arith.constant 9.99999974E-6 : f32
    %581 = vector.broadcast %cst_135 : f32 to vector<1x1xf32>
    %582 = arith.addf %578, %581 : vector<1x1xf32>
    %583 = math.rsqrt %582 : vector<1x1xf32>
    %584 = vector.broadcast %583 : vector<1x1xf32> to vector<2x16xf32>
    %585 = arith.mulf %580, %584 : vector<2x16xf32>
    %c560 = arith.constant 560 : index
    %c0_136 = arith.constant 0 : index
    %586 = vector.load %arg3[%c560, %c0_136] : memref<576x128xf32, #tpu.memory_space<vmem>>, vector<1x1xf32>
    %587 = vector.broadcast %586 : vector<1x1xf32> to vector<2x16xf32>
    %588 = arith.mulf %585, %587 : vector<2x16xf32>
    %c568 = arith.constant 568 : index
    %c0_137 = arith.constant 0 : index
    %589 = vector.load %arg3[%c568, %c0_137] : memref<576x128xf32, #tpu.memory_space<vmem>>, vector<1x1xf32>
    %590 = vector.broadcast %589 : vector<1x1xf32> to vector<2x16xf32>
    %591 = arith.addf %588, %590 : vector<2x16xf32>
    %cst_138 = arith.constant 0.000000e+00 : f32
    %592 = vector.broadcast %cst_138 : f32 to vector<2x16xf32>
    %593 = arith.maximumf %591, %592 : vector<2x16xf32>
    %c544 = arith.constant 544 : index
    %c0_139 = arith.constant 0 : index
    %594 = vector.load %arg3[%c544, %c0_139] : memref<576x128xf32, #tpu.memory_space<vmem>>, vector<1x16xf32>
    %595 = vector.broadcast %594 : vector<1x16xf32> to vector<2x16xf32>
    %596 = arith.mulf %593, %595 : vector<2x16xf32>
    %cst_140 = arith.constant dense<0.000000e+00> : vector<2xf32>
    %597 = vector.multi_reduction <add>, %596, %cst_140 [1] : vector<2x16xf32> to vector<2xf32>
    %598 = vector.shape_cast %597 : vector<2xf32> to vector<2x1xf32>
    %c552 = arith.constant 552 : index
    %c0_141 = arith.constant 0 : index
    %599 = vector.load %arg3[%c552, %c0_141] : memref<576x128xf32, #tpu.memory_space<vmem>>, vector<1x1xf32>
    %600 = vector.broadcast %599 : vector<1x1xf32> to vector<2x1xf32>
    %601 = arith.addf %598, %600 : vector<2x1xf32>
    %c0_142 = arith.constant 0 : index
    %c0_143 = arith.constant 0 : index
    %602 = vector.load %arg5[%c0_142, %c0_143] : memref<2x1xf32, #tpu.memory_space<vmem>>, vector<2x1xf32>
    tpu.vector_store %arg5[%c0_142, %c0_143], %601 {strides = array<i32>} : memref<2x1xf32, #tpu.memory_space<vmem>>, vector<2x1xf32>,
    return
  }
}

</mosaic_0001>

<llo_original>
// kernel: tpu_custom_call.1
$region0: #{tpu_custom_call.1}
  #allocation0 [shape = 'u32[]', space=smem, size = 0x4, offset = 0x4, fixed_abs, tag = 'smem constant byte address 0x4 - core index']
  #allocation1 [shape = 'u32[144,128]{1,0:T(1,128)}', space=vmem, size = 0x12000, scoped, tag = 'internal scratch']
  #allocation2 [shape = 'f32[64,8]{1,0:T(8,128)}', space=vmem, size = 0x8000, scoped, tag = 'scratch operand']
  #allocation3 [shape = 'f32[32,16]{1,0:T(8,128)}', space=vmem, size = 0x4000, scoped, tag = 'scratch operand']
  #allocation4 [shape = 'f32[16,16]{1,0:T(8,128)}', space=vmem, size = 0x2000, scoped, tag = 'scratch operand']
  %s0 = inlined_call_operand.vmem [shape: f32[64,4], index: 0, kind: input, shape index: {}]
  %s1 = inlined_call_operand.vmem [shape: f32[2,2,32], index: 1, kind: input, shape index: {}]
  %s2 = inlined_call_operand.vmem [shape: f32[2,2,32], index: 2, kind: input, shape index: {}]
  %s3 = inlined_call_operand.hbm [shape: f32[576,128], index: 3, kind: input, shape index: {}]
  %s4 = inlined_call_operand.hbm [shape: f32[2,128], index: 4, kind: output, shape index: {0}]
  %s5 = inlined_call_operand.vmem [shape: f32[2,1], index: 5, kind: output, shape index: {1}]
  %6 = xla_tuple %s4, %s5
  %s7 = sld [smem:[#allocation0]]
  $region38: #{tpu_custom_call.1} parent=0
    _
  %s9 = ssub.s32 1, %s7
  %s10 = scalar_select 0, %s9, %s7
  $region1: #{tpu_custom_call.1} parent=0
    #allocation5 [shape = 'u8[294912]{0}', space=vmem, size = 0x48000, scoped, tag = 'input window, operand 3, single buffered']
    #allocation6 [shape = 's32[1]{0}', space=sflag, size = 0x4, scoped, tag = 'scoped memory for tpu_custom_call.1']
    #allocation7 [shape = 's32[1]{0}', space=sflag, size = 0x4, scoped, tag = 'scoped memory for tpu_custom_call.1']
    #allocation8 [shape = 'u8[1024]{0}', space=vmem, size = 0x400, scoped, tag = 'output window, operand 0, single buffered']
    %11 = vsyncpa [#allocation6], 0
    %12 = vsyncpa [#allocation7], 0
    // Predicated region
    $region2: #{tpu_custom_call.1} parent=1 // pred_check
      _
    $region3: #{tpu_custom_call.1} parent=1 // pred_check_branch
      %14 = sbr.rel (0) target = $region5
    $region4: #{tpu_custom_call.1} parent=1 // pred_region
      _
    $region5: #{tpu_custom_call.1} parent=1 // pred_fallthru
      _
    // Predicated region
    $region6: #{tpu_custom_call.1} parent=1 // pred_check
      _
    $region7: #{tpu_custom_call.1} parent=1 // pred_check_branch
      %16 = sbr.rel (0) target = $region9
    $region8: #{tpu_custom_call.1} parent=1 // pred_region
      _
    $region9: #{tpu_custom_call.1} parent=1 // pred_fallthru
      _
    // Predicated region
    $region10: #{tpu_custom_call.1} parent=1 // pred_check
      _
    $region11: #{tpu_custom_call.1} parent=1 // pred_check_branch
      %18 = sbr.rel (0) target = $region13
    $region12: #{tpu_custom_call.1} parent=1 // pred_region
      _
    $region13: #{tpu_custom_call.1} parent=1 // pred_fallthru
      _
    // Predicated region
    $region14: #{tpu_custom_call.1} parent=1 // pred_check
      _
    $region15: #{tpu_custom_call.1} parent=1 // pred_check_branch
      %20 = sbr.rel (0) target = $region17
    $region16: #{tpu_custom_call.1} parent=1 // pred_region
      %s22 = ssub.s32 9216, 9216
      %23 = vsyncadd [#allocation6], %s22
      %s24 = sshll.u32 [#allocation5], 4
      %s25 = int_to_ptr.vmem [resolvable:$true] %s24
      %30 = dma.hbm_to_vmem [thread:$0]  %s3, 9216, %s25, [#allocation6], 128, 128, 8
    $region17: #{tpu_custom_call.1} parent=1 // pred_fallthru
      _
    // Predicated region
    $region18: #{tpu_custom_call.1} parent=1 // pred_check
      _
    $region19: #{tpu_custom_call.1} parent=1 // pred_check_branch
      %32 = sbr.rel (0) target = $region21
    $region20: #{tpu_custom_call.1} parent=1 // pred_region
      %33 = dma.done [#allocation6], 9216
    $region21: #{tpu_custom_call.1} parent=1 // pred_fallthru
      _
    %v34 = vld [vmem:[%s0] sm:$0xff]
    %v35 = vld [vmem:[%s0 + $0x8] sm:$0xff]
    %v36 = vld [vmem:[%s0 + $0x10] sm:$0xff]
    %v37 = vld [vmem:[%s0 + $0x18] sm:$0xff]
    %v38 = vld [vmem:[%s0 + $0x20] sm:$0xff]
    %v39 = vld [vmem:[%s0 + $0x28] sm:$0xff]
    %v40 = vld [vmem:[%s0 + $0x30] sm:$0xff]
    %v41 = vld [vmem:[%s0 + $0x38] sm:$0xff]
    %v42 = vld [vmem:[#allocation5 + $0x48] sm:$0xff]
    %v43 = vld [vmem:[#allocation5 + $0x50] sm:$0xff]
    %v44 = vld [vmem:[#allocation5 + $0x58] sm:$0xff]
    %v45 = vld [vmem:[#allocation5 + $0x60] sm:$0xff]
    %v46 = vld [vmem:[#allocation5 + $0x68] sm:$0xff]
    %v47 = vld [vmem:[#allocation5 + $0x70] sm:$0xff]
    %v48 = vld [vmem:[#allocation5 + $0x78] sm:$0xff]
    %v49 = vld [vmem:[#allocation5 + $0x80] sm:$0xff]
    %v50 = vld [vmem:[#allocation5] sm:$0xff]
    %v51 = vld [vmem:[#allocation5 + $0x8] sm:$0x1]
    %vm60 = vcmask 1040384
    %v61 = vrot.slane %v34, 7
    %v62 = vrot.slane %v35, 7
    %v63 = vsel %vm60, %v61, %v62
    %v64 = vrot.slane %v36, 7
    %v65 = vsel %vm60, %v62, %v64
    %v66 = vrot.slane %v37, 7
    %v67 = vsel %vm60, %v64, %v66
    %v68 = vrot.slane %v38, 7
    %v69 = vsel %vm60, %v66, %v68
    %v70 = vrot.slane %v39, 7
    %v71 = vsel %vm60, %v68, %v70
    %v72 = vrot.slane %v40, 7
    %v73 = vsel %vm60, %v70, %v72
    %v74 = vrot.slane %v41, 7
    %v75 = vsel %vm60, %v72, %v74
    %v84 = vsel %vm60, 0.0, %v61
    %86 = vset.pattern.permute.xlu0 0
    %87 = vperm.xlu0 %86, %v42
    %v88 = vpop.permute.xlu0 %87
    %91 = vset.pattern.permute.xlu0 0
    %92 = vperm.xlu0 %91, %v43
    %v93 = vpop.permute.xlu0 %92
    %96 = vset.pattern.permute.xlu0 0
    %97 = vperm.xlu0 %96, %v44
    %v98 = vpop.permute.xlu0 %97
    %101 = vset.pattern.permute.xlu0 0
    %102 = vperm.xlu0 %101, %v45
    %v103 = vpop.permute.xlu0 %102
    %106 = vset.pattern.permute.xlu0 0
    %107 = vperm.xlu0 %106, %v46
    %v108 = vpop.permute.xlu0 %107
    %111 = vset.pattern.permute.xlu0 0
    %112 = vperm.xlu0 %111, %v47
    %v113 = vpop.permute.xlu0 %112
    %116 = vset.pattern.permute.xlu0 0
    %117 = vperm.xlu0 %116, %v48
    %v118 = vpop.permute.xlu0 %117
    %121 = vset.pattern.permute.xlu0 0
    %122 = vperm.xlu0 %121, %v49
    %v123 = vpop.permute.xlu0 %122
    %v125 = vmul.f32 %v84, %v88
    %v126 = vmul.f32 %v63, %v93
    %v127 = vmul.f32 %v65, %v98
    %v128 = vmul.f32 %v67, %v103
    %v129 = vmul.f32 %v69, %v108
    %v130 = vmul.f32 %v71, %v113
    %v131 = vmul.f32 %v73, %v118
    %v132 = vmul.f32 %v75, %v123
    %133 = vrot.lane.b32.xlu0 %v34, 4
    %v134 = vpop.permute.xlu0 %133
    %135 = vrot.lane.b32.xlu0 %v35, 4
    %v136 = vpop.permute.xlu0 %135
    %137 = vrot.lane.b32.xlu0 %v36, 4
    %v138 = vpop.permute.xlu0 %137
    %139 = vrot.lane.b32.xlu0 %v37, 4
    %v140 = vpop.permute.xlu0 %139
    %141 = vrot.lane.b32.xlu0 %v38, 4
    %v142 = vpop.permute.xlu0 %141
    %143 = vrot.lane.b32.xlu0 %v39, 4
    %v144 = vpop.permute.xlu0 %143
    %145 = vrot.lane.b32.xlu0 %v40, 4
    %v146 = vpop.permute.xlu0 %145
    %147 = vrot.lane.b32.xlu0 %v41, 4
    %v148 = vpop.permute.xlu0 %147
    %vm157 = vcmask 31744
    %v158 = vsel %vm157, %v125, %v134
    %v159 = vsel %vm157, %v126, %v136
    %v160 = vsel %vm157, %v127, %v138
    %v161 = vsel %vm157, %v128, %v140
    %v162 = vsel %vm157, %v129, %v142
    %v163 = vsel %vm157, %v130, %v144
    %v164 = vsel %vm157, %v131, %v146
    %v165 = vsel %vm157, %v132, %v148
    %167 = vset.pattern.permute.xlu0 0
    %168 = vperm.xlu0 %167, %v158
    %v169 = vpop.permute.xlu0 %168
    %172 = vset.pattern.permute.xlu0 0
    %173 = vperm.xlu0 %172, %v159
    %v174 = vpop.permute.xlu0 %173
    %177 = vset.pattern.permute.xlu0 0
    %178 = vperm.xlu0 %177, %v160
    %v179 = vpop.permute.xlu0 %178
    %182 = vset.pattern.permute.xlu0 0
    %183 = vperm.xlu0 %182, %v161
    %v184 = vpop.permute.xlu0 %183
    %187 = vset.pattern.permute.xlu0 0
    %188 = vperm.xlu0 %187, %v162
    %v189 = vpop.permute.xlu0 %188
    %192 = vset.pattern.permute.xlu0 0
    %193 = vperm.xlu0 %192, %v163
    %v194 = vpop.permute.xlu0 %193
    %197 = vset.pattern.permute.xlu0 0
    %198 = vperm.xlu0 %197, %v164
    %v199 = vpop.permute.xlu0 %198
    %202 = vset.pattern.permute.xlu0 0
    %203 = vperm.xlu0 %202, %v165
    %v204 = vpop.permute.xlu0 %203
    %v206 = vlaneseq
    %v207 = vshrl.u32 %v206, 7
    %v208 = vsub.s32 0, %v207
    %v209 = vrot.slane %v50, %v208
    %v210 = vmul.f32 %v169, %v209
    %v211 = vmul.f32 %v174, %v209
    %v212 = vmul.f32 %v179, %v209
    %v213 = vmul.f32 %v184, %v209
    %v214 = vmul.f32 %v189, %v209
    %v215 = vmul.f32 %v194, %v209
    %v216 = vmul.f32 %v199, %v209
    %v217 = vmul.f32 %v204, %v209
    %218 = vset.pattern.permute.xlu0 1
    %219 = vperm.xlu0 %218, %v158
    %v220 = vpop.permute.xlu0 %219
    %222 = vset.pattern.permute.xlu0 1
    %223 = vperm.xlu0 %222, %v159
    %v224 = vpop.permute.xlu0 %223
    %226 = vset.pattern.permute.xlu0 1
    %227 = vperm.xlu0 %226, %v160
    %v228 = vpop.permute.xlu0 %227
    %230 = vset.pattern.permute.xlu0 1
    %231 = vperm.xlu0 %230, %v161
    %v232 = vpop.permute.xlu0 %231
    %234 = vset.pattern.permute.xlu0 1
    %235 = vperm.xlu0 %234, %v162
    %v236 = vpop.permute.xlu0 %235
    %238 = vset.pattern.permute.xlu0 1
    %239 = vperm.xlu0 %238, %v163
    %v240 = vpop.permute.xlu0 %239
    %242 = vset.pattern.permute.xlu0 1
    %243 = vperm.xlu0 %242, %v164
    %v244 = vpop.permute.xlu0 %243
    %246 = vset.pattern.permute.xlu0 1
    %247 = vperm.xlu0 %246, %v165
    %v248 = vpop.permute.xlu0 %247
    %v250 = vlaneseq
    %v251 = vshrl.u32 %v250, 7
    %v252 = vsub.s32 1, %v251
    %v253 = vrot.slane %v50, %v252
    %v254 = vmul.f32 %v220, %v253
    %v255 = vmul.f32 %v224, %v253
    %v256 = vmul.f32 %v228, %v253
    %v257 = vmul.f32 %v232, %v253
    %v258 = vmul.f32 %v236, %v253
    %v259 = vmul.f32 %v240, %v253
    %v260 = vmul.f32 %v244, %v253
    %v261 = vmul.f32 %v248, %v253
    %v262 = vadd.f32 %v210, %v254
    %v263 = vadd.f32 %v211, %v255
    %v264 = vadd.f32 %v212, %v256
    %v265 = vadd.f32 %v213, %v257
    %v266 = vadd.f32 %v214, %v258
    %v267 = vadd.f32 %v215, %v259
    %v268 = vadd.f32 %v216, %v260
    %v269 = vadd.f32 %v217, %v261
    %270 = vset.pattern.permute.xlu0 2
    %271 = vperm.xlu0 %270, %v158
    %v272 = vpop.permute.xlu0 %271
    %274 = vset.pattern.permute.xlu0 2
    %275 = vperm.xlu0 %274, %v159
    %v276 = vpop.permute.xlu0 %275
    %278 = vset.pattern.permute.xlu0 2
    %279 = vperm.xlu0 %278, %v160
    %v280 = vpop.permute.xlu0 %279
    %282 = vset.pattern.permute.xlu0 2
    %283 = vperm.xlu0 %282, %v161
    %v284 = vpop.permute.xlu0 %283
    %286 = vset.pattern.permute.xlu0 2
    %287 = vperm.xlu0 %286, %v162
    %v288 = vpop.permute.xlu0 %287
    %290 = vset.pattern.permute.xlu0 2
    %291 = vperm.xlu0 %290, %v163
    %v292 = vpop.permute.xlu0 %291
    %294 = vset.pattern.permute.xlu0 2
    %295 = vperm.xlu0 %294, %v164
    %v296 = vpop.permute.xlu0 %295
    %298 = vset.pattern.permute.xlu0 2
    %299 = vperm.xlu0 %298, %v165
    %v300 = vpop.permute.xlu0 %299
    %v302 = vlaneseq
    %v303 = vshrl.u32 %v302, 7
    %v304 = vsub.s32 2, %v303
    %v305 = vrot.slane %v50, %v304
    %v306 = vmul.f32 %v272, %v305
    %v307 = vmul.f32 %v276, %v305
    %v308 = vmul.f32 %v280, %v305
    %v309 = vmul.f32 %v284, %v305
    %v310 = vmul.f32 %v288, %v305
    %v311 = vmul.f32 %v292, %v305
    %v312 = vmul.f32 %v296, %v305
    %v313 = vmul.f32 %v300, %v305
    %v314 = vadd.f32 %v262, %v306
    %v315 = vadd.f32 %v263, %v307
    %v316 = vadd.f32 %v264, %v308
    %v317 = vadd.f32 %v265, %v309
    %v318 = vadd.f32 %v266, %v310
    %v319 = vadd.f32 %v267, %v311
    %v320 = vadd.f32 %v268, %v312
    %v321 = vadd.f32 %v269, %v313
    %322 = vset.pattern.permute.xlu0 3
    %323 = vperm.xlu0 %322, %v158
    %v324 = vpop.permute.xlu0 %323
    %326 = vset.pattern.permute.xlu0 3
    %327 = vperm.xlu0 %326, %v159
    %v328 = vpop.permute.xlu0 %327
    %330 = vset.pattern.permute.xlu0 3
    %331 = vperm.xlu0 %330, %v160
    %v332 = vpop.permute.xlu0 %331
    %334 = vset.pattern.permute.xlu0 3
    %335 = vperm.xlu0 %334, %v161
    %v336 = vpop.permute.xlu0 %335
    %338 = vset.pattern.permute.xlu0 3
    %339 = vperm.xlu0 %338, %v162
    %v340 = vpop.permute.xlu0 %339
    %342 = vset.pattern.permute.xlu0 3
    %343 = vperm.xlu0 %342, %v163
    %v344 = vpop.permute.xlu0 %343
    %346 = vset.pattern.permute.xlu0 3
    %347 = vperm.xlu0 %346, %v164
    %v348 = vpop.permute.xlu0 %347
    %350 = vset.pattern.permute.xlu0 3
    %351 = vperm.xlu0 %350, %v165
    %v352 = vpop.permute.xlu0 %351
    %v354 = vlaneseq
    %v355 = vshrl.u32 %v354, 7
    %v356 = vsub.s32 3, %v355
    %v357 = vrot.slane %v50, %v356
    %v358 = vmul.f32 %v324, %v357
    %v359 = vmul.f32 %v328, %v357
    %v360 = vmul.f32 %v332, %v357
    %v361 = vmul.f32 %v336, %v357
    %v362 = vmul.f32 %v340, %v357
    %v363 = vmul.f32 %v344, %v357
    %v364 = vmul.f32 %v348, %v357
    %v365 = vmul.f32 %v352, %v357
    %v366 = vadd.f32 %v314, %v358
    %v367 = vadd.f32 %v315, %v359
    %v368 = vadd.f32 %v316, %v360
    %v369 = vadd.f32 %v317, %v361
    %v370 = vadd.f32 %v318, %v362
    %v371 = vadd.f32 %v319, %v363
    %v372 = vadd.f32 %v320, %v364
    %v373 = vadd.f32 %v321, %v365
    %374 = vset.pattern.permute.xlu0 4
    %375 = vperm.xlu0 %374, %v158
    %v376 = vpop.permute.xlu0 %375
    %378 = vset.pattern.permute.xlu0 4
    %379 = vperm.xlu0 %378, %v159
    %v380 = vpop.permute.xlu0 %379
    %382 = vset.pattern.permute.xlu0 4
    %383 = vperm.xlu0 %382, %v160
    %v384 = vpop.permute.xlu0 %383
    %386 = vset.pattern.permute.xlu0 4
    %387 = vperm.xlu0 %386, %v161
    %v388 = vpop.permute.xlu0 %387
    %390 = vset.pattern.permute.xlu0 4
    %391 = vperm.xlu0 %390, %v162
    %v392 = vpop.permute.xlu0 %391
    %394 = vset.pattern.permute.xlu0 4
    %395 = vperm.xlu0 %394, %v163
    %v396 = vpop.permute.xlu0 %395
    %398 = vset.pattern.permute.xlu0 4
    %399 = vperm.xlu0 %398, %v164
    %v400 = vpop.permute.xlu0 %399
    %402 = vset.pattern.permute.xlu0 4
    %403 = vperm.xlu0 %402, %v165
    %v404 = vpop.permute.xlu0 %403
    %v406 = vlaneseq
    %v407 = vshrl.u32 %v406, 7
    %v408 = vsub.s32 4, %v407
    %v409 = vrot.slane %v50, %v408
    %v410 = vmul.f32 %v376, %v409
    %v411 = vmul.f32 %v380, %v409
    %v412 = vmul.f32 %v384, %v409
    %v413 = vmul.f32 %v388, %v409
    %v414 = vmul.f32 %v392, %v409
    %v415 = vmul.f32 %v396, %v409
    %v416 = vmul.f32 %v400, %v409
    %v417 = vmul.f32 %v404, %v409
    %v418 = vadd.f32 %v366, %v410
    %v419 = vadd.f32 %v367, %v411
    %v420 = vadd.f32 %v368, %v412
    %v421 = vadd.f32 %v369, %v413
    %v422 = vadd.f32 %v370, %v414
    %v423 = vadd.f32 %v371, %v415
    %v424 = vadd.f32 %v372, %v416
    %v425 = vadd.f32 %v373, %v417
    %426 = vset.pattern.permute.xlu0 5
    %427 = vperm.xlu0 %426, %v158
    %v428 = vpop.permute.xlu0 %427
    %430 = vset.pattern.permute.xlu0 5
    %431 = vperm.xlu0 %430, %v159
    %v432 = vpop.permute.xlu0 %431
    %434 = vset.pattern.permute.xlu0 5
    %435 = vperm.xlu0 %434, %v160
    %v436 = vpop.permute.xlu0 %435
    %438 = vset.pattern.permute.xlu0 5
    %439 = vperm.xlu0 %438, %v161
    %v440 = vpop.permute.xlu0 %439
    %442 = vset.pattern.permute.xlu0 5
    %443 = vperm.xlu0 %442, %v162
    %v444 = vpop.permute.xlu0 %443
    %446 = vset.pattern.permute.xlu0 5
    %447 = vperm.xlu0 %446, %v163
    %v448 = vpop.permute.xlu0 %447
    %450 = vset.pattern.permute.xlu0 5
    %451 = vperm.xlu0 %450, %v164
    %v452 = vpop.permute.xlu0 %451
    %454 = vset.pattern.permute.xlu0 5
    %455 = vperm.xlu0 %454, %v165
    %v456 = vpop.permute.xlu0 %455
    %v458 = vlaneseq
    %v459 = vshrl.u32 %v458, 7
    %v460 = vsub.s32 5, %v459
    %v461 = vrot.slane %v50, %v460
    %v462 = vmul.f32 %v428, %v461
    %v463 = vmul.f32 %v432, %v461
    %v464 = vmul.f32 %v436, %v461
    %v465 = vmul.f32 %v440, %v461
    %v466 = vmul.f32 %v444, %v461
    %v467 = vmul.f32 %v448, %v461
    %v468 = vmul.f32 %v452, %v461
    %v469 = vmul.f32 %v456, %v461
    %v470 = vadd.f32 %v418, %v462
    %v471 = vadd.f32 %v419, %v463
    %v472 = vadd.f32 %v420, %v464
    %v473 = vadd.f32 %v421, %v465
    %v474 = vadd.f32 %v422, %v466
    %v475 = vadd.f32 %v423, %v467
    %v476 = vadd.f32 %v424, %v468
    %v477 = vadd.f32 %v425, %v469
    %478 = vset.pattern.permute.xlu0 6
    %479 = vperm.xlu0 %478, %v158
    %v480 = vpop.permute.xlu0 %479
    %482 = vset.pattern.permute.xlu0 6
    %483 = vperm.xlu0 %482, %v159
    %v484 = vpop.permute.xlu0 %483
    %486 = vset.pattern.permute.xlu0 6
    %487 = vperm.xlu0 %486, %v160
    %v488 = vpop.permute.xlu0 %487
    %490 = vset.pattern.permute.xlu0 6
    %491 = vperm.xlu0 %490, %v161
    %v492 = vpop.permute.xlu0 %491
    %494 = vset.pattern.permute.xlu0 6
    %495 = vperm.xlu0 %494, %v162
    %v496 = vpop.permute.xlu0 %495
    %498 = vset.pattern.permute.xlu0 6
    %499 = vperm.xlu0 %498, %v163
    %v500 = vpop.permute.xlu0 %499
    %502 = vset.pattern.permute.xlu0 6
    %503 = vperm.xlu0 %502, %v164
    %v504 = vpop.permute.xlu0 %503
    %506 = vset.pattern.permute.xlu0 6
    %507 = vperm.xlu0 %506, %v165
    %v508 = vpop.permute.xlu0 %507
    %v510 = vlaneseq
    %v511 = vshrl.u32 %v510, 7
    %v512 = vsub.s32 6, %v511
    %v513 = vrot.slane %v50, %v512
    %v514 = vmul.f32 %v480, %v513
    %v515 = vmul.f32 %v484, %v513
    %v516 = vmul.f32 %v488, %v513
    %v517 = vmul.f32 %v492, %v513
    %v518 = vmul.f32 %v496, %v513
    %v519 = vmul.f32 %v500, %v513
    %v520 = vmul.f32 %v504, %v513
    %v521 = vmul.f32 %v508, %v513
    %v522 = vadd.f32 %v470, %v514
    %v523 = vadd.f32 %v471, %v515
    %v524 = vadd.f32 %v472, %v516
    %v525 = vadd.f32 %v473, %v517
    %v526 = vadd.f32 %v474, %v518
    %v527 = vadd.f32 %v475, %v519
    %v528 = vadd.f32 %v476, %v520
    %v529 = vadd.f32 %v477, %v521
    %530 = vset.pattern.permute.xlu0 7
    %531 = vperm.xlu0 %530, %v158
    %v532 = vpop.permute.xlu0 %531
    %534 = vset.pattern.permute.xlu0 7
    %535 = vperm.xlu0 %534, %v159
    %v536 = vpop.permute.xlu0 %535
    %538 = vset.pattern.permute.xlu0 7
    %539 = vperm.xlu0 %538, %v160
    %v540 = vpop.permute.xlu0 %539
    %542 = vset.pattern.permute.xlu0 7
    %543 = vperm.xlu0 %542, %v161
    %v544 = vpop.permute.xlu0 %543
    %546 = vset.pattern.permute.xlu0 7
    %547 = vperm.xlu0 %546, %v162
    %v548 = vpop.permute.xlu0 %547
    %550 = vset.pattern.permute.xlu0 7
    %551 = vperm.xlu0 %550, %v163
    %v552 = vpop.permute.xlu0 %551
    %554 = vset.pattern.permute.xlu0 7
    %555 = vperm.xlu0 %554, %v164
    %v556 = vpop.permute.xlu0 %555
    %558 = vset.pattern.permute.xlu0 7
    %559 = vperm.xlu0 %558, %v165
    %v560 = vpop.permute.xlu0 %559
    %v562 = vlaneseq
    %v563 = vshrl.u32 %v562, 7
    %v564 = vsub.s32 7, %v563
    %v565 = vrot.slane %v50, %v564
    %v566 = vmul.f32 %v532, %v565
    %v567 = vmul.f32 %v536, %v565
    %v568 = vmul.f32 %v540, %v565
    %v569 = vmul.f32 %v544, %v565
    %v570 = vmul.f32 %v548, %v565
    %v571 = vmul.f32 %v552, %v565
    %v572 = vmul.f32 %v556, %v565
    %v573 = vmul.f32 %v560, %v565
    %v574 = vadd.f32 %v522, %v566
    %v575 = vadd.f32 %v523, %v567
    %v576 = vadd.f32 %v524, %v568
    %v577 = vadd.f32 %v525, %v569
    %v578 = vadd.f32 %v526, %v570
    %v579 = vadd.f32 %v527, %v571
    %v580 = vadd.f32 %v528, %v572
    %v581 = vadd.f32 %v529, %v573
    %v582 = vlaneseq
    %v583 = vshrl.u32 %v582, 7
    %v584 = vsub.s32 0, %v583
    %v585 = vrot.slane %v51, %v584
    %v586 = vadd.f32 %v574, %v585
    %v587 = vadd.f32 %v575, %v585
    %v588 = vadd.f32 %v576, %v585
    %v589 = vadd.f32 %v577, %v585
    %v590 = vadd.f32 %v578, %v585
    %v591 = vadd.f32 %v579, %v585
    %v592 = vadd.f32 %v580, %v585
    %v593 = vadd.f32 %v581, %v585
    %v594 = vmax.f32 %v586, 0.0
    %v595 = vmax.f32 %v587, 0.0
    %v596 = vmax.f32 %v588, 0.0
    %v597 = vmax.f32 %v589, 0.0
    %v598 = vmax.f32 %v590, 0.0
    %v599 = vmax.f32 %v591, 0.0
    %v600 = vmax.f32 %v592, 0.0
    %v601 = vmax.f32 %v593, 0.0
    %v602 = vld [vmem:[#allocation5 + $0x10] sm:$0xff]
    %v603 = vld [vmem:[#allocation5 + $0x18] sm:$0xff]
    %v604 = vld [vmem:[#allocation5 + $0x20] sm:$0x1]
    %v613 = vrot.slane %v594, 7
    %v614 = vrot.slane %v595, 7
    %v615 = vsel %vm60, %v613, %v614
    %v616 = vrot.slane %v596, 7
    %v617 = vsel %vm60, %v614, %v616
    %v618 = vrot.slane %v597, 7
    %v619 = vsel %vm60, %v616, %v618
    %v620 = vrot.slane %v598, 7
    %v621 = vsel %vm60, %v618, %v620
    %v622 = vrot.slane %v599, 7
    %v623 = vsel %vm60, %v620, %v622
    %v624 = vrot.slane %v600, 7
    %v625 = vsel %vm60, %v622, %v624
    %v626 = vrot.slane %v601, 7
    %v627 = vsel %vm60, %v624, %v626
    %v636 = vsel %vm60, 0.0, %v613
    %v637 = vmul.f32 %v636, %v88
    %v638 = vmul.f32 %v615, %v93
    %v639 = vmul.f32 %v617, %v98
    %v640 = vmul.f32 %v619, %v103
    %v641 = vmul.f32 %v621, %v108
    %v642 = vmul.f32 %v623, %v113
    %v643 = vmul.f32 %v625, %v118
    %v644 = vmul.f32 %v627, %v123
    %645 = vrot.lane.b32.xlu0 %v594, 8
    %v646 = vpop.permute.xlu0 %645
    %647 = vrot.lane.b32.xlu0 %v595, 8
    %v648 = vpop.permute.xlu0 %647
    %649 = vrot.lane.b32.xlu0 %v596, 8
    %v650 = vpop.permute.xlu0 %649
    %651 = vrot.lane.b32.xlu0 %v597, 8
    %v652 = vpop.permute.xlu0 %651
    %653 = vrot.lane.b32.xlu0 %v598, 8
    %v654 = vpop.permute.xlu0 %653
    %655 = vrot.lane.b32.xlu0 %v599, 8
    %v656 = vpop.permute.xlu0 %655
    %657 = vrot.lane.b32.xlu0 %v600, 8
    %v658 = vpop.permute.xlu0 %657
    %659 = vrot.lane.b32.xlu0 %v601, 8
    %v660 = vpop.permute.xlu0 %659
    %vm669 = vcmask 64512
    %v670 = vsel %vm669, %v637, %v646
    %v671 = vsel %vm669, %v638, %v648
    %v672 = vsel %vm669, %v639, %v650
    %v673 = vsel %vm669, %v640, %v652
    %v674 = vsel %vm669, %v641, %v654
    %v675 = vsel %vm669, %v642, %v656
    %v676 = vsel %vm669, %v643, %v658
    %v677 = vsel %vm669, %v644, %v660
    %v678 = vlaneseq
    %v679 = vshrl.u32 %v678, 7
    %v680 = vsub.s32 0, %v679
    %v681 = vrot.slane %v604, %v680
    %vm682 = vcmask 130048
    %v684 = vsel %vm682, %v670, 0
    %v687 = vsel %vm682, %v671, 0
    %v690 = vsel %vm682, %v672, 0
    %v693 = vsel %vm682, %v673, 0
    %v696 = vsel %vm682, %v674, 0
    %v699 = vsel %vm682, %v675, 0
    %v702 = vsel %vm682, %v676, 0
    %v705 = vsel %vm682, %v677, 0
    %707 = vmatprep.subr.mxu0 0.0
    %708 = vmatpush1.msra.mxu0 0.0
    %709 = vmatprep.subr.mxu0 0.0
    %710 = vmatpush1.msra.mxu0 0.0
    %711 = vmatprep.subr.mxu0 0.0
    %712 = vmatpush1.msra.mxu0 0.0
    %713 = vmatprep.subr.mxu0 0.0
    %714 = vmatpush1.msra.mxu0 0.0
    %715 = vmatprep.subr.mxu0 0.0
    %716 = vmatpush1.msra.mxu0 0.0
    %717 = vmatprep.subr.mxu0 0.0
    %718 = vmatpush1.msra.mxu0 0.0
    %719 = vmatprep.subr.mxu0 0.0
    %720 = vmatpush1.msra.mxu0 0.0
    %721 = vmatprep.subr.mxu0 0.0
    %722 = vmatpush1.msra.mxu0 0.0
    %723 = vmatprep.subr.mxu0 0.0
    %724 = vmatpush1.msra.mxu0 0.0
    %725 = vmatprep.subr.mxu0 0.0
    %726 = vmatpush1.msra.mxu0 0.0
    %727 = vmatprep.subr.mxu0 0.0
    %728 = vmatpush1.msra.mxu0 0.0
    %729 = vmatprep.subr.mxu0 0.0
    %730 = vmatpush1.msra.mxu0 0.0
    %731 = vmatprep.subr.mxu0 0.0
    %732 = vmatpush1.msra.mxu0 0.0
    %733 = vmatprep.subr.mxu0 0.0
    %734 = vmatpush1.msra.mxu0 0.0
    %735 = vmatprep.subr.mxu0 0.0
    %736 = vmatpush1.msra.mxu0 %v603
    %737 = vmatprep.subr.mxu0 0.0
    %738 = vmatpush1.msra.mxu0 %v602
    %739 = vmatprep.subr.mxu0 0.0
    %740 = vmatpush2.msra.mxu0 0.0
    %741 = vmatprep.subr.mxu0 0.0
    %742 = vmatpush2.msra.mxu0 0.0
    %743 = vmatprep.subr.mxu0 0.0
    %744 = vmatpush2.msra.mxu0 0.0
    %745 = vmatprep.subr.mxu0 0.0
    %746 = vmatpush2.msra.mxu0 0.0
    %747 = vmatprep.subr.mxu0 0.0
    %748 = vmatpush2.msra.mxu0 0.0
    %749 = vmatprep.subr.mxu0 0.0
    %750 = vmatpush2.msra.mxu0 0.0
    %751 = vmatprep.subr.mxu0 0.0
    %752 = vmatpush2.msra.mxu0 0.0
    %753 = vmatprep.subr.mxu0 0.0
    %754 = vmatpush2.msra.mxu0 0.0
    %755 = vmatprep.subr.mxu0 0.0
    %756 = vmatpush2.msra.mxu0 0.0
    %757 = vmatprep.subr.mxu0 0.0
    %758 = vmatpush2.msra.mxu0 0.0
    %759 = vmatprep.subr.mxu0 0.0
    %760 = vmatpush2.msra.mxu0 0.0
    %761 = vmatprep.subr.mxu0 0.0
    %762 = vmatpush2.msra.mxu0 0.0
    %763 = vmatprep.subr.mxu0 0.0
    %764 = vmatpush2.msra.mxu0 0.0
    %765 = vmatprep.subr.mxu0 0.0
    %766 = vmatpush2.msra.mxu0 0.0
    %767 = vmatprep.subr.mxu0 0.0
    %768 = vmatpush2.msra.mxu0 0.0
    %769 = vmatprep.subr.mxu0 0.0
    %770 = vmatpush2.msra.mxu0 0.0
    %771 = vmatprep.mubr.f32.mxu0 0.0
    %772 = vmatmul.mubr.f32.gmra.mxu0 %v684
    %v773 = vpop.f32.mrf.mxu0
    %v774 = vadd.f32 %v681, %v773
    %v775 = vpop.f32.mrf.mxu0
    %776 = vmatprep.mubr.f32.mxu0 0.0
    %777 = vmatmul.mubr.f32.gmra.mxu0 %v687
    %v778 = vpop.f32.mrf.mxu0
    %v779 = vadd.f32 %v681, %v778
    %v780 = vpop.f32.mrf.mxu0
    %781 = vmatprep.mubr.f32.mxu0 0.0
    %782 = vmatmul.mubr.f32.gmra.mxu0 %v690
    %v783 = vpop.f32.mrf.mxu0
    %v784 = vadd.f32 %v681, %v783
    %v785 = vpop.f32.mrf.mxu0
    %786 = vmatprep.mubr.f32.mxu0 0.0
    %787 = vmatmul.mubr.f32.gmra.mxu0 %v693
    %v788 = vpop.f32.mrf.mxu0
    %v789 = vadd.f32 %v681, %v788
    %v790 = vpop.f32.mrf.mxu0
    %791 = vmatprep.mubr.f32.mxu0 0.0
    %792 = vmatmul.mubr.f32.gmra.mxu0 %v696
    %v793 = vpop.f32.mrf.mxu0
    %v794 = vadd.f32 %v681, %v793
    %v795 = vpop.f32.mrf.mxu0
    %796 = vmatprep.mubr.f32.mxu0 0.0
    %797 = vmatmul.mubr.f32.gmra.mxu0 %v699
    %v798 = vpop.f32.mrf.mxu0
    %v799 = vadd.f32 %v681, %v798
    %v800 = vpop.f32.mrf.mxu0
    %801 = vmatprep.mubr.f32.mxu0 0.0
    %802 = vmatmul.mubr.f32.gmra.mxu0 %v702
    %v803 = vpop.f32.mrf.mxu0
    %v804 = vadd.f32 %v681, %v803
    %v805 = vpop.f32.mrf.mxu0
    %806 = vmatprep.mubr.f32.mxu0 0.0
    %807 = vmatmul.mubr.f32.gmra.mxu0 %v705
    %v808 = vpop.f32.mrf.mxu0
    %v809 = vadd.f32 %v681, %v808
    %v810 = vpop.f32.mrf.mxu0
    %811 = vdwg.mxu0
    %v812 = vmax.f32 %v774, 0.0
    %v813 = vmax.f32 %v779, 0.0
    %v814 = vmax.f32 %v784, 0.0
    %v815 = vmax.f32 %v789, 0.0
    %v816 = vmax.f32 %v794, 0.0
    %v817 = vmax.f32 %v799, 0.0
    %v818 = vmax.f32 %v804, 0.0
    %v819 = vmax.f32 %v809, 0.0
    %v820 = vld [vmem:[#allocation5 + $0x28] sm:$0xf]
    %821 = vset.pattern.permute.xlu0 0
    %822 = vperm.xlu0 %821, %v34
    %v823 = vpop.permute.xlu0 %822
    %825 = vset.pattern.permute.xlu0 0
    %826 = vperm.xlu0 %825, %v35
    %v827 = vpop.permute.xlu0 %826
    %829 = vset.pattern.permute.xlu0 0
    %830 = vperm.xlu0 %829, %v36
    %v831 = vpop.permute.xlu0 %830
    %833 = vset.pattern.permute.xlu0 0
    %834 = vperm.xlu0 %833, %v37
    %v835 = vpop.permute.xlu0 %834
    %837 = vset.pattern.permute.xlu0 0
    %838 = vperm.xlu0 %837, %v38
    %v839 = vpop.permute.xlu0 %838
    %841 = vset.pattern.permute.xlu0 0
    %842 = vperm.xlu0 %841, %v39
    %v843 = vpop.permute.xlu0 %842
    %845 = vset.pattern.permute.xlu0 0
    %846 = vperm.xlu0 %845, %v40
    %v847 = vpop.permute.xlu0 %846
    %849 = vset.pattern.permute.xlu0 0
    %850 = vperm.xlu0 %849, %v41
    %v851 = vpop.permute.xlu0 %850
    %v853 = vlaneseq
    %v854 = vshrl.u32 %v853, 7
    %v855 = vsub.s32 0, %v854
    %v856 = vrot.slane %v820, %v855
    %v857 = vmul.f32 %v823, %v856
    %v858 = vmul.f32 %v827, %v856
    %v859 = vmul.f32 %v831, %v856
    %v860 = vmul.f32 %v835, %v856
    %v861 = vmul.f32 %v839, %v856
    %v862 = vmul.f32 %v843, %v856
    %v863 = vmul.f32 %v847, %v856
    %v864 = vmul.f32 %v851, %v856
    %865 = vset.pattern.permute.xlu0 1
    %866 = vperm.xlu0 %865, %v34
    %v867 = vpop.permute.xlu0 %866
    %869 = vset.pattern.permute.xlu0 1
    %870 = vperm.xlu0 %869, %v35
    %v871 = vpop.permute.xlu0 %870
    %873 = vset.pattern.permute.xlu0 1
    %874 = vperm.xlu0 %873, %v36
    %v875 = vpop.permute.xlu0 %874
    %877 = vset.pattern.permute.xlu0 1
    %878 = vperm.xlu0 %877, %v37
    %v879 = vpop.permute.xlu0 %878
    %881 = vset.pattern.permute.xlu0 1
    %882 = vperm.xlu0 %881, %v38
    %v883 = vpop.permute.xlu0 %882
    %885 = vset.pattern.permute.xlu0 1
    %886 = vperm.xlu0 %885, %v39
    %v887 = vpop.permute.xlu0 %886
    %889 = vset.pattern.permute.xlu0 1
    %890 = vperm.xlu0 %889, %v40
    %v891 = vpop.permute.xlu0 %890
    %893 = vset.pattern.permute.xlu0 1
    %894 = vperm.xlu0 %893, %v41
    %v895 = vpop.permute.xlu0 %894
    %v897 = vlaneseq
    %v898 = vshrl.u32 %v897, 7
    %v899 = vsub.s32 1, %v898
    %v900 = vrot.slane %v820, %v899
    %v901 = vmul.f32 %v867, %v900
    %v902 = vmul.f32 %v871, %v900
    %v903 = vmul.f32 %v875, %v900
    %v904 = vmul.f32 %v879, %v900
    %v905 = vmul.f32 %v883, %v900
    %v906 = vmul.f32 %v887, %v900
    %v907 = vmul.f32 %v891, %v900
    %v908 = vmul.f32 %v895, %v900
    %v909 = vadd.f32 %v857, %v901
    %v910 = vadd.f32 %v858, %v902
    %v911 = vadd.f32 %v859, %v903
    %v912 = vadd.f32 %v860, %v904
    %v913 = vadd.f32 %v861, %v905
    %v914 = vadd.f32 %v862, %v906
    %v915 = vadd.f32 %v863, %v907
    %v916 = vadd.f32 %v864, %v908
    %917 = vset.pattern.permute.xlu0 2
    %918 = vperm.xlu0 %917, %v34
    %v919 = vpop.permute.xlu0 %918
    %921 = vset.pattern.permute.xlu0 2
    %922 = vperm.xlu0 %921, %v35
    %v923 = vpop.permute.xlu0 %922
    %925 = vset.pattern.permute.xlu0 2
    %926 = vperm.xlu0 %925, %v36
    %v927 = vpop.permute.xlu0 %926
    %929 = vset.pattern.permute.xlu0 2
    %930 = vperm.xlu0 %929, %v37
    %v931 = vpop.permute.xlu0 %930
    %933 = vset.pattern.permute.xlu0 2
    %934 = vperm.xlu0 %933, %v38
    %v935 = vpop.permute.xlu0 %934
    %937 = vset.pattern.permute.xlu0 2
    %938 = vperm.xlu0 %937, %v39
    %v939 = vpop.permute.xlu0 %938
    %941 = vset.pattern.permute.xlu0 2
    %942 = vperm.xlu0 %941, %v40
    %v943 = vpop.permute.xlu0 %942
    %945 = vset.pattern.permute.xlu0 2
    %946 = vperm.xlu0 %945, %v41
    %v947 = vpop.permute.xlu0 %946
    %v949 = vlaneseq
    %v950 = vshrl.u32 %v949, 7
    %v951 = vsub.s32 2, %v950
    %v952 = vrot.slane %v820, %v951
    %v953 = vmul.f32 %v919, %v952
    %v954 = vmul.f32 %v923, %v952
    %v955 = vmul.f32 %v927, %v952
    %v956 = vmul.f32 %v931, %v952
    %v957 = vmul.f32 %v935, %v952
    %v958 = vmul.f32 %v939, %v952
    %v959 = vmul.f32 %v943, %v952
    %v960 = vmul.f32 %v947, %v952
    %v961 = vadd.f32 %v909, %v953
    %v962 = vadd.f32 %v910, %v954
    %v963 = vadd.f32 %v911, %v955
    %v964 = vadd.f32 %v912, %v956
    %v965 = vadd.f32 %v913, %v957
    %v966 = vadd.f32 %v914, %v958
    %v967 = vadd.f32 %v915, %v959
    %v968 = vadd.f32 %v916, %v960
    %969 = vset.pattern.permute.xlu0 3
    %970 = vperm.xlu0 %969, %v34
    %v971 = vpop.permute.xlu0 %970
    %973 = vset.pattern.permute.xlu0 3
    %974 = vperm.xlu0 %973, %v35
    %v975 = vpop.permute.xlu0 %974
    %977 = vset.pattern.permute.xlu0 3
    %978 = vperm.xlu0 %977, %v36
    %v979 = vpop.permute.xlu0 %978
    %981 = vset.pattern.permute.xlu0 3
    %982 = vperm.xlu0 %981, %v37
    %v983 = vpop.permute.xlu0 %982
    %985 = vset.pattern.permute.xlu0 3
    %986 = vperm.xlu0 %985, %v38
    %v987 = vpop.permute.xlu0 %986
    %989 = vset.pattern.permute.xlu0 3
    %990 = vperm.xlu0 %989, %v39
    %v991 = vpop.permute.xlu0 %990
    %993 = vset.pattern.permute.xlu0 3
    %994 = vperm.xlu0 %993, %v40
    %v995 = vpop.permute.xlu0 %994
    %997 = vset.pattern.permute.xlu0 3
    %998 = vperm.xlu0 %997, %v41
    %v999 = vpop.permute.xlu0 %998
    %v1001 = vlaneseq
    %v1002 = vshrl.u32 %v1001, 7
    %v1003 = vsub.s32 3, %v1002
    %v1004 = vrot.slane %v820, %v1003
    %v1005 = vmul.f32 %v971, %v1004
    %v1006 = vmul.f32 %v975, %v1004
    %v1007 = vmul.f32 %v979, %v1004
    %v1008 = vmul.f32 %v983, %v1004
    %v1009 = vmul.f32 %v987, %v1004
    %v1010 = vmul.f32 %v991, %v1004
    %v1011 = vmul.f32 %v995, %v1004
    %v1012 = vmul.f32 %v999, %v1004
    %v1013 = vadd.f32 %v961, %v1005
    %v1014 = vadd.f32 %v962, %v1006
    %v1015 = vadd.f32 %v963, %v1007
    %v1016 = vadd.f32 %v964, %v1008
    %v1017 = vadd.f32 %v965, %v1009
    %v1018 = vadd.f32 %v966, %v1010
    %v1019 = vadd.f32 %v967, %v1011
    %v1020 = vadd.f32 %v968, %v1012
    %v1021 = vld [vmem:[#allocation5 + $0x30] sm:$0x1]
    %v1022 = vlaneseq
    %v1023 = vshrl.u32 %v1022, 7
    %v1024 = vsub.s32 0, %v1023
    %v1025 = vrot.slane %v1021, %v1024
    %v1026 = vadd.f32 %v1013, %v1025
    %v1027 = vadd.f32 %v1014, %v1025
    %v1028 = vadd.f32 %v1015, %v1025
    %v1029 = vadd.f32 %v1016, %v1025
    %v1030 = vadd.f32 %v1017, %v1025
    %v1031 = vadd.f32 %v1018, %v1025
    %v1032 = vadd.f32 %v1019, %v1025
    %v1033 = vadd.f32 %v1020, %v1025
    %v1034 = vadd.f32 %v812, %v1026
    %v1035 = vadd.f32 %v813, %v1027
    %v1036 = vadd.f32 %v814, %v1028
    %v1037 = vadd.f32 %v815, %v1029
    %v1038 = vadd.f32 %v816, %v1030
    %v1039 = vadd.f32 %v817, %v1031
    %v1040 = vadd.f32 %v818, %v1032
    %v1041 = vadd.f32 %v819, %v1033
    %v1042 = vsel %vm669, %v1034, 0.0
    %v1043 = vsel %vm669, %v1035, 0.0
    %v1044 = vadd.f32 %v1042, %v1043
    %v1045 = vsel %vm669, %v1036, 0.0
    %v1046 = vadd.f32 %v1044, %v1045
    %v1047 = vsel %vm669, %v1037, 0.0
    %v1048 = vadd.f32 %v1046, %v1047
    %v1049 = vsel %vm669, %v1038, 0.0
    %v1050 = vadd.f32 %v1048, %v1049
    %v1051 = vsel %vm669, %v1039, 0.0
    %v1052 = vadd.f32 %v1050, %v1051
    %v1053 = vsel %vm669, %v1040, 0.0
    %v1054 = vadd.f32 %v1052, %v1053
    %v1055 = vsel %vm669, %v1041, 0.0
    %v1056 = vadd.f32 %v1054, %v1055
    %v1057 = vrot.slane %v1056, 4
    %v1058 = vadd.f32 %v1056, %v1057
    %v1059 = vrot.slane %v1058, 2
    %v1060 = vadd.f32 %v1058, %v1059
    %v1061 = vrot.slane %v1060, 1
    %v1062 = vadd.f32 %v1060, %v1061
    %v1063 = vrcp.pop 64.0
    %v1064 = vmul.f32 %v1062, %v1063
    %v1065 = vsub.f32 %v1034, %v1064
    %v1066 = vsub.f32 %v1035, %v1064
    %v1067 = vsub.f32 %v1036, %v1064
    %v1068 = vsub.f32 %v1037, %v1064
    %v1069 = vsub.f32 %v1038, %v1064
    %v1070 = vsub.f32 %v1039, %v1064
    %v1071 = vsub.f32 %v1040, %v1064
    %v1072 = vsub.f32 %v1041, %v1064
    %v1073 = vmul.f32 %v1065, %v1065
    %v1074 = vmul.f32 %v1066, %v1066
    %v1075 = vmul.f32 %v1067, %v1067
    %v1076 = vmul.f32 %v1068, %v1068
    %v1077 = vmul.f32 %v1069, %v1069
    %v1078 = vmul.f32 %v1070, %v1070
    %v1079 = vmul.f32 %v1071, %v1071
    %v1080 = vmul.f32 %v1072, %v1072
    %v1081 = vsel %vm669, %v1073, 0.0
    %v1082 = vsel %vm669, %v1074, 0.0
    %v1083 = vadd.f32 %v1081, %v1082
    %v1084 = vsel %vm669, %v1075, 0.0
    %v1085 = vadd.f32 %v1083, %v1084
    %v1086 = vsel %vm669, %v1076, 0.0
    %v1087 = vadd.f32 %v1085, %v1086
    %v1088 = vsel %vm669, %v1077, 0.0
    %v1089 = vadd.f32 %v1087, %v1088
    %v1090 = vsel %vm669, %v1078, 0.0
    %v1091 = vadd.f32 %v1089, %v1090
    %v1092 = vsel %vm669, %v1079, 0.0
    %v1093 = vadd.f32 %v1091, %v1092
    %v1094 = vsel %vm669, %v1080, 0.0
    %v1095 = vadd.f32 %v1093, %v1094
    %v1096 = vrot.slane %v1095, 4
    %v1097 = vadd.f32 %v1095, %v1096
    %v1098 = vrot.slane %v1097, 2
    %v1099 = vadd.f32 %v1097, %v1098
    %v1100 = vrot.slane %v1099, 1
    %v1101 = vadd.f32 %v1099, %v1100
    %v1102 = vmul.f32 %v1101, %v1063
    %v1103 = vadd.f32 %v1102, 1e-05
    %v1104 = vrsqrt.pop %v1103
    %v1105 = vmul.f32 %v1065, %v1104
    %v1106 = vmul.f32 %v1066, %v1104
    %v1107 = vmul.f32 %v1067, %v1104
    %v1108 = vmul.f32 %v1068, %v1104
    %v1109 = vmul.f32 %v1069, %v1104
    %v1110 = vmul.f32 %v1070, %v1104
    %v1111 = vmul.f32 %v1071, %v1104
    %v1112 = vmul.f32 %v1072, %v1104
    %v1113 = vld [vmem:[#allocation5 + $0x38] sm:$0x1]
    %v1114 = vlaneseq
    %v1115 = vshrl.u32 %v1114, 7
    %v1116 = vsub.s32 0, %v1115
    %v1117 = vrot.slane %v1113, %v1116
    %v1118 = vmul.f32 %v1105, %v1117
    %v1119 = vmul.f32 %v1106, %v1117
    %v1120 = vmul.f32 %v1107, %v1117
    %v1121 = vmul.f32 %v1108, %v1117
    %v1122 = vmul.f32 %v1109, %v1117
    %v1123 = vmul.f32 %v1110, %v1117
    %v1124 = vmul.f32 %v1111, %v1117
    %v1125 = vmul.f32 %v1112, %v1117
    %v1126 = vld [vmem:[#allocation5 + $0x40] sm:$0x1]
    %v1127 = vlaneseq
    %v1128 = vshrl.u32 %v1127, 7
    %v1129 = vsub.s32 0, %v1128
    %v1130 = vrot.slane %v1126, %v1129
    %v1131 = vadd.f32 %v1118, %v1130
    %v1132 = vadd.f32 %v1119, %v1130
    %v1133 = vadd.f32 %v1120, %v1130
    %v1134 = vadd.f32 %v1121, %v1130
    %v1135 = vadd.f32 %v1122, %v1130
    %v1136 = vadd.f32 %v1123, %v1130
    %v1137 = vadd.f32 %v1124, %v1130
    %v1138 = vadd.f32 %v1125, %v1130
    %v1139 = vmax.f32 %v1131, 0.0
    %v1140 = vmax.f32 %v1132, 0.0
    %v1141 = vmax.f32 %v1133, 0.0
    %v1142 = vmax.f32 %v1134, 0.0
    %v1143 = vmax.f32 %v1135, 0.0
    %v1144 = vmax.f32 %v1136, 0.0
    %v1145 = vmax.f32 %v1137, 0.0
    %v1146 = vmax.f32 %v1138, 0.0
    %1147 = vst.msk [vmem:[#allocation2] sm:$0xff] %vm669, %v1139
    %1148 = vst.msk [vmem:[#allocation2 + $0x8] sm:$0xff] %vm669, %v1140
    %1149 = vst.msk [vmem:[#allocation2 + $0x10] sm:$0xff] %vm669, %v1141
    %1150 = vst.msk [vmem:[#allocation2 + $0x18] sm:$0xff] %vm669, %v1142
    %1151 = vst.msk [vmem:[#allocation2 + $0x20] sm:$0xff] %vm669, %v1143
    %1152 = vst.msk [vmem:[#allocation2 + $0x28] sm:$0xff] %vm669, %v1144
    %1153 = vst.msk [vmem:[#allocation2 + $0x30] sm:$0xff] %vm669, %v1145
    %1154 = vst.msk [vmem:[#allocation2 + $0x38] sm:$0xff] %vm669, %v1146
    %v1155 = vld [vmem:[#allocation2] ss:$2 sm:$0xff]
    %s1156 = scalar_lea.vmem [#allocation2], 16
    %v1157 = vld [vmem:[%s1156] ss:$2 sm:$0xff]
    %s1158 = scalar_lea.vmem [#allocation2], 32
    %v1159 = vld [vmem:[%s1158] ss:$2 sm:$0xff]
    %s1160 = scalar_lea.vmem [#allocation2], 48
    %v1161 = vld [vmem:[%s1160] ss:$2 sm:$0xff]
    %s1162 = scalar_lea.vmem [#allocation2], 1
    %v1163 = vld [vmem:[%s1162] ss:$2 sm:$0xff]
    %s1164 = scalar_lea.vmem [#allocation2], 17
    %v1165 = vld [vmem:[%s1164] ss:$2 sm:$0xff]
    %s1166 = scalar_lea.vmem [#allocation2], 33
    %v1167 = vld [vmem:[%s1166] ss:$2 sm:$0xff]
    %s1168 = scalar_lea.vmem [#allocation2], 49
    %v1169 = vld [vmem:[%s1168] ss:$2 sm:$0xff]
    %v1170 = vmax.f32 %v1155, %v1163
    %v1171 = vmax.f32 %v1157, %v1165
    %v1172 = vmax.f32 %v1159, %v1167
    %v1173 = vmax.f32 %v1161, %v1169
    %v1174 = vld [vmem:[#allocation5 + $0xe8] sm:$0xff]
    %v1175 = vld [vmem:[#allocation5 + $0xf0] sm:$0xff]
    %v1176 = vld [vmem:[#allocation5 + $0xf8] sm:$0xff]
    %v1177 = vld [vmem:[#allocation5 + $0x100] sm:$0xff]
    %v1178 = vld [vmem:[#allocation5 + $0x88] sm:$0xff]
    %v1179 = vld [vmem:[#allocation5 + $0x90] sm:$0xff]
    %v1180 = vld [vmem:[#allocation5 + $0x98] sm:$0x1]
    %vm1185 = vcmask 1041408
    %v1186 = vrot.slane %v1170, 6
    %v1187 = vrot.slane %v1171, 6
    %v1188 = vsel %vm1185, %v1186, %v1187
    %v1189 = vrot.slane %v1172, 6
    %v1190 = vsel %vm1185, %v1187, %v1189
    %v1191 = vrot.slane %v1173, 6
    %v1192 = vsel %vm1185, %v1189, %v1191
    %v1197 = vsel %vm1185, 0.0, %v1186
    %1199 = vset.pattern.permute.xlu0 0
    %1200 = vperm.xlu0 %1199, %v1174
    %v1201 = vpop.permute.xlu0 %1200
    %1204 = vset.pattern.permute.xlu0 0
    %1205 = vperm.xlu0 %1204, %v1175
    %v1206 = vpop.permute.xlu0 %1205
    %1209 = vset.pattern.permute.xlu0 0
    %1210 = vperm.xlu0 %1209, %v1176
    %v1211 = vpop.permute.xlu0 %1210
    %1214 = vset.pattern.permute.xlu0 0
    %1215 = vperm.xlu0 %1214, %v1177
    %v1216 = vpop.permute.xlu0 %1215
    %v1218 = vmul.f32 %v1197, %v1201
    %v1219 = vmul.f32 %v1188, %v1206
    %v1220 = vmul.f32 %v1190, %v1211
    %v1221 = vmul.f32 %v1192, %v1216
    %1222 = vrot.lane.b32.xlu0 %v1170, 8
    %v1223 = vpop.permute.xlu0 %1222
    %1224 = vrot.lane.b32.xlu0 %v1171, 8
    %v1225 = vpop.permute.xlu0 %1224
    %1226 = vrot.lane.b32.xlu0 %v1172, 8
    %v1227 = vpop.permute.xlu0 %1226
    %1228 = vrot.lane.b32.xlu0 %v1173, 8
    %v1229 = vpop.permute.xlu0 %1228
    %v1234 = vsel %vm669, %v1218, %v1223
    %v1235 = vsel %vm669, %v1219, %v1225
    %v1236 = vsel %vm669, %v1220, %v1227
    %v1237 = vsel %vm669, %v1221, %v1229
    %v1238 = vlaneseq
    %v1239 = vshrl.u32 %v1238, 7
    %v1240 = vsub.s32 0, %v1239
    %v1241 = vrot.slane %v1180, %v1240
    %v1243 = vsel %vm682, %v1234, 0
    %v1246 = vsel %vm682, %v1235, 0
    %v1249 = vsel %vm682, %v1236, 0
    %v1252 = vsel %vm682, %v1237, 0
    %1254 = vmatprep.subr.mxu0 0.0
    %1255 = vmatpush1.msra.mxu0 0.0
    %1256 = vmatprep.subr.mxu0 0.0
    %1257 = vmatpush1.msra.mxu0 0.0
    %1258 = vmatprep.subr.mxu0 0.0
    %1259 = vmatpush1.msra.mxu0 0.0
    %1260 = vmatprep.subr.mxu0 0.0
    %1261 = vmatpush1.msra.mxu0 0.0
    %1262 = vmatprep.subr.mxu0 0.0
    %1263 = vmatpush1.msra.mxu0 0.0
    %1264 = vmatprep.subr.mxu0 0.0
    %1265 = vmatpush1.msra.mxu0 0.0
    %1266 = vmatprep.subr.mxu0 0.0
    %1267 = vmatpush1.msra.mxu0 0.0
    %1268 = vmatprep.subr.mxu0 0.0
    %1269 = vmatpush1.msra.mxu0 0.0
    %1270 = vmatprep.subr.mxu0 0.0
    %1271 = vmatpush1.msra.mxu0 0.0
    %1272 = vmatprep.subr.mxu0 0.0
    %1273 = vmatpush1.msra.mxu0 0.0
    %1274 = vmatprep.subr.mxu0 0.0
    %1275 = vmatpush1.msra.mxu0 0.0
    %1276 = vmatprep.subr.mxu0 0.0
    %1277 = vmatpush1.msra.mxu0 0.0
    %1278 = vmatprep.subr.mxu0 0.0
    %1279 = vmatpush1.msra.mxu0 0.0
    %1280 = vmatprep.subr.mxu0 0.0
    %1281 = vmatpush1.msra.mxu0 0.0
    %1282 = vmatprep.subr.mxu0 0.0
    %1283 = vmatpush1.msra.mxu0 %v1179
    %1284 = vmatprep.subr.mxu0 0.0
    %1285 = vmatpush1.msra.mxu0 %v1178
    %1286 = vmatprep.subr.mxu0 0.0
    %1287 = vmatpush2.msra.mxu0 0.0
    %1288 = vmatprep.subr.mxu0 0.0
    %1289 = vmatpush2.msra.mxu0 0.0
    %1290 = vmatprep.subr.mxu0 0.0
    %1291 = vmatpush2.msra.mxu0 0.0
    %1292 = vmatprep.subr.mxu0 0.0
    %1293 = vmatpush2.msra.mxu0 0.0
    %1294 = vmatprep.subr.mxu0 0.0
    %1295 = vmatpush2.msra.mxu0 0.0
    %1296 = vmatprep.subr.mxu0 0.0
    %1297 = vmatpush2.msra.mxu0 0.0
    %1298 = vmatprep.subr.mxu0 0.0
    %1299 = vmatpush2.msra.mxu0 0.0
    %1300 = vmatprep.subr.mxu0 0.0
    %1301 = vmatpush2.msra.mxu0 0.0
    %1302 = vmatprep.subr.mxu0 0.0
    %1303 = vmatpush2.msra.mxu0 0.0
    %1304 = vmatprep.subr.mxu0 0.0
    %1305 = vmatpush2.msra.mxu0 0.0
    %1306 = vmatprep.subr.mxu0 0.0
    %1307 = vmatpush2.msra.mxu0 0.0
    %1308 = vmatprep.subr.mxu0 0.0
    %1309 = vmatpush2.msra.mxu0 0.0
    %1310 = vmatprep.subr.mxu0 0.0
    %1311 = vmatpush2.msra.mxu0 0.0
    %1312 = vmatprep.subr.mxu0 0.0
    %1313 = vmatpush2.msra.mxu0 0.0
    %1314 = vmatprep.subr.mxu0 0.0
    %1315 = vmatpush2.msra.mxu0 0.0
    %1316 = vmatprep.subr.mxu0 0.0
    %1317 = vmatpush2.msra.mxu0 0.0
    %1318 = vmatprep.mubr.f32.mxu0 0.0
    %1319 = vmatmul.mubr.f32.gmra.mxu0 %v1243
    %v1320 = vpop.f32.mrf.mxu0
    %v1321 = vadd.f32 %v1241, %v1320
    %v1322 = vpop.f32.mrf.mxu0
    %1323 = vmatprep.mubr.f32.mxu0 0.0
    %1324 = vmatmul.mubr.f32.gmra.mxu0 %v1246
    %v1325 = vpop.f32.mrf.mxu0
    %v1326 = vadd.f32 %v1241, %v1325
    %v1327 = vpop.f32.mrf.mxu0
    %1328 = vmatprep.mubr.f32.mxu0 0.0
    %1329 = vmatmul.mubr.f32.gmra.mxu0 %v1249
    %v1330 = vpop.f32.mrf.mxu0
    %v1331 = vadd.f32 %v1241, %v1330
    %v1332 = vpop.f32.mrf.mxu0
    %1333 = vmatprep.mubr.f32.mxu0 0.0
    %1334 = vmatmul.mubr.f32.gmra.mxu0 %v1252
    %v1335 = vpop.f32.mrf.mxu0
    %v1336 = vadd.f32 %v1241, %v1335
    %v1337 = vpop.f32.mrf.mxu0
    %1338 = vdwg.mxu0
    %v1339 = vmax.f32 %v1321, 0.0
    %v1340 = vmax.f32 %v1326, 0.0
    %v1341 = vmax.f32 %v1331, 0.0
    %v1342 = vmax.f32 %v1336, 0.0
    %v1343 = vld [vmem:[#allocation5 + $0xa0] sm:$0xff]
    %v1344 = vld [vmem:[#allocation5 + $0xa8] sm:$0xff]
    %v1345 = vld [vmem:[#allocation5 + $0xb0] sm:$0xff]
    %v1346 = vld [vmem:[#allocation5 + $0xb8] sm:$0xff]
    %v1347 = vld [vmem:[#allocation5 + $0xc0] sm:$0x1]
    %v1352 = vrot.slane %v1339, 6
    %v1353 = vrot.slane %v1340, 6
    %v1354 = vsel %vm1185, %v1352, %v1353
    %v1355 = vrot.slane %v1341, 6
    %v1356 = vsel %vm1185, %v1353, %v1355
    %v1357 = vrot.slane %v1342, 6
    %v1358 = vsel %vm1185, %v1355, %v1357
    %v1363 = vsel %vm1185, 0.0, %v1352
    %v1364 = vmul.f32 %v1363, %v1201
    %v1365 = vmul.f32 %v1354, %v1206
    %v1366 = vmul.f32 %v1356, %v1211
    %v1367 = vmul.f32 %v1358, %v1216
    %1368 = vrot.lane.b32.xlu0 %v1339, 16
    %v1369 = vpop.permute.xlu0 %1368
    %1370 = vrot.lane.b32.xlu0 %v1340, 16
    %v1371 = vpop.permute.xlu0 %1370
    %1372 = vrot.lane.b32.xlu0 %v1341, 16
    %v1373 = vpop.permute.xlu0 %1372
    %1374 = vrot.lane.b32.xlu0 %v1342, 16
    %v1375 = vpop.permute.xlu0 %1374
    %v1380 = vsel %vm682, %v1364, %v1369
    %v1381 = vsel %vm682, %v1365, %v1371
    %v1382 = vsel %vm682, %v1366, %v1373
    %v1383 = vsel %vm682, %v1367, %v1375
    %v1384 = vlaneseq
    %v1385 = vshrl.u32 %v1384, 7
    %v1386 = vsub.s32 0, %v1385
    %v1387 = vrot.slane %v1347, %v1386
    %vm1388 = vcmask 261120
    %v1390 = vsel %vm1388, %v1380, 0
    %v1393 = vsel %vm1388, %v1381, 0
    %v1396 = vsel %vm1388, %v1382, 0
    %v1399 = vsel %vm1388, %v1383, 0
    %1401 = vmatprep.subr.mxu0 0.0
    %1402 = vmatpush1.msra.mxu0 0.0
    %1403 = vmatprep.subr.mxu0 0.0
    %1404 = vmatpush1.msra.mxu0 0.0
    %1405 = vmatprep.subr.mxu0 0.0
    %1406 = vmatpush1.msra.mxu0 0.0
    %1407 = vmatprep.subr.mxu0 0.0
    %1408 = vmatpush1.msra.mxu0 0.0
    %1409 = vmatprep.subr.mxu0 0.0
    %1410 = vmatpush1.msra.mxu0 0.0
    %1411 = vmatprep.subr.mxu0 0.0
    %1412 = vmatpush1.msra.mxu0 0.0
    %1413 = vmatprep.subr.mxu0 0.0
    %1414 = vmatpush1.msra.mxu0 0.0
    %1415 = vmatprep.subr.mxu0 0.0
    %1416 = vmatpush1.msra.mxu0 0.0
    %1417 = vmatprep.subr.mxu0 0.0
    %1418 = vmatpush1.msra.mxu0 0.0
    %1419 = vmatprep.subr.mxu0 0.0
    %1420 = vmatpush1.msra.mxu0 0.0
    %1421 = vmatprep.subr.mxu0 0.0
    %1422 = vmatpush1.msra.mxu0 0.0
    %1423 = vmatprep.subr.mxu0 0.0
    %1424 = vmatpush1.msra.mxu0 0.0
    %1425 = vmatprep.subr.mxu0 0.0
    %1426 = vmatpush1.msra.mxu0 %v1346
    %1427 = vmatprep.subr.mxu0 0.0
    %1428 = vmatpush1.msra.mxu0 %v1345
    %1429 = vmatprep.subr.mxu0 0.0
    %1430 = vmatpush1.msra.mxu0 %v1344
    %1431 = vmatprep.subr.mxu0 0.0
    %1432 = vmatpush1.msra.mxu0 %v1343
    %1433 = vmatprep.subr.mxu0 0.0
    %1434 = vmatpush2.msra.mxu0 0.0
    %1435 = vmatprep.subr.mxu0 0.0
    %1436 = vmatpush2.msra.mxu0 0.0
    %1437 = vmatprep.subr.mxu0 0.0
    %1438 = vmatpush2.msra.mxu0 0.0
    %1439 = vmatprep.subr.mxu0 0.0
    %1440 = vmatpush2.msra.mxu0 0.0
    %1441 = vmatprep.subr.mxu0 0.0
    %1442 = vmatpush2.msra.mxu0 0.0
    %1443 = vmatprep.subr.mxu0 0.0
    %1444 = vmatpush2.msra.mxu0 0.0
    %1445 = vmatprep.subr.mxu0 0.0
    %1446 = vmatpush2.msra.mxu0 0.0
    %1447 = vmatprep.subr.mxu0 0.0
    %1448 = vmatpush2.msra.mxu0 0.0
    %1449 = vmatprep.subr.mxu0 0.0
    %1450 = vmatpush2.msra.mxu0 0.0
    %1451 = vmatprep.subr.mxu0 0.0
    %1452 = vmatpush2.msra.mxu0 0.0
    %1453 = vmatprep.subr.mxu0 0.0
    %1454 = vmatpush2.msra.mxu0 0.0
    %1455 = vmatprep.subr.mxu0 0.0
    %1456 = vmatpush2.msra.mxu0 0.0
    %1457 = vmatprep.subr.mxu0 0.0
    %1458 = vmatpush2.msra.mxu0 0.0
    %1459 = vmatprep.subr.mxu0 0.0
    %1460 = vmatpush2.msra.mxu0 0.0
    %1461 = vmatprep.subr.mxu0 0.0
    %1462 = vmatpush2.msra.mxu0 0.0
    %1463 = vmatprep.subr.mxu0 0.0
    %1464 = vmatpush2.msra.mxu0 0.0
    %1465 = vmatprep.mubr.f32.mxu0 0.0
    %1466 = vmatmul.mubr.f32.gmra.mxu0 %v1390
    %v1467 = vpop.f32.mrf.mxu0
    %v1468 = vadd.f32 %v1387, %v1467
    %v1469 = vpop.f32.mrf.mxu0
    %1470 = vmatprep.mubr.f32.mxu0 0.0
    %1471 = vmatmul.mubr.f32.gmra.mxu0 %v1393
    %v1472 = vpop.f32.mrf.mxu0
    %v1473 = vadd.f32 %v1387, %v1472
    %v1474 = vpop.f32.mrf.mxu0
    %1475 = vmatprep.mubr.f32.mxu0 0.0
    %1476 = vmatmul.mubr.f32.gmra.mxu0 %v1396
    %v1477 = vpop.f32.mrf.mxu0
    %v1478 = vadd.f32 %v1387, %v1477
    %v1479 = vpop.f32.mrf.mxu0
    %1480 = vmatprep.mubr.f32.mxu0 0.0
    %1481 = vmatmul.mubr.f32.gmra.mxu0 %v1399
    %v1482 = vpop.f32.mrf.mxu0
    %v1483 = vadd.f32 %v1387, %v1482
    %v1484 = vpop.f32.mrf.mxu0
    %1485 = vdwg.mxu0
    %v1486 = vmax.f32 %v1468, 0.0
    %v1487 = vmax.f32 %v1473, 0.0
    %v1488 = vmax.f32 %v1478, 0.0
    %v1489 = vmax.f32 %v1483, 0.0
    %v1490 = vld [vmem:[#allocation5 + $0xc8] sm:$0xff]
    %1491 = vset.pattern.permute.xlu0 0
    %1492 = vperm.xlu0 %1491, %v1170
    %v1493 = vpop.permute.xlu0 %1492
    %1495 = vset.pattern.permute.xlu0 0
    %1496 = vperm.xlu0 %1495, %v1171
    %v1497 = vpop.permute.xlu0 %1496
    %1499 = vset.pattern.permute.xlu0 0
    %1500 = vperm.xlu0 %1499, %v1172
    %v1501 = vpop.permute.xlu0 %1500
    %1503 = vset.pattern.permute.xlu0 0
    %1504 = vperm.xlu0 %1503, %v1173
    %v1505 = vpop.permute.xlu0 %1504
    %v1507 = vlaneseq
    %v1508 = vshrl.u32 %v1507, 7
    %v1509 = vsub.s32 0, %v1508
    %v1510 = vrot.slane %v1490, %v1509
    %v1511 = vmul.f32 %v1493, %v1510
    %v1512 = vmul.f32 %v1497, %v1510
    %v1513 = vmul.f32 %v1501, %v1510
    %v1514 = vmul.f32 %v1505, %v1510
    %1515 = vset.pattern.permute.xlu0 1
    %1516 = vperm.xlu0 %1515, %v1170
    %v1517 = vpop.permute.xlu0 %1516
    %1519 = vset.pattern.permute.xlu0 1
    %1520 = vperm.xlu0 %1519, %v1171
    %v1521 = vpop.permute.xlu0 %1520
    %1523 = vset.pattern.permute.xlu0 1
    %1524 = vperm.xlu0 %1523, %v1172
    %v1525 = vpop.permute.xlu0 %1524
    %1527 = vset.pattern.permute.xlu0 1
    %1528 = vperm.xlu0 %1527, %v1173
    %v1529 = vpop.permute.xlu0 %1528
    %v1531 = vlaneseq
    %v1532 = vshrl.u32 %v1531, 7
    %v1533 = vsub.s32 1, %v1532
    %v1534 = vrot.slane %v1490, %v1533
    %v1535 = vmul.f32 %v1517, %v1534
    %v1536 = vmul.f32 %v1521, %v1534
    %v1537 = vmul.f32 %v1525, %v1534
    %v1538 = vmul.f32 %v1529, %v1534
    %v1539 = vadd.f32 %v1511, %v1535
    %v1540 = vadd.f32 %v1512, %v1536
    %v1541 = vadd.f32 %v1513, %v1537
    %v1542 = vadd.f32 %v1514, %v1538
    %1543 = vset.pattern.permute.xlu0 2
    %1544 = vperm.xlu0 %1543, %v1170
    %v1545 = vpop.permute.xlu0 %1544
    %1547 = vset.pattern.permute.xlu0 2
    %1548 = vperm.xlu0 %1547, %v1171
    %v1549 = vpop.permute.xlu0 %1548
    %1551 = vset.pattern.permute.xlu0 2
    %1552 = vperm.xlu0 %1551, %v1172
    %v1553 = vpop.permute.xlu0 %1552
    %1555 = vset.pattern.permute.xlu0 2
    %1556 = vperm.xlu0 %1555, %v1173
    %v1557 = vpop.permute.xlu0 %1556
    %v1559 = vlaneseq
    %v1560 = vshrl.u32 %v1559, 7
    %v1561 = vsub.s32 2, %v1560
    %v1562 = vrot.slane %v1490, %v1561
    %v1563 = vmul.f32 %v1545, %v1562
    %v1564 = vmul.f32 %v1549, %v1562
    %v1565 = vmul.f32 %v1553, %v1562
    %v1566 = vmul.f32 %v1557, %v1562
    %v1567 = vadd.f32 %v1539, %v1563
    %v1568 = vadd.f32 %v1540, %v1564
    %v1569 = vadd.f32 %v1541, %v1565
    %v1570 = vadd.f32 %v1542, %v1566
    %1571 = vset.pattern.permute.xlu0 3
    %1572 = vperm.xlu0 %1571, %v1170
    %v1573 = vpop.permute.xlu0 %1572
    %1575 = vset.pattern.permute.xlu0 3
    %1576 = vperm.xlu0 %1575, %v1171
    %v1577 = vpop.permute.xlu0 %1576
    %1579 = vset.pattern.permute.xlu0 3
    %1580 = vperm.xlu0 %1579, %v1172
    %v1581 = vpop.permute.xlu0 %1580
    %1583 = vset.pattern.permute.xlu0 3
    %1584 = vperm.xlu0 %1583, %v1173
    %v1585 = vpop.permute.xlu0 %1584
    %v1587 = vlaneseq
    %v1588 = vshrl.u32 %v1587, 7
    %v1589 = vsub.s32 3, %v1588
    %v1590 = vrot.slane %v1490, %v1589
    %v1591 = vmul.f32 %v1573, %v1590
    %v1592 = vmul.f32 %v1577, %v1590
    %v1593 = vmul.f32 %v1581, %v1590
    %v1594 = vmul.f32 %v1585, %v1590
    %v1595 = vadd.f32 %v1567, %v1591
    %v1596 = vadd.f32 %v1568, %v1592
    %v1597 = vadd.f32 %v1569, %v1593
    %v1598 = vadd.f32 %v1570, %v1594
    %1599 = vset.pattern.permute.xlu0 4
    %1600 = vperm.xlu0 %1599, %v1170
    %v1601 = vpop.permute.xlu0 %1600
    %1603 = vset.pattern.permute.xlu0 4
    %1604 = vperm.xlu0 %1603, %v1171
    %v1605 = vpop.permute.xlu0 %1604
    %1607 = vset.pattern.permute.xlu0 4
    %1608 = vperm.xlu0 %1607, %v1172
    %v1609 = vpop.permute.xlu0 %1608
    %1611 = vset.pattern.permute.xlu0 4
    %1612 = vperm.xlu0 %1611, %v1173
    %v1613 = vpop.permute.xlu0 %1612
    %v1615 = vlaneseq
    %v1616 = vshrl.u32 %v1615, 7
    %v1617 = vsub.s32 4, %v1616
    %v1618 = vrot.slane %v1490, %v1617
    %v1619 = vmul.f32 %v1601, %v1618
    %v1620 = vmul.f32 %v1605, %v1618
    %v1621 = vmul.f32 %v1609, %v1618
    %v1622 = vmul.f32 %v1613, %v1618
    %v1623 = vadd.f32 %v1595, %v1619
    %v1624 = vadd.f32 %v1596, %v1620
    %v1625 = vadd.f32 %v1597, %v1621
    %v1626 = vadd.f32 %v1598, %v1622
    %1627 = vset.pattern.permute.xlu0 5
    %1628 = vperm.xlu0 %1627, %v1170
    %v1629 = vpop.permute.xlu0 %1628
    %1631 = vset.pattern.permute.xlu0 5
    %1632 = vperm.xlu0 %1631, %v1171
    %v1633 = vpop.permute.xlu0 %1632
    %1635 = vset.pattern.permute.xlu0 5
    %1636 = vperm.xlu0 %1635, %v1172
    %v1637 = vpop.permute.xlu0 %1636
    %1639 = vset.pattern.permute.xlu0 5
    %1640 = vperm.xlu0 %1639, %v1173
    %v1641 = vpop.permute.xlu0 %1640
    %v1643 = vlaneseq
    %v1644 = vshrl.u32 %v1643, 7
    %v1645 = vsub.s32 5, %v1644
    %v1646 = vrot.slane %v1490, %v1645
    %v1647 = vmul.f32 %v1629, %v1646
    %v1648 = vmul.f32 %v1633, %v1646
    %v1649 = vmul.f32 %v1637, %v1646
    %v1650 = vmul.f32 %v1641, %v1646
    %v1651 = vadd.f32 %v1623, %v1647
    %v1652 = vadd.f32 %v1624, %v1648
    %v1653 = vadd.f32 %v1625, %v1649
    %v1654 = vadd.f32 %v1626, %v1650
    %1655 = vset.pattern.permute.xlu0 6
    %1656 = vperm.xlu0 %1655, %v1170
    %v1657 = vpop.permute.xlu0 %1656
    %1659 = vset.pattern.permute.xlu0 6
    %1660 = vperm.xlu0 %1659, %v1171
    %v1661 = vpop.permute.xlu0 %1660
    %1663 = vset.pattern.permute.xlu0 6
    %1664 = vperm.xlu0 %1663, %v1172
    %v1665 = vpop.permute.xlu0 %1664
    %1667 = vset.pattern.permute.xlu0 6
    %1668 = vperm.xlu0 %1667, %v1173
    %v1669 = vpop.permute.xlu0 %1668
    %v1671 = vlaneseq
    %v1672 = vshrl.u32 %v1671, 7
    %v1673 = vsub.s32 6, %v1672
    %v1674 = vrot.slane %v1490, %v1673
    %v1675 = vmul.f32 %v1657, %v1674
    %v1676 = vmul.f32 %v1661, %v1674
    %v1677 = vmul.f32 %v1665, %v1674
    %v1678 = vmul.f32 %v1669, %v1674
    %v1679 = vadd.f32 %v1651, %v1675
    %v1680 = vadd.f32 %v1652, %v1676
    %v1681 = vadd.f32 %v1653, %v1677
    %v1682 = vadd.f32 %v1654, %v1678
    %1683 = vset.pattern.permute.xlu0 7
    %1684 = vperm.xlu0 %1683, %v1170
    %v1685 = vpop.permute.xlu0 %1684
    %1687 = vset.pattern.permute.xlu0 7
    %1688 = vperm.xlu0 %1687, %v1171
    %v1689 = vpop.permute.xlu0 %1688
    %1691 = vset.pattern.permute.xlu0 7
    %1692 = vperm.xlu0 %1691, %v1172
    %v1693 = vpop.permute.xlu0 %1692
    %1695 = vset.pattern.permute.xlu0 7
    %1696 = vperm.xlu0 %1695, %v1173
    %v1697 = vpop.permute.xlu0 %1696
    %v1699 = vlaneseq
    %v1700 = vshrl.u32 %v1699, 7
    %v1701 = vsub.s32 7, %v1700
    %v1702 = vrot.slane %v1490, %v1701
    %v1703 = vmul.f32 %v1685, %v1702
    %v1704 = vmul.f32 %v1689, %v1702
    %v1705 = vmul.f32 %v1693, %v1702
    %v1706 = vmul.f32 %v1697, %v1702
    %v1707 = vadd.f32 %v1679, %v1703
    %v1708 = vadd.f32 %v1680, %v1704
    %v1709 = vadd.f32 %v1681, %v1705
    %v1710 = vadd.f32 %v1682, %v1706
    %v1711 = vld [vmem:[#allocation5 + $0xd0] sm:$0x1]
    %v1712 = vlaneseq
    %v1713 = vshrl.u32 %v1712, 7
    %v1714 = vsub.s32 0, %v1713
    %v1715 = vrot.slane %v1711, %v1714
    %v1716 = vadd.f32 %v1707, %v1715
    %v1717 = vadd.f32 %v1708, %v1715
    %v1718 = vadd.f32 %v1709, %v1715
    %v1719 = vadd.f32 %v1710, %v1715
    %v1720 = vadd.f32 %v1486, %v1716
    %v1721 = vadd.f32 %v1487, %v1717
    %v1722 = vadd.f32 %v1488, %v1718
    %v1723 = vadd.f32 %v1489, %v1719
    %v1724 = vsel %vm682, %v1720, 0.0
    %v1725 = vsel %vm682, %v1721, 0.0
    %v1726 = vadd.f32 %v1724, %v1725
    %v1727 = vsel %vm682, %v1722, 0.0
    %v1728 = vadd.f32 %v1726, %v1727
    %v1729 = vsel %vm682, %v1723, 0.0
    %v1730 = vadd.f32 %v1728, %v1729
    %v1731 = vrot.slane %v1730, 4
    %v1732 = vadd.f32 %v1730, %v1731
    %v1733 = vrot.slane %v1732, 2
    %v1734 = vadd.f32 %v1732, %v1733
    %v1735 = vrot.slane %v1734, 1
    %v1736 = vadd.f32 %v1734, %v1735
    %v1737 = vrcp.pop 32.0
    %v1738 = vmul.f32 %v1736, %v1737
    %v1739 = vsub.f32 %v1720, %v1738
    %v1740 = vsub.f32 %v1721, %v1738
    %v1741 = vsub.f32 %v1722, %v1738
    %v1742 = vsub.f32 %v1723, %v1738
    %v1743 = vmul.f32 %v1739, %v1739
    %v1744 = vmul.f32 %v1740, %v1740
    %v1745 = vmul.f32 %v1741, %v1741
    %v1746 = vmul.f32 %v1742, %v1742
    %v1747 = vsel %vm682, %v1743, 0.0
    %v1748 = vsel %vm682, %v1744, 0.0
    %v1749 = vadd.f32 %v1747, %v1748
    %v1750 = vsel %vm682, %v1745, 0.0
    %v1751 = vadd.f32 %v1749, %v1750
    %v1752 = vsel %vm682, %v1746, 0.0
    %v1753 = vadd.f32 %v1751, %v1752
    %v1754 = vrot.slane %v1753, 4
    %v1755 = vadd.f32 %v1753, %v1754
    %v1756 = vrot.slane %v1755, 2
    %v1757 = vadd.f32 %v1755, %v1756
    %v1758 = vrot.slane %v1757, 1
    %v1759 = vadd.f32 %v1757, %v1758
    %v1760 = vmul.f32 %v1759, %v1737
    %v1761 = vadd.f32 %v1760, 1e-05
    %v1762 = vrsqrt.pop %v1761
    %v1763 = vmul.f32 %v1739, %v1762
    %v1764 = vmul.f32 %v1740, %v1762
    %v1765 = vmul.f32 %v1741, %v1762
    %v1766 = vmul.f32 %v1742, %v1762
    %v1767 = vld [vmem:[#allocation5 + $0xd8] sm:$0x1]
    %v1768 = vlaneseq
    %v1769 = vshrl.u32 %v1768, 7
    %v1770 = vsub.s32 0, %v1769
    %v1771 = vrot.slane %v1767, %v1770
    %v1772 = vmul.f32 %v1763, %v1771
    %v1773 = vmul.f32 %v1764, %v1771
    %v1774 = vmul.f32 %v1765, %v1771
    %v1775 = vmul.f32 %v1766, %v1771
    %v1776 = vld [vmem:[#allocation5 + $0xe0] sm:$0x1]
    %v1777 = vlaneseq
    %v1778 = vshrl.u32 %v1777, 7
    %v1779 = vsub.s32 0, %v1778
    %v1780 = vrot.slane %v1776, %v1779
    %v1781 = vadd.f32 %v1772, %v1780
    %v1782 = vadd.f32 %v1773, %v1780
    %v1783 = vadd.f32 %v1774, %v1780
    %v1784 = vadd.f32 %v1775, %v1780
    %v1785 = vmax.f32 %v1781, 0.0
    %v1786 = vmax.f32 %v1782, 0.0
    %v1787 = vmax.f32 %v1783, 0.0
    %v1788 = vmax.f32 %v1784, 0.0
    %1789 = vst.msk [vmem:[#allocation3] sm:$0xff] %vm682, %v1785
    %1790 = vst.msk [vmem:[#allocation3 + $0x8] sm:$0xff] %vm682, %v1786
    %1791 = vst.msk [vmem:[#allocation3 + $0x10] sm:$0xff] %vm682, %v1787
    %1792 = vst.msk [vmem:[#allocation3 + $0x18] sm:$0xff] %vm682, %v1788
    %v1793 = vld [vmem:[#allocation3] ss:$2 sm:$0xff]
    %s1794 = scalar_lea.vmem [#allocation3], 16
    %v1795 = vld [vmem:[%s1794] ss:$2 sm:$0xff]
    %s1796 = scalar_lea.vmem [#allocation3], 1
    %v1797 = vld [vmem:[%s1796] ss:$2 sm:$0xff]
    %s1798 = scalar_lea.vmem [#allocation3], 17
    %v1799 = vld [vmem:[%s1798] ss:$2 sm:$0xff]
    %v1800 = vmax.f32 %v1793, %v1797
    %v1801 = vmax.f32 %v1795, %v1799
    %v1802 = vld [vmem:[#allocation5 + $0x168] sm:$0xff]
    %v1803 = vld [vmem:[#allocation5 + $0x170] sm:$0xff]
    %v1804 = vld [vmem:[#allocation5 + $0x108] sm:$0xff]
    %v1805 = vld [vmem:[#allocation5 + $0x110] sm:$0xff]
    %v1806 = vld [vmem:[#allocation5 + $0x118] sm:$0xff]
    %v1807 = vld [vmem:[#allocation5 + $0x120] sm:$0xff]
    %v1808 = vld [vmem:[#allocation5 + $0x128] sm:$0x1]
    %vm1811 = vcmask 1043456
    %v1812 = vrot.slane %v1800, 4
    %v1813 = vrot.slane %v1801, 4
    %v1814 = vsel %vm1811, %v1812, %v1813
    %v1817 = vsel %vm1811, 0.0, %v1812
    %1819 = vset.pattern.permute.xlu0 0
    %1820 = vperm.xlu0 %1819, %v1802
    %v1821 = vpop.permute.xlu0 %1820
    %1824 = vset.pattern.permute.xlu0 0
    %1825 = vperm.xlu0 %1824, %v1803
    %v1826 = vpop.permute.xlu0 %1825
    %v1828 = vmul.f32 %v1817, %v1821
    %v1829 = vmul.f32 %v1814, %v1826
    %1830 = vrot.lane.b32.xlu0 %v1800, 16
    %v1831 = vpop.permute.xlu0 %1830
    %1832 = vrot.lane.b32.xlu0 %v1801, 16
    %v1833 = vpop.permute.xlu0 %1832
    %v1836 = vsel %vm682, %v1828, %v1831
    %v1837 = vsel %vm682, %v1829, %v1833
    %v1838 = vlaneseq
    %v1839 = vshrl.u32 %v1838, 7
    %v1840 = vsub.s32 0, %v1839
    %v1841 = vrot.slane %v1808, %v1840
    %v1843 = vsel %vm1388, %v1836, 0
    %v1846 = vsel %vm1388, %v1837, 0
    %1848 = vmatprep.subr.mxu0 0.0
    %1849 = vmatpush1.msra.mxu0 0.0
    %1850 = vmatprep.subr.mxu0 0.0
    %1851 = vmatpush1.msra.mxu0 0.0
    %1852 = vmatprep.subr.mxu0 0.0
    %1853 = vmatpush1.msra.mxu0 0.0
    %1854 = vmatprep.subr.mxu0 0.0
    %1855 = vmatpush1.msra.mxu0 0.0
    %1856 = vmatprep.subr.mxu0 0.0
    %1857 = vmatpush1.msra.mxu0 0.0
    %1858 = vmatprep.subr.mxu0 0.0
    %1859 = vmatpush1.msra.mxu0 0.0
    %1860 = vmatprep.subr.mxu0 0.0
    %1861 = vmatpush1.msra.mxu0 0.0
    %1862 = vmatprep.subr.mxu0 0.0
    %1863 = vmatpush1.msra.mxu0 0.0
    %1864 = vmatprep.subr.mxu0 0.0
    %1865 = vmatpush1.msra.mxu0 0.0
    %1866 = vmatprep.subr.mxu0 0.0
    %1867 = vmatpush1.msra.mxu0 0.0
    %1868 = vmatprep.subr.mxu0 0.0
    %1869 = vmatpush1.msra.mxu0 0.0
    %1870 = vmatprep.subr.mxu0 0.0
    %1871 = vmatpush1.msra.mxu0 0.0
    %1872 = vmatprep.subr.mxu0 0.0
    %1873 = vmatpush1.msra.mxu0 %v1807
    %1874 = vmatprep.subr.mxu0 0.0
    %1875 = vmatpush1.msra.mxu0 %v1806
    %1876 = vmatprep.subr.mxu0 0.0
    %1877 = vmatpush1.msra.mxu0 %v1805
    %1878 = vmatprep.subr.mxu0 0.0
    %1879 = vmatpush1.msra.mxu0 %v1804
    %1880 = vmatprep.subr.mxu0 0.0
    %1881 = vmatpush2.msra.mxu0 0.0
    %1882 = vmatprep.subr.mxu0 0.0
    %1883 = vmatpush2.msra.mxu0 0.0
    %1884 = vmatprep.subr.mxu0 0.0
    %1885 = vmatpush2.msra.mxu0 0.0
    %1886 = vmatprep.subr.mxu0 0.0
    %1887 = vmatpush2.msra.mxu0 0.0
    %1888 = vmatprep.subr.mxu0 0.0
    %1889 = vmatpush2.msra.mxu0 0.0
    %1890 = vmatprep.subr.mxu0 0.0
    %1891 = vmatpush2.msra.mxu0 0.0
    %1892 = vmatprep.subr.mxu0 0.0
    %1893 = vmatpush2.msra.mxu0 0.0
    %1894 = vmatprep.subr.mxu0 0.0
    %1895 = vmatpush2.msra.mxu0 0.0
    %1896 = vmatprep.subr.mxu0 0.0
    %1897 = vmatpush2.msra.mxu0 0.0
    %1898 = vmatprep.subr.mxu0 0.0
    %1899 = vmatpush2.msra.mxu0 0.0
    %1900 = vmatprep.subr.mxu0 0.0
    %1901 = vmatpush2.msra.mxu0 0.0
    %1902 = vmatprep.subr.mxu0 0.0
    %1903 = vmatpush2.msra.mxu0 0.0
    %1904 = vmatprep.subr.mxu0 0.0
    %1905 = vmatpush2.msra.mxu0 0.0
    %1906 = vmatprep.subr.mxu0 0.0
    %1907 = vmatpush2.msra.mxu0 0.0
    %1908 = vmatprep.subr.mxu0 0.0
    %1909 = vmatpush2.msra.mxu0 0.0
    %1910 = vmatprep.subr.mxu0 0.0
    %1911 = vmatpush2.msra.mxu0 0.0
    %1912 = vmatprep.mubr.f32.mxu0 0.0
    %1913 = vmatmul.mubr.f32.gmra.mxu0 %v1843
    %v1914 = vpop.f32.mrf.mxu0
    %v1915 = vadd.f32 %v1841, %v1914
    %v1916 = vpop.f32.mrf.mxu0
    %1917 = vmatprep.mubr.f32.mxu0 0.0
    %1918 = vmatmul.mubr.f32.gmra.mxu0 %v1846
    %v1919 = vpop.f32.mrf.mxu0
    %v1920 = vadd.f32 %v1841, %v1919
    %v1921 = vpop.f32.mrf.mxu0
    %1922 = vdwg.mxu0
    %v1923 = vmax.f32 %v1915, 0.0
    %v1924 = vmax.f32 %v1920, 0.0
    %v1925 = vld [vmem:[#allocation5 + $0x130] sm:$0xff]
    %v1926 = vld [vmem:[#allocation5 + $0x138] sm:$0xff]
    %v1927 = vld [vmem:[#allocation5 + $0x140] sm:$0xff]
    %v1928 = vld [vmem:[#allocation5 + $0x148] sm:$0xff]
    %v1929 = vld [vmem:[#allocation5 + $0x150] sm:$0x1]
    %v1932 = vrot.slane %v1923, 4
    %v1933 = vrot.slane %v1924, 4
    %v1934 = vsel %vm1811, %v1932, %v1933
    %v1937 = vsel %vm1811, 0.0, %v1932
    %v1938 = vmul.f32 %v1937, %v1821
    %v1939 = vmul.f32 %v1934, %v1826
    %1940 = vrot.lane.b32.xlu0 %v1923, 16
    %v1941 = vpop.permute.xlu0 %1940
    %1942 = vrot.lane.b32.xlu0 %v1924, 16
    %v1943 = vpop.permute.xlu0 %1942
    %v1946 = vsel %vm682, %v1938, %v1941
    %v1947 = vsel %vm682, %v1939, %v1943
    %v1948 = vlaneseq
    %v1949 = vshrl.u32 %v1948, 7
    %v1950 = vsub.s32 0, %v1949
    %v1951 = vrot.slane %v1929, %v1950
    %v1953 = vsel %vm1388, %v1946, 0
    %v1956 = vsel %vm1388, %v1947, 0
    %1958 = vmatprep.subr.mxu0 0.0
    %1959 = vmatpush1.msra.mxu0 0.0
    %1960 = vmatprep.subr.mxu0 0.0
    %1961 = vmatpush1.msra.mxu0 0.0
    %1962 = vmatprep.subr.mxu0 0.0
    %1963 = vmatpush1.msra.mxu0 0.0
    %1964 = vmatprep.subr.mxu0 0.0
    %1965 = vmatpush1.msra.mxu0 0.0
    %1966 = vmatprep.subr.mxu0 0.0
    %1967 = vmatpush1.msra.mxu0 0.0
    %1968 = vmatprep.subr.mxu0 0.0
    %1969 = vmatpush1.msra.mxu0 0.0
    %1970 = vmatprep.subr.mxu0 0.0
    %1971 = vmatpush1.msra.mxu0 0.0
    %1972 = vmatprep.subr.mxu0 0.0
    %1973 = vmatpush1.msra.mxu0 0.0
    %1974 = vmatprep.subr.mxu0 0.0
    %1975 = vmatpush1.msra.mxu0 0.0
    %1976 = vmatprep.subr.mxu0 0.0
    %1977 = vmatpush1.msra.mxu0 0.0
    %1978 = vmatprep.subr.mxu0 0.0
    %1979 = vmatpush1.msra.mxu0 0.0
    %1980 = vmatprep.subr.mxu0 0.0
    %1981 = vmatpush1.msra.mxu0 0.0
    %1982 = vmatprep.subr.mxu0 0.0
    %1983 = vmatpush1.msra.mxu0 %v1928
    %1984 = vmatprep.subr.mxu0 0.0
    %1985 = vmatpush1.msra.mxu0 %v1927
    %1986 = vmatprep.subr.mxu0 0.0
    %1987 = vmatpush1.msra.mxu0 %v1926
    %1988 = vmatprep.subr.mxu0 0.0
    %1989 = vmatpush1.msra.mxu0 %v1925
    %1990 = vmatprep.subr.mxu0 0.0
    %1991 = vmatpush2.msra.mxu0 0.0
    %1992 = vmatprep.subr.mxu0 0.0
    %1993 = vmatpush2.msra.mxu0 0.0
    %1994 = vmatprep.subr.mxu0 0.0
    %1995 = vmatpush2.msra.mxu0 0.0
    %1996 = vmatprep.subr.mxu0 0.0
    %1997 = vmatpush2.msra.mxu0 0.0
    %1998 = vmatprep.subr.mxu0 0.0
    %1999 = vmatpush2.msra.mxu0 0.0
    %2000 = vmatprep.subr.mxu0 0.0
    %2001 = vmatpush2.msra.mxu0 0.0
    %2002 = vmatprep.subr.mxu0 0.0
    %2003 = vmatpush2.msra.mxu0 0.0
    %2004 = vmatprep.subr.mxu0 0.0
    %2005 = vmatpush2.msra.mxu0 0.0
    %2006 = vmatprep.subr.mxu0 0.0
    %2007 = vmatpush2.msra.mxu0 0.0
    %2008 = vmatprep.subr.mxu0 0.0
    %2009 = vmatpush2.msra.mxu0 0.0
    %2010 = vmatprep.subr.mxu0 0.0
    %2011 = vmatpush2.msra.mxu0 0.0
    %2012 = vmatprep.subr.mxu0 0.0
    %2013 = vmatpush2.msra.mxu0 0.0
    %2014 = vmatprep.subr.mxu0 0.0
    %2015 = vmatpush2.msra.mxu0 0.0
    %2016 = vmatprep.subr.mxu0 0.0
    %2017 = vmatpush2.msra.mxu0 0.0
    %2018 = vmatprep.subr.mxu0 0.0
    %2019 = vmatpush2.msra.mxu0 0.0
    %2020 = vmatprep.subr.mxu0 0.0
    %2021 = vmatpush2.msra.mxu0 0.0
    %2022 = vmatprep.mubr.f32.mxu0 0.0
    %2023 = vmatmul.mubr.f32.gmra.mxu0 %v1953
    %v2024 = vpop.f32.mrf.mxu0
    %v2025 = vadd.f32 %v1951, %v2024
    %v2026 = vpop.f32.mrf.mxu0
    %2027 = vmatprep.mubr.f32.mxu0 0.0
    %2028 = vmatmul.mubr.f32.gmra.mxu0 %v1956
    %v2029 = vpop.f32.mrf.mxu0
    %v2030 = vadd.f32 %v1951, %v2029
    %v2031 = vpop.f32.mrf.mxu0
    %2032 = vdwg.mxu0
    %v2033 = vmax.f32 %v2025, 0.0
    %v2034 = vmax.f32 %v2030, 0.0
    %v2035 = vadd.f32 %v2033, %v1800
    %v2036 = vadd.f32 %v2034, %v1801
    %v2037 = vsel %vm682, %v2035, 0.0
    %v2038 = vsel %vm682, %v2036, 0.0
    %v2039 = vadd.f32 %v2037, %v2038
    %v2040 = vrot.slane %v2039, 4
    %v2041 = vadd.f32 %v2039, %v2040
    %v2042 = vrot.slane %v2041, 2
    %v2043 = vadd.f32 %v2041, %v2042
    %v2044 = vrot.slane %v2043, 1
    %v2045 = vadd.f32 %v2043, %v2044
    %v2046 = vrcp.pop 16.0
    %v2047 = vmul.f32 %v2045, %v2046
    %v2048 = vsub.f32 %v2035, %v2047
    %v2049 = vsub.f32 %v2036, %v2047
    %v2050 = vmul.f32 %v2048, %v2048
    %v2051 = vmul.f32 %v2049, %v2049
    %v2052 = vsel %vm682, %v2050, 0.0
    %v2053 = vsel %vm682, %v2051, 0.0
    %v2054 = vadd.f32 %v2052, %v2053
    %v2055 = vrot.slane %v2054, 4
    %v2056 = vadd.f32 %v2054, %v2055
    %v2057 = vrot.slane %v2056, 2
    %v2058 = vadd.f32 %v2056, %v2057
    %v2059 = vrot.slane %v2058, 1
    %v2060 = vadd.f32 %v2058, %v2059
    %v2061 = vmul.f32 %v2060, %v2046
    %v2062 = vadd.f32 %v2061, 1e-05
    %v2063 = vrsqrt.pop %v2062
    %v2064 = vmul.f32 %v2048, %v2063
    %v2065 = vmul.f32 %v2049, %v2063
    %v2066 = vld [vmem:[#allocation5 + $0x158] sm:$0x1]
    %v2067 = vlaneseq
    %v2068 = vshrl.u32 %v2067, 7
    %v2069 = vsub.s32 0, %v2068
    %v2070 = vrot.slane %v2066, %v2069
    %v2071 = vmul.f32 %v2064, %v2070
    %v2072 = vmul.f32 %v2065, %v2070
    %v2073 = vld [vmem:[#allocation5 + $0x160] sm:$0x1]
    %v2074 = vlaneseq
    %v2075 = vshrl.u32 %v2074, 7
    %v2076 = vsub.s32 0, %v2075
    %v2077 = vrot.slane %v2073, %v2076
    %v2078 = vadd.f32 %v2071, %v2077
    %v2079 = vadd.f32 %v2072, %v2077
    %v2080 = vmax.f32 %v2078, 0.0
    %v2081 = vmax.f32 %v2079, 0.0
    %2082 = vst.msk [vmem:[#allocation4] sm:$0xff] %vm682, %v2080
    %2083 = vst.msk [vmem:[#allocation4 + $0x8] sm:$0xff] %vm682, %v2081
    %v2084 = vld [vmem:[#allocation4] ss:$2 sm:$0xff]
    %s2085 = scalar_lea.vmem [#allocation4], 1
    %v2086 = vld [vmem:[%s2085] ss:$2 sm:$0xff]
    %v2087 = vmax.f32 %v2084, %v2086
    %v2088 = vld [vmem:[#allocation5 + $0x178] sm:$0xff]
    %v2089 = vld [vmem:[#allocation5 + $0x180] sm:$0xff]
    %v2090 = vld [vmem:[#allocation5 + $0x188] sm:$0xff]
    %v2091 = vld [vmem:[#allocation5 + $0x190] sm:$0xff]
    %v2092 = vld [vmem:[#allocation5 + $0x198] sm:$0xff]
    %v2093 = vld [vmem:[#allocation5 + $0x1a0] sm:$0xff]
    %v2094 = vld [vmem:[#allocation5 + $0x1a8] sm:$0x1]
    %v2095 = vld [vmem:[#allocation5 + $0x1b0] sm:$0xff]
    %v2096 = vld [vmem:[#allocation5 + $0x1b8] sm:$0xff]
    %v2097 = vld [vmem:[#allocation5 + $0x1c0] sm:$0xff]
    %v2098 = vld [vmem:[#allocation5 + $0x1c8] sm:$0xff]
    %v2099 = vld [vmem:[#allocation5 + $0x1d0] sm:$0xff]
    %v2100 = vld [vmem:[#allocation5 + $0x1d8] sm:$0xff]
    %v2101 = vld [vmem:[#allocation5 + $0x1e0] sm:$0xff]
    %v2102 = vld [vmem:[#allocation5 + $0x1e8] sm:$0xff]
    %v2103 = vld [vmem:[#allocation5 + $0x1f0] sm:$0x1]
    %v2104 = vld [vmem:[%s1] sm:$0x3]
    %v2105 = vld [vmem:[%s2] sm:$0x3]
    %s2106 = scalar_lea.vmem %s1, 2
    %v2107 = vld [vmem:[%s2106] sm:$0x3]
    %s2108 = scalar_lea.vmem %s2, 2
    %v2109 = vld [vmem:[%s2108] sm:$0x3]
    %v2111 = vrot.slane %v2087, 3
    %v2113 = vsel %vm60, %v2087, %v2111
    %2115 = vrot.lane.b32.xlu0 %v2104, 16
    %v2116 = vpop.permute.xlu0 %2115
    %v2118 = vsel %vm682, %v2113, %v2116
    %v2119 = vlaneseq
    %v2120 = vshrl.u32 %v2119, 7
    %v2121 = vsub.s32 0, %v2120
    %v2122 = vrot.slane %v2094, %v2121
    %vm2123 = vcmask 392192
    %v2125 = vsel %vm2123, %v2118, 0
    %2127 = vmatprep.subr.mxu0 0.0
    %2128 = vmatpush1.msra.mxu0 0.0
    %2129 = vmatprep.subr.mxu0 0.0
    %2130 = vmatpush1.msra.mxu0 0.0
    %2131 = vmatprep.subr.mxu0 0.0
    %2132 = vmatpush1.msra.mxu0 0.0
    %2133 = vmatprep.subr.mxu0 0.0
    %2134 = vmatpush1.msra.mxu0 0.0
    %2135 = vmatprep.subr.mxu0 0.0
    %2136 = vmatpush1.msra.mxu0 0.0
    %2137 = vmatprep.subr.mxu0 0.0
    %2138 = vmatpush1.msra.mxu0 0.0
    %2139 = vmatprep.subr.mxu0 0.0
    %2140 = vmatpush1.msra.mxu0 0.0
    %2141 = vmatprep.subr.mxu0 0.0
    %2142 = vmatpush1.msra.mxu0 0.0
    %2143 = vmatprep.subr.mxu0 0.0
    %2144 = vmatpush1.msra.mxu0 0.0
    %2145 = vmatprep.subr.mxu0 0.0
    %2146 = vmatpush1.msra.mxu0 0.0
    %2147 = vmatprep.subr.mxu0 0.0
    %2148 = vmatpush1.msra.mxu0 %v2093
    %2149 = vmatprep.subr.mxu0 0.0
    %2150 = vmatpush1.msra.mxu0 %v2092
    %2151 = vmatprep.subr.mxu0 0.0
    %2152 = vmatpush1.msra.mxu0 %v2091
    %2153 = vmatprep.subr.mxu0 0.0
    %2154 = vmatpush1.msra.mxu0 %v2090
    %2155 = vmatprep.subr.mxu0 0.0
    %2156 = vmatpush1.msra.mxu0 %v2089
    %2157 = vmatprep.subr.mxu0 0.0
    %2158 = vmatpush1.msra.mxu0 %v2088
    %2159 = vmatprep.subr.mxu0 0.0
    %2160 = vmatpush2.msra.mxu0 0.0
    %2161 = vmatprep.subr.mxu0 0.0
    %2162 = vmatpush2.msra.mxu0 0.0
    %2163 = vmatprep.subr.mxu0 0.0
    %2164 = vmatpush2.msra.mxu0 0.0
    %2165 = vmatprep.subr.mxu0 0.0
    %2166 = vmatpush2.msra.mxu0 0.0
    %2167 = vmatprep.subr.mxu0 0.0
    %2168 = vmatpush2.msra.mxu0 0.0
    %2169 = vmatprep.subr.mxu0 0.0
    %2170 = vmatpush2.msra.mxu0 0.0
    %2171 = vmatprep.subr.mxu0 0.0
    %2172 = vmatpush2.msra.mxu0 0.0
    %2173 = vmatprep.subr.mxu0 0.0
    %2174 = vmatpush2.msra.mxu0 0.0
    %2175 = vmatprep.subr.mxu0 0.0
    %2176 = vmatpush2.msra.mxu0 0.0
    %2177 = vmatprep.subr.mxu0 0.0
    %2178 = vmatpush2.msra.mxu0 0.0
    %2179 = vmatprep.subr.mxu0 0.0
    %2180 = vmatpush2.msra.mxu0 0.0
    %2181 = vmatprep.subr.mxu0 0.0
    %2182 = vmatpush2.msra.mxu0 0.0
    %2183 = vmatprep.subr.mxu0 0.0
    %2184 = vmatpush2.msra.mxu0 0.0
    %2185 = vmatprep.subr.mxu0 0.0
    %2186 = vmatpush2.msra.mxu0 0.0
    %2187 = vmatprep.subr.mxu0 0.0
    %2188 = vmatpush2.msra.mxu0 0.0
    %2189 = vmatprep.subr.mxu0 0.0
    %2190 = vmatpush2.msra.mxu0 0.0
    %2191 = vmatprep.mubr.f32.mxu0 0.0
    %2192 = vmatmul.mubr.f32.gmra.mxu0 %v2125
    %v2193 = vpop.f32.mrf.mxu0
    %v2194 = vadd.f32 %v2122, %v2193
    %v2195 = vpop.f32.mrf.mxu0
    %2196 = vdwg.mxu0
    %v2197 = vxor.u32 %v2194, 2147483648
    %v2198 = vmul.f32 %v2197, 1.442695
    %v2199 = vpow.pop %v2198
    %v2200 = vadd.f32 %v2199, 1.0
    %v2201 = vrcp.pop %v2200
    %v2202 = vmul.f32 1.0, %v2201
    %v2203 = vtanh.pop %v2194
    %2205 = vrot.lane.b32.xlu0 %v2105, 32
    %v2206 = vpop.permute.xlu0 %2205
    %v2208 = vmul.f32 %v2202, %v2206
    %2210 = vrot.lane.b32.xlu0 %v2203, 64
    %v2211 = vpop.permute.xlu0 %2210
    %v2213 = vmul.f32 %v2202, %v2211
    %2215 = vrot.lane.b32.xlu0 %v2213, 32
    %v2216 = vpop.permute.xlu0 %2215
    %v2218 = vadd.f32 %v2208, %v2216
    %v2219 = vtanh.pop %v2218
    %2221 = vrot.lane.b32.xlu0 %v2219, 64
    %v2222 = vpop.permute.xlu0 %2221
    %v2224 = vmul.f32 %v2202, %v2222
    %2226 = vrot.lane.b32.xlu0 %v2224, 32
    %v2227 = vpop.permute.xlu0 %2226
    %2230 = vrot.lane.b32.xlu0 %v2107, 32
    %v2231 = vpop.permute.xlu0 %2230
    %v2233 = vsel %vm1388, %v2227, %v2231
    %v2234 = vlaneseq
    %v2235 = vshrl.u32 %v2234, 7
    %v2236 = vsub.s32 0, %v2235
    %v2237 = vrot.slane %v2103, %v2236
    %vm2238 = vcmask 523264
    %v2240 = vsel %vm2238, %v2233, 0
    %2242 = vmatprep.subr.mxu0 0.0
    %2243 = vmatpush1.msra.mxu0 0.0
    %2244 = vmatprep.subr.mxu0 0.0
    %2245 = vmatpush1.msra.mxu0 0.0
    %2246 = vmatprep.subr.mxu0 0.0
    %2247 = vmatpush1.msra.mxu0 0.0
    %2248 = vmatprep.subr.mxu0 0.0
    %2249 = vmatpush1.msra.mxu0 0.0
    %2250 = vmatprep.subr.mxu0 0.0
    %2251 = vmatpush1.msra.mxu0 0.0
    %2252 = vmatprep.subr.mxu0 0.0
    %2253 = vmatpush1.msra.mxu0 0.0
    %2254 = vmatprep.subr.mxu0 0.0
    %2255 = vmatpush1.msra.mxu0 0.0
    %2256 = vmatprep.subr.mxu0 0.0
    %2257 = vmatpush1.msra.mxu0 0.0
    %2258 = vmatprep.subr.mxu0 0.0
    %2259 = vmatpush1.msra.mxu0 %v2102
    %2260 = vmatprep.subr.mxu0 0.0
    %2261 = vmatpush1.msra.mxu0 %v2101
    %2262 = vmatprep.subr.mxu0 0.0
    %2263 = vmatpush1.msra.mxu0 %v2100
    %2264 = vmatprep.subr.mxu0 0.0
    %2265 = vmatpush1.msra.mxu0 %v2099
    %2266 = vmatprep.subr.mxu0 0.0
    %2267 = vmatpush1.msra.mxu0 %v2098
    %2268 = vmatprep.subr.mxu0 0.0
    %2269 = vmatpush1.msra.mxu0 %v2097
    %2270 = vmatprep.subr.mxu0 0.0
    %2271 = vmatpush1.msra.mxu0 %v2096
    %2272 = vmatprep.subr.mxu0 0.0
    %2273 = vmatpush1.msra.mxu0 %v2095
    %2274 = vmatprep.subr.mxu0 0.0
    %2275 = vmatpush2.msra.mxu0 0.0
    %2276 = vmatprep.subr.mxu0 0.0
    %2277 = vmatpush2.msra.mxu0 0.0
    %2278 = vmatprep.subr.mxu0 0.0
    %2279 = vmatpush2.msra.mxu0 0.0
    %2280 = vmatprep.subr.mxu0 0.0
    %2281 = vmatpush2.msra.mxu0 0.0
    %2282 = vmatprep.subr.mxu0 0.0
    %2283 = vmatpush2.msra.mxu0 0.0
    %2284 = vmatprep.subr.mxu0 0.0
    %2285 = vmatpush2.msra.mxu0 0.0
    %2286 = vmatprep.subr.mxu0 0.0
    %2287 = vmatpush2.msra.mxu0 0.0
    %2288 = vmatprep.subr.mxu0 0.0
    %2289 = vmatpush2.msra.mxu0 0.0
    %2290 = vmatprep.subr.mxu0 0.0
    %2291 = vmatpush2.msra.mxu0 0.0
    %2292 = vmatprep.subr.mxu0 0.0
    %2293 = vmatpush2.msra.mxu0 0.0
    %2294 = vmatprep.subr.mxu0 0.0
    %2295 = vmatpush2.msra.mxu0 0.0
    %2296 = vmatprep.subr.mxu0 0.0
    %2297 = vmatpush2.msra.mxu0 0.0
    %2298 = vmatprep.subr.mxu0 0.0
    %2299 = vmatpush2.msra.mxu0 0.0
    %2300 = vmatprep.subr.mxu0 0.0
    %2301 = vmatpush2.msra.mxu0 0.0
    %2302 = vmatprep.subr.mxu0 0.0
    %2303 = vmatpush2.msra.mxu0 0.0
    %2304 = vmatprep.subr.mxu0 0.0
    %2305 = vmatpush2.msra.mxu0 0.0
    %2306 = vmatprep.mubr.f32.mxu0 0.0
    %2307 = vmatmul.mubr.f32.gmra.mxu0 %v2240
    %v2308 = vpop.f32.mrf.mxu0
    %v2309 = vadd.f32 %v2237, %v2308
    %v2310 = vpop.f32.mrf.mxu0
    %2311 = vdwg.mxu0
    %v2312 = vxor.u32 %v2309, 2147483648
    %v2313 = vmul.f32 %v2312, 1.442695
    %v2314 = vpow.pop %v2313
    %v2315 = vadd.f32 %v2314, 1.0
    %v2316 = vrcp.pop %v2315
    %v2317 = vmul.f32 1.0, %v2316
    %v2318 = vtanh.pop %v2309
    %2320 = vrot.lane.b32.xlu0 %v2109, 32
    %v2321 = vpop.permute.xlu0 %2320
    %v2323 = vmul.f32 %v2317, %v2321
    %2325 = vrot.lane.b32.xlu0 %v2318, 64
    %v2326 = vpop.permute.xlu0 %2325
    %v2328 = vmul.f32 %v2317, %v2326
    %2330 = vrot.lane.b32.xlu0 %v2328, 32
    %v2331 = vpop.permute.xlu0 %2330
    %v2333 = vadd.f32 %v2323, %v2331
    %v2334 = vtanh.pop %v2333
    %2336 = vrot.lane.b32.xlu0 %v2334, 64
    %v2337 = vpop.permute.xlu0 %2336
    %v2339 = vmul.f32 %v2317, %v2337
    %v2340 = vrot.slane %v2087, 1
    %v2342 = vrot.slane %v2087, 4
    %v2344 = vsel %vm60, %v2340, %v2342
    %2345 = vrot.lane.b32.xlu0 %v2224, 48
    %v2346 = vpop.permute.xlu0 %2345
    %v2348 = vsel %vm682, %v2344, %v2346
    %v2350 = vsel %vm2123, %v2348, 0
    %2352 = vmatprep.subr.mxu0 0.0
    %2353 = vmatpush1.msra.mxu0 0.0
    %2354 = vmatprep.subr.mxu0 0.0
    %2355 = vmatpush1.msra.mxu0 0.0
    %2356 = vmatprep.subr.mxu0 0.0
    %2357 = vmatpush1.msra.mxu0 0.0
    %2358 = vmatprep.subr.mxu0 0.0
    %2359 = vmatpush1.msra.mxu0 0.0
    %2360 = vmatprep.subr.mxu0 0.0
    %2361 = vmatpush1.msra.mxu0 0.0
    %2362 = vmatprep.subr.mxu0 0.0
    %2363 = vmatpush1.msra.mxu0 0.0
    %2364 = vmatprep.subr.mxu0 0.0
    %2365 = vmatpush1.msra.mxu0 0.0
    %2366 = vmatprep.subr.mxu0 0.0
    %2367 = vmatpush1.msra.mxu0 0.0
    %2368 = vmatprep.subr.mxu0 0.0
    %2369 = vmatpush1.msra.mxu0 0.0
    %2370 = vmatprep.subr.mxu0 0.0
    %2371 = vmatpush1.msra.mxu0 0.0
    %2372 = vmatprep.subr.mxu0 0.0
    %2373 = vmatpush1.msra.mxu0 %v2093
    %2374 = vmatprep.subr.mxu0 0.0
    %2375 = vmatpush1.msra.mxu0 %v2092
    %2376 = vmatprep.subr.mxu0 0.0
    %2377 = vmatpush1.msra.mxu0 %v2091
    %2378 = vmatprep.subr.mxu0 0.0
    %2379 = vmatpush1.msra.mxu0 %v2090
    %2380 = vmatprep.subr.mxu0 0.0
    %2381 = vmatpush1.msra.mxu0 %v2089
    %2382 = vmatprep.subr.mxu0 0.0
    %2383 = vmatpush1.msra.mxu0 %v2088
    %2384 = vmatprep.subr.mxu0 0.0
    %2385 = vmatpush2.msra.mxu0 0.0
    %2386 = vmatprep.subr.mxu0 0.0
    %2387 = vmatpush2.msra.mxu0 0.0
    %2388 = vmatprep.subr.mxu0 0.0
    %2389 = vmatpush2.msra.mxu0 0.0
    %2390 = vmatprep.subr.mxu0 0.0
    %2391 = vmatpush2.msra.mxu0 0.0
    %2392 = vmatprep.subr.mxu0 0.0
    %2393 = vmatpush2.msra.mxu0 0.0
    %2394 = vmatprep.subr.mxu0 0.0
    %2395 = vmatpush2.msra.mxu0 0.0
    %2396 = vmatprep.subr.mxu0 0.0
    %2397 = vmatpush2.msra.mxu0 0.0
    %2398 = vmatprep.subr.mxu0 0.0
    %2399 = vmatpush2.msra.mxu0 0.0
    %2400 = vmatprep.subr.mxu0 0.0
    %2401 = vmatpush2.msra.mxu0 0.0
    %2402 = vmatprep.subr.mxu0 0.0
    %2403 = vmatpush2.msra.mxu0 0.0
    %2404 = vmatprep.subr.mxu0 0.0
    %2405 = vmatpush2.msra.mxu0 0.0
    %2406 = vmatprep.subr.mxu0 0.0
    %2407 = vmatpush2.msra.mxu0 0.0
    %2408 = vmatprep.subr.mxu0 0.0
    %2409 = vmatpush2.msra.mxu0 0.0
    %2410 = vmatprep.subr.mxu0 0.0
    %2411 = vmatpush2.msra.mxu0 0.0
    %2412 = vmatprep.subr.mxu0 0.0
    %2413 = vmatpush2.msra.mxu0 0.0
    %2414 = vmatprep.subr.mxu0 0.0
    %2415 = vmatpush2.msra.mxu0 0.0
    %2416 = vmatprep.mubr.f32.mxu0 0.0
    %2417 = vmatmul.mubr.f32.gmra.mxu0 %v2350
    %v2418 = vpop.f32.mrf.mxu0
    %v2419 = vadd.f32 %v2122, %v2418
    %v2420 = vpop.f32.mrf.mxu0
    %2421 = vdwg.mxu0
    %v2422 = vxor.u32 %v2419, 2147483648
    %v2423 = vmul.f32 %v2422, 1.442695
    %v2424 = vpow.pop %v2423
    %v2425 = vadd.f32 %v2424, 1.0
    %v2426 = vrcp.pop %v2425
    %v2427 = vmul.f32 1.0, %v2426
    %v2428 = vtanh.pop %v2419
    %v2429 = vmul.f32 %v2427, %v2218
    %2431 = vrot.lane.b32.xlu0 %v2428, 64
    %v2432 = vpop.permute.xlu0 %2431
    %v2434 = vmul.f32 %v2427, %v2432
    %2436 = vrot.lane.b32.xlu0 %v2434, 32
    %v2437 = vpop.permute.xlu0 %2436
    %v2439 = vadd.f32 %v2429, %v2437
    %v2440 = vtanh.pop %v2439
    %2442 = vrot.lane.b32.xlu0 %v2440, 64
    %v2443 = vpop.permute.xlu0 %2442
    %v2445 = vmul.f32 %v2427, %v2443
    %2447 = vrot.lane.b32.xlu0 %v2445, 32
    %v2448 = vpop.permute.xlu0 %2447
    %2451 = vrot.lane.b32.xlu0 %v2339, 64
    %v2452 = vpop.permute.xlu0 %2451
    %v2454 = vsel %vm1388, %v2448, %v2452
    %v2456 = vsel %vm2238, %v2454, 0
    %2458 = vmatprep.subr.mxu0 0.0
    %2459 = vmatpush1.msra.mxu0 0.0
    %2460 = vmatprep.subr.mxu0 0.0
    %2461 = vmatpush1.msra.mxu0 0.0
    %2462 = vmatprep.subr.mxu0 0.0
    %2463 = vmatpush1.msra.mxu0 0.0
    %2464 = vmatprep.subr.mxu0 0.0
    %2465 = vmatpush1.msra.mxu0 0.0
    %2466 = vmatprep.subr.mxu0 0.0
    %2467 = vmatpush1.msra.mxu0 0.0
    %2468 = vmatprep.subr.mxu0 0.0
    %2469 = vmatpush1.msra.mxu0 0.0
    %2470 = vmatprep.subr.mxu0 0.0
    %2471 = vmatpush1.msra.mxu0 0.0
    %2472 = vmatprep.subr.mxu0 0.0
    %2473 = vmatpush1.msra.mxu0 0.0
    %2474 = vmatprep.subr.mxu0 0.0
    %2475 = vmatpush1.msra.mxu0 %v2102
    %2476 = vmatprep.subr.mxu0 0.0
    %2477 = vmatpush1.msra.mxu0 %v2101
    %2478 = vmatprep.subr.mxu0 0.0
    %2479 = vmatpush1.msra.mxu0 %v2100
    %2480 = vmatprep.subr.mxu0 0.0
    %2481 = vmatpush1.msra.mxu0 %v2099
    %2482 = vmatprep.subr.mxu0 0.0
    %2483 = vmatpush1.msra.mxu0 %v2098
    %2484 = vmatprep.subr.mxu0 0.0
    %2485 = vmatpush1.msra.mxu0 %v2097
    %2486 = vmatprep.subr.mxu0 0.0
    %2487 = vmatpush1.msra.mxu0 %v2096
    %2488 = vmatprep.subr.mxu0 0.0
    %2489 = vmatpush1.msra.mxu0 %v2095
    %2490 = vmatprep.subr.mxu0 0.0
    %2491 = vmatpush2.msra.mxu0 0.0
    %2492 = vmatprep.subr.mxu0 0.0
    %2493 = vmatpush2.msra.mxu0 0.0
    %2494 = vmatprep.subr.mxu0 0.0
    %2495 = vmatpush2.msra.mxu0 0.0
    %2496 = vmatprep.subr.mxu0 0.0
    %2497 = vmatpush2.msra.mxu0 0.0
    %2498 = vmatprep.subr.mxu0 0.0
    %2499 = vmatpush2.msra.mxu0 0.0
    %2500 = vmatprep.subr.mxu0 0.0
    %2501 = vmatpush2.msra.mxu0 0.0
    %2502 = vmatprep.subr.mxu0 0.0
    %2503 = vmatpush2.msra.mxu0 0.0
    %2504 = vmatprep.subr.mxu0 0.0
    %2505 = vmatpush2.msra.mxu0 0.0
    %2506 = vmatprep.subr.mxu0 0.0
    %2507 = vmatpush2.msra.mxu0 0.0
    %2508 = vmatprep.subr.mxu0 0.0
    %2509 = vmatpush2.msra.mxu0 0.0
    %2510 = vmatprep.subr.mxu0 0.0
    %2511 = vmatpush2.msra.mxu0 0.0
    %2512 = vmatprep.subr.mxu0 0.0
    %2513 = vmatpush2.msra.mxu0 0.0
    %2514 = vmatprep.subr.mxu0 0.0
    %2515 = vmatpush2.msra.mxu0 0.0
    %2516 = vmatprep.subr.mxu0 0.0
    %2517 = vmatpush2.msra.mxu0 0.0
    %2518 = vmatprep.subr.mxu0 0.0
    %2519 = vmatpush2.msra.mxu0 0.0
    %2520 = vmatprep.subr.mxu0 0.0
    %2521 = vmatpush2.msra.mxu0 0.0
    %2522 = vmatprep.mubr.f32.mxu0 0.0
    %2523 = vmatmul.mubr.f32.gmra.mxu0 %v2456
    %v2524 = vpop.f32.mrf.mxu0
    %v2525 = vadd.f32 %v2237, %v2524
    %v2526 = vpop.f32.mrf.mxu0
    %2527 = vdwg.mxu0
    %v2528 = vxor.u32 %v2525, 2147483648
    %v2529 = vmul.f32 %v2528, 1.442695
    %v2530 = vpow.pop %v2529
    %v2531 = vadd.f32 %v2530, 1.0
    %v2532 = vrcp.pop %v2531
    %v2533 = vmul.f32 1.0, %v2532
    %v2534 = vtanh.pop %v2525
    %v2535 = vmul.f32 %v2533, %v2333
    %2537 = vrot.lane.b32.xlu0 %v2534, 64
    %v2538 = vpop.permute.xlu0 %2537
    %v2540 = vmul.f32 %v2533, %v2538
    %2542 = vrot.lane.b32.xlu0 %v2540, 32
    %v2543 = vpop.permute.xlu0 %2542
    %v2545 = vadd.f32 %v2535, %v2543
    %v2546 = vtanh.pop %v2545
    %2548 = vrot.lane.b32.xlu0 %v2546, 64
    %v2549 = vpop.permute.xlu0 %2548
    %v2551 = vmul.f32 %v2533, %v2549
    %v2552 = vrot.slane %v2087, 2
    %v2554 = vrot.slane %v2087, 5
    %v2556 = vsel %vm60, %v2552, %v2554
    %2557 = vrot.lane.b32.xlu0 %v2445, 48
    %v2558 = vpop.permute.xlu0 %2557
    %v2560 = vsel %vm682, %v2556, %v2558
    %v2562 = vsel %vm2123, %v2560, 0
    %2564 = vmatprep.subr.mxu0 0.0
    %2565 = vmatpush1.msra.mxu0 0.0
    %2566 = vmatprep.subr.mxu0 0.0
    %2567 = vmatpush1.msra.mxu0 0.0
    %2568 = vmatprep.subr.mxu0 0.0
    %2569 = vmatpush1.msra.mxu0 0.0
    %2570 = vmatprep.subr.mxu0 0.0
    %2571 = vmatpush1.msra.mxu0 0.0
    %2572 = vmatprep.subr.mxu0 0.0
    %2573 = vmatpush1.msra.mxu0 0.0
    %2574 = vmatprep.subr.mxu0 0.0
    %2575 = vmatpush1.msra.mxu0 0.0
    %2576 = vmatprep.subr.mxu0 0.0
    %2577 = vmatpush1.msra.mxu0 0.0
    %2578 = vmatprep.subr.mxu0 0.0
    %2579 = vmatpush1.msra.mxu0 0.0
    %2580 = vmatprep.subr.mxu0 0.0
    %2581 = vmatpush1.msra.mxu0 0.0
    %2582 = vmatprep.subr.mxu0 0.0
    %2583 = vmatpush1.msra.mxu0 0.0
    %2584 = vmatprep.subr.mxu0 0.0
    %2585 = vmatpush1.msra.mxu0 %v2093
    %2586 = vmatprep.subr.mxu0 0.0
    %2587 = vmatpush1.msra.mxu0 %v2092
    %2588 = vmatprep.subr.mxu0 0.0
    %2589 = vmatpush1.msra.mxu0 %v2091
    %2590 = vmatprep.subr.mxu0 0.0
    %2591 = vmatpush1.msra.mxu0 %v2090
    %2592 = vmatprep.subr.mxu0 0.0
    %2593 = vmatpush1.msra.mxu0 %v2089
    %2594 = vmatprep.subr.mxu0 0.0
    %2595 = vmatpush1.msra.mxu0 %v2088
    %2596 = vmatprep.subr.mxu0 0.0
    %2597 = vmatpush2.msra.mxu0 0.0
    %2598 = vmatprep.subr.mxu0 0.0
    %2599 = vmatpush2.msra.mxu0 0.0
    %2600 = vmatprep.subr.mxu0 0.0
    %2601 = vmatpush2.msra.mxu0 0.0
    %2602 = vmatprep.subr.mxu0 0.0
    %2603 = vmatpush2.msra.mxu0 0.0
    %2604 = vmatprep.subr.mxu0 0.0
    %2605 = vmatpush2.msra.mxu0 0.0
    %2606 = vmatprep.subr.mxu0 0.0
    %2607 = vmatpush2.msra.mxu0 0.0
    %2608 = vmatprep.subr.mxu0 0.0
    %2609 = vmatpush2.msra.mxu0 0.0
    %2610 = vmatprep.subr.mxu0 0.0
    %2611 = vmatpush2.msra.mxu0 0.0
    %2612 = vmatprep.subr.mxu0 0.0
    %2613 = vmatpush2.msra.mxu0 0.0
    %2614 = vmatprep.subr.mxu0 0.0
    %2615 = vmatpush2.msra.mxu0 0.0
    %2616 = vmatprep.subr.mxu0 0.0
    %2617 = vmatpush2.msra.mxu0 0.0
    %2618 = vmatprep.subr.mxu0 0.0
    %2619 = vmatpush2.msra.mxu0 0.0
    %2620 = vmatprep.subr.mxu0 0.0
    %2621 = vmatpush2.msra.mxu0 0.0
    %2622 = vmatprep.subr.mxu0 0.0
    %2623 = vmatpush2.msra.mxu0 0.0
    %2624 = vmatprep.subr.mxu0 0.0
    %2625 = vmatpush2.msra.mxu0 0.0
    %2626 = vmatprep.subr.mxu0 0.0
    %2627 = vmatpush2.msra.mxu0 0.0
    %2628 = vmatprep.mubr.f32.mxu0 0.0
    %2629 = vmatmul.mubr.f32.gmra.mxu0 %v2562
    %v2630 = vpop.f32.mrf.mxu0
    %v2631 = vadd.f32 %v2122, %v2630
    %v2632 = vpop.f32.mrf.mxu0
    %2633 = vdwg.mxu0
    %v2634 = vxor.u32 %v2631, 2147483648
    %v2635 = vmul.f32 %v2634, 1.442695
    %v2636 = vpow.pop %v2635
    %v2637 = vadd.f32 %v2636, 1.0
    %v2638 = vrcp.pop %v2637
    %v2639 = vmul.f32 1.0, %v2638
    %v2640 = vtanh.pop %v2631
    %v2641 = vmul.f32 %v2639, %v2439
    %2643 = vrot.lane.b32.xlu0 %v2640, 64
    %v2644 = vpop.permute.xlu0 %2643
    %v2646 = vmul.f32 %v2639, %v2644
    %2648 = vrot.lane.b32.xlu0 %v2646, 32
    %v2649 = vpop.permute.xlu0 %2648
    %v2651 = vadd.f32 %v2641, %v2649
    %v2652 = vtanh.pop %v2651
    %2654 = vrot.lane.b32.xlu0 %v2652, 64
    %v2655 = vpop.permute.xlu0 %2654
    %v2657 = vmul.f32 %v2639, %v2655
    %2659 = vrot.lane.b32.xlu0 %v2657, 32
    %v2660 = vpop.permute.xlu0 %2659
    %2663 = vrot.lane.b32.xlu0 %v2551, 64
    %v2664 = vpop.permute.xlu0 %2663
    %v2666 = vsel %vm1388, %v2660, %v2664
    %v2668 = vsel %vm2238, %v2666, 0
    %2670 = vmatprep.subr.mxu0 0.0
    %2671 = vmatpush1.msra.mxu0 0.0
    %2672 = vmatprep.subr.mxu0 0.0
    %2673 = vmatpush1.msra.mxu0 0.0
    %2674 = vmatprep.subr.mxu0 0.0
    %2675 = vmatpush1.msra.mxu0 0.0
    %2676 = vmatprep.subr.mxu0 0.0
    %2677 = vmatpush1.msra.mxu0 0.0
    %2678 = vmatprep.subr.mxu0 0.0
    %2679 = vmatpush1.msra.mxu0 0.0
    %2680 = vmatprep.subr.mxu0 0.0
    %2681 = vmatpush1.msra.mxu0 0.0
    %2682 = vmatprep.subr.mxu0 0.0
    %2683 = vmatpush1.msra.mxu0 0.0
    %2684 = vmatprep.subr.mxu0 0.0
    %2685 = vmatpush1.msra.mxu0 0.0
    %2686 = vmatprep.subr.mxu0 0.0
    %2687 = vmatpush1.msra.mxu0 %v2102
    %2688 = vmatprep.subr.mxu0 0.0
    %2689 = vmatpush1.msra.mxu0 %v2101
    %2690 = vmatprep.subr.mxu0 0.0
    %2691 = vmatpush1.msra.mxu0 %v2100
    %2692 = vmatprep.subr.mxu0 0.0
    %2693 = vmatpush1.msra.mxu0 %v2099
    %2694 = vmatprep.subr.mxu0 0.0
    %2695 = vmatpush1.msra.mxu0 %v2098
    %2696 = vmatprep.subr.mxu0 0.0
    %2697 = vmatpush1.msra.mxu0 %v2097
    %2698 = vmatprep.subr.mxu0 0.0
    %2699 = vmatpush1.msra.mxu0 %v2096
    %2700 = vmatprep.subr.mxu0 0.0
    %2701 = vmatpush1.msra.mxu0 %v2095
    %2702 = vmatprep.subr.mxu0 0.0
    %2703 = vmatpush2.msra.mxu0 0.0
    %2704 = vmatprep.subr.mxu0 0.0
    %2705 = vmatpush2.msra.mxu0 0.0
    %2706 = vmatprep.subr.mxu0 0.0
    %2707 = vmatpush2.msra.mxu0 0.0
    %2708 = vmatprep.subr.mxu0 0.0
    %2709 = vmatpush2.msra.mxu0 0.0
    %2710 = vmatprep.subr.mxu0 0.0
    %2711 = vmatpush2.msra.mxu0 0.0
    %2712 = vmatprep.subr.mxu0 0.0
    %2713 = vmatpush2.msra.mxu0 0.0
    %2714 = vmatprep.subr.mxu0 0.0
    %2715 = vmatpush2.msra.mxu0 0.0
    %2716 = vmatprep.subr.mxu0 0.0
    %2717 = vmatpush2.msra.mxu0 0.0
    %2718 = vmatprep.subr.mxu0 0.0
    %2719 = vmatpush2.msra.mxu0 0.0
    %2720 = vmatprep.subr.mxu0 0.0
    %2721 = vmatpush2.msra.mxu0 0.0
    %2722 = vmatprep.subr.mxu0 0.0
    %2723 = vmatpush2.msra.mxu0 0.0
    %2724 = vmatprep.subr.mxu0 0.0
    %2725 = vmatpush2.msra.mxu0 0.0
    %2726 = vmatprep.subr.mxu0 0.0
    %2727 = vmatpush2.msra.mxu0 0.0
    %2728 = vmatprep.subr.mxu0 0.0
    %2729 = vmatpush2.msra.mxu0 0.0
    %2730 = vmatprep.subr.mxu0 0.0
    %2731 = vmatpush2.msra.mxu0 0.0
    %2732 = vmatprep.subr.mxu0 0.0
    %2733 = vmatpush2.msra.mxu0 0.0
    %2734 = vmatprep.mubr.f32.mxu0 0.0
    %2735 = vmatmul.mubr.f32.gmra.mxu0 %v2668
    %v2736 = vpop.f32.mrf.mxu0
    %v2737 = vadd.f32 %v2237, %v2736
    %v2738 = vpop.f32.mrf.mxu0
    %2739 = vdwg.mxu0
    %v2740 = vxor.u32 %v2737, 2147483648
    %v2741 = vmul.f32 %v2740, 1.442695
    %v2742 = vpow.pop %v2741
    %v2743 = vadd.f32 %v2742, 1.0
    %v2744 = vrcp.pop %v2743
    %v2745 = vmul.f32 1.0, %v2744
    %v2746 = vtanh.pop %v2737
    %v2747 = vmul.f32 %v2745, %v2545
    %2749 = vrot.lane.b32.xlu0 %v2746, 64
    %v2750 = vpop.permute.xlu0 %2749
    %v2752 = vmul.f32 %v2745, %v2750
    %2754 = vrot.lane.b32.xlu0 %v2752, 32
    %v2755 = vpop.permute.xlu0 %2754
    %v2757 = vadd.f32 %v2747, %v2755
    %v2758 = vtanh.pop %v2757
    %2760 = vrot.lane.b32.xlu0 %v2758, 64
    %v2761 = vpop.permute.xlu0 %2760
    %v2763 = vmul.f32 %v2745, %v2761
    %v2764 = vrot.slane %v2087, 6
    %v2766 = vsel %vm60, %v2111, %v2764
    %2767 = vrot.lane.b32.xlu0 %v2657, 48
    %v2768 = vpop.permute.xlu0 %2767
    %v2770 = vsel %vm682, %v2766, %v2768
    %v2772 = vsel %vm2123, %v2770, 0
    %2774 = vmatprep.subr.mxu0 0.0
    %2775 = vmatpush1.msra.mxu0 0.0
    %2776 = vmatprep.subr.mxu0 0.0
    %2777 = vmatpush1.msra.mxu0 0.0
    %2778 = vmatprep.subr.mxu0 0.0
    %2779 = vmatpush1.msra.mxu0 0.0
    %2780 = vmatprep.subr.mxu0 0.0
    %2781 = vmatpush1.msra.mxu0 0.0
    %2782 = vmatprep.subr.mxu0 0.0
    %2783 = vmatpush1.msra.mxu0 0.0
    %2784 = vmatprep.subr.mxu0 0.0
    %2785 = vmatpush1.msra.mxu0 0.0
    %2786 = vmatprep.subr.mxu0 0.0
    %2787 = vmatpush1.msra.mxu0 0.0
    %2788 = vmatprep.subr.mxu0 0.0
    %2789 = vmatpush1.msra.mxu0 0.0
    %2790 = vmatprep.subr.mxu0 0.0
    %2791 = vmatpush1.msra.mxu0 0.0
    %2792 = vmatprep.subr.mxu0 0.0
    %2793 = vmatpush1.msra.mxu0 0.0
    %2794 = vmatprep.subr.mxu0 0.0
    %2795 = vmatpush1.msra.mxu0 %v2093
    %2796 = vmatprep.subr.mxu0 0.0
    %2797 = vmatpush1.msra.mxu0 %v2092
    %2798 = vmatprep.subr.mxu0 0.0
    %2799 = vmatpush1.msra.mxu0 %v2091
    %2800 = vmatprep.subr.mxu0 0.0
    %2801 = vmatpush1.msra.mxu0 %v2090
    %2802 = vmatprep.subr.mxu0 0.0
    %2803 = vmatpush1.msra.mxu0 %v2089
    %2804 = vmatprep.subr.mxu0 0.0
    %2805 = vmatpush1.msra.mxu0 %v2088
    %2806 = vmatprep.subr.mxu0 0.0
    %2807 = vmatpush2.msra.mxu0 0.0
    %2808 = vmatprep.subr.mxu0 0.0
    %2809 = vmatpush2.msra.mxu0 0.0
    %2810 = vmatprep.subr.mxu0 0.0
    %2811 = vmatpush2.msra.mxu0 0.0
    %2812 = vmatprep.subr.mxu0 0.0
    %2813 = vmatpush2.msra.mxu0 0.0
    %2814 = vmatprep.subr.mxu0 0.0
    %2815 = vmatpush2.msra.mxu0 0.0
    %2816 = vmatprep.subr.mxu0 0.0
    %2817 = vmatpush2.msra.mxu0 0.0
    %2818 = vmatprep.subr.mxu0 0.0
    %2819 = vmatpush2.msra.mxu0 0.0
    %2820 = vmatprep.subr.mxu0 0.0
    %2821 = vmatpush2.msra.mxu0 0.0
    %2822 = vmatprep.subr.mxu0 0.0
    %2823 = vmatpush2.msra.mxu0 0.0
    %2824 = vmatprep.subr.mxu0 0.0
    %2825 = vmatpush2.msra.mxu0 0.0
    %2826 = vmatprep.subr.mxu0 0.0
    %2827 = vmatpush2.msra.mxu0 0.0
    %2828 = vmatprep.subr.mxu0 0.0
    %2829 = vmatpush2.msra.mxu0 0.0
    %2830 = vmatprep.subr.mxu0 0.0
    %2831 = vmatpush2.msra.mxu0 0.0
    %2832 = vmatprep.subr.mxu0 0.0
    %2833 = vmatpush2.msra.mxu0 0.0
    %2834 = vmatprep.subr.mxu0 0.0
    %2835 = vmatpush2.msra.mxu0 0.0
    %2836 = vmatprep.subr.mxu0 0.0
    %2837 = vmatpush2.msra.mxu0 0.0
    %2838 = vmatprep.mubr.f32.mxu0 0.0
    %2839 = vmatmul.mubr.f32.gmra.mxu0 %v2772
    %v2840 = vpop.f32.mrf.mxu0
    %v2841 = vadd.f32 %v2122, %v2840
    %v2842 = vpop.f32.mrf.mxu0
    %2843 = vdwg.mxu0
    %v2844 = vxor.u32 %v2841, 2147483648
    %v2845 = vmul.f32 %v2844, 1.442695
    %v2846 = vpow.pop %v2845
    %v2847 = vadd.f32 %v2846, 1.0
    %v2848 = vrcp.pop %v2847
    %v2849 = vmul.f32 1.0, %v2848
    %v2850 = vtanh.pop %v2841
    %v2851 = vmul.f32 %v2849, %v2651
    %2853 = vrot.lane.b32.xlu0 %v2850, 64
    %v2854 = vpop.permute.xlu0 %2853
    %v2856 = vmul.f32 %v2849, %v2854
    %2858 = vrot.lane.b32.xlu0 %v2856, 32
    %v2859 = vpop.permute.xlu0 %2858
    %v2861 = vadd.f32 %v2851, %v2859
    %v2862 = vtanh.pop %v2861
    %2864 = vrot.lane.b32.xlu0 %v2862, 64
    %v2865 = vpop.permute.xlu0 %2864
    %v2867 = vmul.f32 %v2849, %v2865
    %2869 = vrot.lane.b32.xlu0 %v2867, 32
    %v2870 = vpop.permute.xlu0 %2869
    %2873 = vrot.lane.b32.xlu0 %v2763, 64
    %v2874 = vpop.permute.xlu0 %2873
    %v2876 = vsel %vm1388, %v2870, %v2874
    %v2878 = vsel %vm2238, %v2876, 0
    %2880 = vmatprep.subr.mxu0 0.0
    %2881 = vmatpush1.msra.mxu0 0.0
    %2882 = vmatprep.subr.mxu0 0.0
    %2883 = vmatpush1.msra.mxu0 0.0
    %2884 = vmatprep.subr.mxu0 0.0
    %2885 = vmatpush1.msra.mxu0 0.0
    %2886 = vmatprep.subr.mxu0 0.0
    %2887 = vmatpush1.msra.mxu0 0.0
    %2888 = vmatprep.subr.mxu0 0.0
    %2889 = vmatpush1.msra.mxu0 0.0
    %2890 = vmatprep.subr.mxu0 0.0
    %2891 = vmatpush1.msra.mxu0 0.0
    %2892 = vmatprep.subr.mxu0 0.0
    %2893 = vmatpush1.msra.mxu0 0.0
    %2894 = vmatprep.subr.mxu0 0.0
    %2895 = vmatpush1.msra.mxu0 0.0
    %2896 = vmatprep.subr.mxu0 0.0
    %2897 = vmatpush1.msra.mxu0 %v2102
    %2898 = vmatprep.subr.mxu0 0.0
    %2899 = vmatpush1.msra.mxu0 %v2101
    %2900 = vmatprep.subr.mxu0 0.0
    %2901 = vmatpush1.msra.mxu0 %v2100
    %2902 = vmatprep.subr.mxu0 0.0
    %2903 = vmatpush1.msra.mxu0 %v2099
    %2904 = vmatprep.subr.mxu0 0.0
    %2905 = vmatpush1.msra.mxu0 %v2098
    %2906 = vmatprep.subr.mxu0 0.0
    %2907 = vmatpush1.msra.mxu0 %v2097
    %2908 = vmatprep.subr.mxu0 0.0
    %2909 = vmatpush1.msra.mxu0 %v2096
    %2910 = vmatprep.subr.mxu0 0.0
    %2911 = vmatpush1.msra.mxu0 %v2095
    %2912 = vmatprep.subr.mxu0 0.0
    %2913 = vmatpush2.msra.mxu0 0.0
    %2914 = vmatprep.subr.mxu0 0.0
    %2915 = vmatpush2.msra.mxu0 0.0
    %2916 = vmatprep.subr.mxu0 0.0
    %2917 = vmatpush2.msra.mxu0 0.0
    %2918 = vmatprep.subr.mxu0 0.0
    %2919 = vmatpush2.msra.mxu0 0.0
    %2920 = vmatprep.subr.mxu0 0.0
    %2921 = vmatpush2.msra.mxu0 0.0
    %2922 = vmatprep.subr.mxu0 0.0
    %2923 = vmatpush2.msra.mxu0 0.0
    %2924 = vmatprep.subr.mxu0 0.0
    %2925 = vmatpush2.msra.mxu0 0.0
    %2926 = vmatprep.subr.mxu0 0.0
    %2927 = vmatpush2.msra.mxu0 0.0
    %2928 = vmatprep.subr.mxu0 0.0
    %2929 = vmatpush2.msra.mxu0 0.0
    %2930 = vmatprep.subr.mxu0 0.0
    %2931 = vmatpush2.msra.mxu0 0.0
    %2932 = vmatprep.subr.mxu0 0.0
    %2933 = vmatpush2.msra.mxu0 0.0
    %2934 = vmatprep.subr.mxu0 0.0
    %2935 = vmatpush2.msra.mxu0 0.0
    %2936 = vmatprep.subr.mxu0 0.0
    %2937 = vmatpush2.msra.mxu0 0.0
    %2938 = vmatprep.subr.mxu0 0.0
    %2939 = vmatpush2.msra.mxu0 0.0
    %2940 = vmatprep.subr.mxu0 0.0
    %2941 = vmatpush2.msra.mxu0 0.0
    %2942 = vmatprep.subr.mxu0 0.0
    %2943 = vmatpush2.msra.mxu0 0.0
    %2944 = vmatprep.mubr.f32.mxu0 0.0
    %2945 = vmatmul.mubr.f32.gmra.mxu0 %v2878
    %v2946 = vpop.f32.mrf.mxu0
    %v2947 = vadd.f32 %v2237, %v2946
    %v2948 = vpop.f32.mrf.mxu0
    %2949 = vdwg.mxu0
    %v2950 = vxor.u32 %v2947, 2147483648
    %v2951 = vmul.f32 %v2950, 1.442695
    %v2952 = vpow.pop %v2951
    %v2953 = vadd.f32 %v2952, 1.0
    %v2954 = vrcp.pop %v2953
    %v2955 = vmul.f32 1.0, %v2954
    %v2956 = vtanh.pop %v2947
    %v2957 = vmul.f32 %v2955, %v2757
    %2959 = vrot.lane.b32.xlu0 %v2956, 64
    %v2960 = vpop.permute.xlu0 %2959
    %v2962 = vmul.f32 %v2955, %v2960
    %2964 = vrot.lane.b32.xlu0 %v2962, 32
    %v2965 = vpop.permute.xlu0 %2964
    %v2967 = vadd.f32 %v2957, %v2965
    %v2968 = vtanh.pop %v2967
    %2970 = vrot.lane.b32.xlu0 %v2968, 64
    %v2971 = vpop.permute.xlu0 %2970
    %v2973 = vmul.f32 %v2955, %v2971
    %2974 = vrot.lane.b32.xlu0 %v2339, 32
    %v2975 = vpop.permute.xlu0 %2974
    %2977 = vrot.lane.b32.xlu0 %v2763, 96
    %v2978 = vpop.permute.xlu0 %2977
    %v2980 = vsel %vm1388, %v2975, %v2664
    %v2981 = vsel %vm2238, %v2980, %v2978
    %vm2982 = vcmask 785408
    %v2983 = vsel %vm2982, %v2981, %v2973
    %2984 = vst [vmem:[#allocation8] sm:$0x3] %v2983
    %v2985 = vld [vmem:[#allocation5 + $0x1f8] sm:$0xff]
    %v2986 = vld [vmem:[#allocation5 + $0x200] sm:$0xff]
    %v2987 = vld [vmem:[#allocation5 + $0x208] sm:$0xff]
    %v2988 = vld [vmem:[#allocation5 + $0x210] sm:$0xff]
    %v2989 = vld [vmem:[#allocation5 + $0x218] sm:$0x1]
    %v2990 = vlaneseq
    %v2991 = vshrl.u32 %v2990, 7
    %v2992 = vsub.s32 0, %v2991
    %v2993 = vrot.slane %v2989, %v2992
    %2995 = vrot.lane.b32.xlu0 %v2973, 32
    %v2996 = vpop.permute.xlu0 %2995
    %v2997 = vsel %vm1388, %v2996, 0
    %2999 = vmatprep.subr.mxu0 0.0
    %3000 = vmatpush1.msra.mxu0 0.0
    %3001 = vmatprep.subr.mxu0 0.0
    %3002 = vmatpush1.msra.mxu0 0.0
    %3003 = vmatprep.subr.mxu0 0.0
    %3004 = vmatpush1.msra.mxu0 0.0
    %3005 = vmatprep.subr.mxu0 0.0
    %3006 = vmatpush1.msra.mxu0 0.0
    %3007 = vmatprep.subr.mxu0 0.0
    %3008 = vmatpush1.msra.mxu0 0.0
    %3009 = vmatprep.subr.mxu0 0.0
    %3010 = vmatpush1.msra.mxu0 0.0
    %3011 = vmatprep.subr.mxu0 0.0
    %3012 = vmatpush1.msra.mxu0 0.0
    %3013 = vmatprep.subr.mxu0 0.0
    %3014 = vmatpush1.msra.mxu0 0.0
    %3015 = vmatprep.subr.mxu0 0.0
    %3016 = vmatpush1.msra.mxu0 0.0
    %3017 = vmatprep.subr.mxu0 0.0
    %3018 = vmatpush1.msra.mxu0 0.0
    %3019 = vmatprep.subr.mxu0 0.0
    %3020 = vmatpush1.msra.mxu0 0.0
    %3021 = vmatprep.subr.mxu0 0.0
    %3022 = vmatpush1.msra.mxu0 0.0
    %3023 = vmatprep.subr.mxu0 0.0
    %3024 = vmatpush1.msra.mxu0 %v2988
    %3025 = vmatprep.subr.mxu0 0.0
    %3026 = vmatpush1.msra.mxu0 %v2987
    %3027 = vmatprep.subr.mxu0 0.0
    %3028 = vmatpush1.msra.mxu0 %v2986
    %3029 = vmatprep.subr.mxu0 0.0
    %3030 = vmatpush1.msra.mxu0 %v2985
    %3031 = vmatprep.subr.mxu0 0.0
    %3032 = vmatpush2.msra.mxu0 0.0
    %3033 = vmatprep.subr.mxu0 0.0
    %3034 = vmatpush2.msra.mxu0 0.0
    %3035 = vmatprep.subr.mxu0 0.0
    %3036 = vmatpush2.msra.mxu0 0.0
    %3037 = vmatprep.subr.mxu0 0.0
    %3038 = vmatpush2.msra.mxu0 0.0
    %3039 = vmatprep.subr.mxu0 0.0
    %3040 = vmatpush2.msra.mxu0 0.0
    %3041 = vmatprep.subr.mxu0 0.0
    %3042 = vmatpush2.msra.mxu0 0.0
    %3043 = vmatprep.subr.mxu0 0.0
    %3044 = vmatpush2.msra.mxu0 0.0
    %3045 = vmatprep.subr.mxu0 0.0
    %3046 = vmatpush2.msra.mxu0 0.0
    %3047 = vmatprep.subr.mxu0 0.0
    %3048 = vmatpush2.msra.mxu0 0.0
    %3049 = vmatprep.subr.mxu0 0.0
    %3050 = vmatpush2.msra.mxu0 0.0
    %3051 = vmatprep.subr.mxu0 0.0
    %3052 = vmatpush2.msra.mxu0 0.0
    %3053 = vmatprep.subr.mxu0 0.0
    %3054 = vmatpush2.msra.mxu0 0.0
    %3055 = vmatprep.subr.mxu0 0.0
    %3056 = vmatpush2.msra.mxu0 0.0
    %3057 = vmatprep.subr.mxu0 0.0
    %3058 = vmatpush2.msra.mxu0 0.0
    %3059 = vmatprep.subr.mxu0 0.0
    %3060 = vmatpush2.msra.mxu0 0.0
    %3061 = vmatprep.subr.mxu0 0.0
    %3062 = vmatpush2.msra.mxu0 0.0
    %3063 = vmatprep.mubr.f32.mxu0 0.0
    %3064 = vmatmul.mubr.f32.gmra.mxu0 %v2997
    %v3065 = vpop.f32.mrf.mxu0
    %v3066 = vadd.f32 %v2993, %v3065
    %v3067 = vpop.f32.mrf.mxu0
    %3068 = vdwg.mxu0
    %vm3069 = vcmask 123904
    %v3070 = vsel %vm3069, %v3066, 0.0
    %3071 = vadd.xlane.f32.xlu0 %v3070
    %v3072 = vpop.xlane.xlu0 %3071
    %v3073 = vrot.slane %v3072, 4
    %v3074 = vadd.f32 %v3072, %v3073
    %v3075 = vrot.slane %v3074, 2
    %v3076 = vadd.f32 %v3074, %v3075
    %v3077 = vrot.slane %v3076, 1
    %v3078 = vadd.f32 %v3076, %v3077
    %s3079 = vtos %v3078
    %v3080 = vstv %s3079
    %v3081 = vmul.f32 %v3080, %v1737
    %v3082 = vsub.f32 %v3066, %v3081
    %v3083 = vmul.f32 %v3082, %v3082
    %v3084 = vsel %vm3069, %v3083, 0.0
    %3085 = vadd.xlane.f32.xlu0 %v3084
    %v3086 = vpop.xlane.xlu0 %3085
    %v3087 = vrot.slane %v3086, 4
    %v3088 = vadd.f32 %v3086, %v3087
    %v3089 = vrot.slane %v3088, 2
    %v3090 = vadd.f32 %v3088, %v3089
    %v3091 = vrot.slane %v3090, 1
    %v3092 = vadd.f32 %v3090, %v3091
    %s3093 = vtos %v3092
    %v3094 = vstv %s3093
    %v3095 = vmul.f32 %v3094, %v1737
    %v3096 = vadd.f32 %v3095, 1e-05
    %v3097 = vrsqrt.pop %v3096
    %v3098 = vmul.f32 %v3082, %v3097
    %v3099 = vld [vmem:[#allocation5 + $0x230] sm:$0x1]
    %s3101 = vtos %v3099
    %v3102 = vstv %s3101
    %v3104 = vmul.f32 %v3098, %v3102
    %v3105 = vld [vmem:[#allocation5 + $0x238] sm:$0x1]
    %s3107 = vtos %v3105
    %v3108 = vstv %s3107
    %v3110 = vadd.f32 %v3104, %v3108
    %v3111 = vmax.f32 %v3110, 0.0
    %v3112 = vld [vmem:[#allocation5 + $0x220] sm:$0x1]
    %v3113 = vlaneseq
    %v3114 = vshrl.u32 %v3113, 7
    %v3115 = vsub.s32 0, %v3114
    %v3116 = vrot.slane %v3112, %v3115
    %v3117 = vmul.f32 %v3111, %v3116
    %v3118 = vsel %vm3069, %v3117, 0.0
    %3119 = vadd.xlane.f32.xlu0 %v3118
    %v3120 = vpop.xlane.xlu0 %3119
    %v3121 = vld [vmem:[#allocation5 + $0x228] sm:$0x1]
    %v3122 = vlaneseq
    %v3123 = vshrl.u32 %v3122, 7
    %v3124 = vsub.s32 0, %v3123
    %v3125 = vrot.slane %v3121, %v3124
    %v3126 = vadd.f32 %v3120, %v3125
    %vm3127 = vcmask 1024
    %3128 = vst.msk [vmem:[%s5] sm:$0x3] %vm3127, %v3126
    // Predicated region
    $region22: #{tpu_custom_call.1} parent=1 // pred_check
      _
    $region23: #{tpu_custom_call.1} parent=1 // pred_check_branch
      %3130 = sbr.rel (0) target = $region25
    $region24: #{tpu_custom_call.1} parent=1 // pred_region
      %s3132 = ssub.s32 32, 32
      %3133 = vsyncadd [#allocation7], %s3132
      %s3135 = sshll.u32 [#allocation8], 4
      %s3136 = int_to_ptr.vmem [resolvable:$true] %s3135
      %3138 = dma.vmem_to_hbm [thread:$0]  %s3136, 32, %s4, [#allocation7]
    $region25: #{tpu_custom_call.1} parent=1 // pred_fallthru
      _
    // Predicated region
    $region26: #{tpu_custom_call.1} parent=1 // pred_check
      _
    $region27: #{tpu_custom_call.1} parent=1 // pred_check_branch
      %3140 = sbr.rel (0) target = $region29
    $region28: #{tpu_custom_call.1} parent=1 // pred_region
      _
    $region29: #{tpu_custom_call.1} parent=1 // pred_fallthru
      _
    // Predicated region
    $region30: #{tpu_custom_call.1} parent=1 // pred_check
      _
    $region31: #{tpu_custom_call.1} parent=1 // pred_check_branch
      %3142 = sbr.rel (0) target = $region33
    $region32: #{tpu_custom_call.1} parent=1 // pred_region
      %3143 = dma.done [#allocation7], 32
    $region33: #{tpu_custom_call.1} parent=1 // pred_fallthru
      _
    // Predicated region
    $region34: #{tpu_custom_call.1} parent=1 // pred_check
      _
    $region35: #{tpu_custom_call.1} parent=1 // pred_check_branch
      %3145 = sbr.rel (0) target = $region37
    $region36: #{tpu_custom_call.1} parent=1 // pred_region
      _
    $region37: #{tpu_custom_call.1} parent=1 // pred_fallthru
      _
    %3146 = vsyncpa [#allocation6], 1
    %3147 = vsyncpa [#allocation7], 1

</llo_original>
